<compile_context>
chip_gen: v7x
topology: tpu7x:2x2x1
jax: 0.10.0
libtpu: 0.0.40
codegen_flags: <defaults>
</compile_context>

<pallas_src>
import functools

import numpy as np
import jax
import jax.numpy as jnp
from jax.experimental import pallas as pl
from jax.experimental.pallas import tpu as pltpu

LANE = 128  # TPU lane width; final output channels are padded to this.


# ------------------------------ Pallas kernel --------------------------------
def _encoder_kernel(cols1_ref, w1_ref, b1_ref,
                    g2_ref, w2_ref, b2_ref,
                    g3_ref, w3_ref, b3_ref,
                    w4_ref, b4_ref, wp_ref, bp_ref,
                    out_ref):
    """Whole Encoder forward; all activations stay resident in VMEM/vregs."""
    f32, bf16 = jnp.float32, jnp.bfloat16

    k2, hid, _ = w2_ref.shape          # taps (=16) / hidden channels
    k3 = w3_ref.shape[0]               # taps (=9)
    m2 = g2_ref.shape[0] // k2         # rows (= batch * 4 * 4) after conv2

    def mxdot(a, b):                   # bf16 operands on the MXU, f32 accum.
        return jnp.dot(a, b, preferred_element_type=f32)

    # ---- layer 1: strided_conv_1 (4x4 s2 p1) as one GEMM over im2col patches.
    act1 = mxdot(cols1_ref[...], w1_ref[...]) + b1_ref[...]        # (m1, hid) f32
    act1_bf = act1.astype(bf16)

    # ---- layer 2: strided_conv_2 (4x4 s2 p1) + ReLU.
    # One big gather matmul (all taps at once, exact 0/1 selection of rows of
    # act1), then one small (hid, hid) weight matmul per tap, f32 accumulation.
    gat2 = mxdot(g2_ref[...], act1_bf).astype(bf16)                # (k2*m2, hid)
    acc2 = mxdot(gat2[0:m2], w2_ref[0])
    for k in range(1, k2):
        acc2 = acc2 + mxdot(gat2[k * m2:(k + 1) * m2], w2_ref[k])
    act2 = jnp.maximum(acc2 + b2_ref[...], 0.0)                    # (m2, hid) f32
    act2_bf = act2.astype(bf16)

    # ---- layer 3: residual_conv_1 (3x3 s1 p1), residual add, ReLU.
    gat3 = mxdot(g3_ref[...], act2_bf).astype(bf16)                # (k3*m2, hid)
    acc3 = mxdot(gat3[0:m2], w3_ref[0])
    for k in range(1, k3):
        acc3 = acc3 + mxdot(gat3[k * m2:(k + 1) * m2], w3_ref[k])
    act3 = jnp.maximum(acc3 + b3_ref[...] + act2, 0.0)             # f32

    # ---- layer 4: residual_conv_2 (1x1) + residual add.
    y4 = mxdot(act3.astype(bf16), w4_ref[...]) + b4_ref[...] + act3

    # ---- layer 5: proj (1x1); weights/bias pre-padded to 128 output lanes so
    # this single store is lane-dense.
    out = mxdot(y4.astype(bf16), wp_ref[...]) + bp_ref[...]
    out_ref[...] = out.astype(out_ref.dtype)


# ------------------------------- JAX / numpy glue -----------------------------
def _im2col(x_nhwc, kh, kw, stride, padding):
    """im2col of the raw input; column order is (kh, kw, C) with C fastest."""
    n, h, w, c = x_nhwc.shape
    xp = jnp.pad(x_nhwc, ((0, 0), (padding, padding), (padding, padding), (0, 0)))
    oh = (h + 2 * padding - kh) // stride + 1
    ow = (w + 2 * padding - kw) // stride + 1
    patches = []
    for i in range(kh):
        for j in range(kw):
            patches.append(xp[:, i:i + stride * oh:stride, j:j + stride * ow:stride, :])
    cols = jnp.concatenate(patches, axis=-1)          # (n, oh, ow, kh*kw*c)
    return cols.reshape(n * oh * ow, kh * kw * c), (n, oh, ow)


def _gather_mats(batch, in_hw, out_hw, ksize, stride, pad):
    """Constant 0/1 row-selection matrices, one per kernel offset.

    mats[k, q, r] = 1  iff  output pixel q (row order n, oh, ow) reads input
    pixel r (row order n, ih, iw) at kernel offset k = i*ksize + j.
    Out-of-bounds (zero-padding) taps are left as all-zero rows.
    """
    ih_, iw_ = in_hw
    oh_, ow_ = out_hw
    m = np.zeros((ksize * ksize, batch * oh_ * ow_, batch * ih_ * iw_), np.float32)
    for i in range(ksize):
        for j in range(ksize):
            k = i * ksize + j
            for n in range(batch):
                for oh in range(oh_):
                    for ow in range(ow_):
                        ih = oh * stride + i - pad
                        iw = ow * stride + j - pad
                        if 0 <= ih < ih_ and 0 <= iw < iw_:
                            m[k, n * oh_ * ow_ + oh * ow_ + ow,
                                 n * ih_ * iw_ + ih * iw_ + iw] = 1.0
    return m


def prepare_params(params, batch, spatial):
    """One-time prep (outside the hot path): GEMM-shaped bf16 weights, f32
    biases, stacked constant gather matrices, lane-dense (128-padded) proj."""
    bf16, f32 = jnp.bfloat16, jnp.float32
    k1 = params["w1"].shape[0]
    k2 = params["w2"].shape[0]
    k3 = params["w3"].shape[0]
    hid = params["w1"].shape[3]
    cout = params["wp"].shape[3]
    assert cout <= LANE
    h1 = (spatial + 2 - k1) // 2 + 1          # after strided conv 1
    h2 = (h1 + 2 - k2) // 2 + 1               # after strided conv 2
    m1 = batch * h1 * h1
    m2 = batch * h2 * h2

    # Stack the per-tap gather matrices vertically: one big (taps*m2, m_in)
    # matrix -> a single gather matmul per conv layer inside the kernel.
    g2 = _gather_mats(batch, (h1, h1), (h2, h2), k2, 2, 1).reshape(k2 * k2 * m2, m1)
    g3 = _gather_mats(batch, (h2, h2), (h2, h2), k3, 1, 1).reshape(k3 * k3 * m2, m2)

    wp = jnp.zeros((hid, LANE), bf16).at[:, :cout].set(
        params["wp"].reshape(hid, cout).astype(bf16))
    bp = jnp.zeros((1, LANE), f32).at[:, :cout].set(
        params["bp"].reshape(1, cout).astype(f32))

    return {
        "w1": params["w1"].reshape(-1, hid).astype(bf16),
        "b1": params["b1"].reshape(1, hid).astype(f32),
        "g2": jnp.asarray(g2, dtype=bf16),
        "w2": params["w2"].reshape(k2 * k2, hid, hid).astype(bf16),
        "b2": params["b2"].reshape(1, hid).astype(f32),
        "g3": jnp.asarray(g3, dtype=bf16),
        "w3": params["w3"].reshape(k3 * k3, hid, hid).astype(bf16),
        "b3": params["b3"].reshape(1, hid).astype(f32),
        "w4": params["w4"].reshape(hid, hid).astype(bf16),
        "b4": params["b4"].reshape(1, hid).astype(f32),
        "wp": wp,
        "bp": bp,
    }


@functools.partial(jax.jit, static_argnames=("output_dim",))
def encoder_forward(x_nchw, prep, *, output_dim):
    n, _, h, w = x_nchw.shape
    h_c1, w_c1 = (h - 2) // 2 + 1, (w - 2) // 2 + 1         # after conv1 (4x4 s2 p1)
    h_c2, w_c2 = (h_c1 - 2) // 2 + 1, (w_c1 - 2) // 2 + 1   # after conv2
    m2 = n * h_c2 * w_c2

    x = jnp.transpose(x_nchw, (0, 2, 3, 1))             # NCHW -> NHWC
    cols1, _ = _im2col(x, 4, 4, stride=2, padding=1)    # raw input only (tiny)
    cols1 = cols1.astype(jnp.bfloat16)

    out2d = pl.pallas_call(
        _encoder_kernel,
        out_shape=jax.ShapeDtypeStruct((m2, LANE), jnp.float32),
        in_specs=[pl.BlockSpec(memory_space=pltpu.MemorySpace.VMEM)
                  for _ in range(13)],
        out_specs=pl.BlockSpec(memory_space=pltpu.MemorySpace.VMEM),
    )(cols1, prep["w1"], prep["b1"],
      prep["g2"], prep["w2"], prep["b2"],
      prep["g3"], prep["w3"], prep["b3"],
      prep["w4"], prep["b4"], prep["wp"], prep["bp"])

    out = out2d[:, :output_dim].reshape(n, h_c2, w_c2, output_dim)
    return jnp.transpose(out, (0, 3, 1, 2))             # NHWC -> NCHW


# Pure-JAX reference (lax.conv, full f32 precision) — correctness check only.
def encoder_forward_ref(x_nchw, p):
    x = jnp.transpose(x_nchw, (0, 2, 3, 1))

    def conv(x, w, b, stride, padding):
        out = jax.lax.conv_general_dilated(
            x, w, window_strides=(stride, stride),
            padding=[(padding, padding), (padding, padding)],
            dimension_numbers=("NHWC", "HWIO", "NHWC"),
            precision=jax.lax.Precision.HIGHEST)
        return out + b

    x = conv(x, p["w1"], p["b1"], 2, 1)
    x = jax.nn.relu(conv(x, p["w2"], p["b2"], 2, 1))
    x = jax.nn.relu(conv(x, p["w3"], p["b3"], 1, 1) + x)
    y = conv(x, p["w4"], p["b4"], 1, 0) + x
    y = conv(y, p["wp"], p["bp"], 1, 0)
    return jnp.transpose(y, (0, 3, 1, 2))


# ----------------------------- deterministic params --------------------------
def init_params(key, input_dim, hidden_dim, output_dim):
    ks = jax.random.split(key, 10)

    def conv_init(kw_key, kb_key, kh, kw, cin, cout):
        bound = 1.0 / np.sqrt(kh * kw * cin)           # PyTorch default-ish init
        w = jax.random.uniform(kw_key, (kh, kw, cin, cout), jnp.float32,
                               -bound, bound)
        b = jax.random.uniform(kb_key, (cout,), jnp.float32, -bound, bound)
        return w, b

    w1, b1 = conv_init(ks[0], ks[1], 4, 4, input_dim, hidden_dim)
    w2, b2 = conv_init(ks[2], ks[3], 4, 4, hidden_dim, hidden_dim)
    w3, b3 = conv_init(ks[4], ks[5], 3, 3, hidden_dim, hidden_dim)
    w4, b4 = conv_init(ks[6], ks[7], 1, 1, hidden_dim, hidden_dim)
    wp, bp = conv_init(ks[8], ks[9], 1, 1, hidden_dim, output_dim)
    return dict(w1=w1, b1=b1, w2=w2, b2=b2, w3=w3, b3=b3,
                w4=w4, b4=b4, wp=wp, bp=bp)


if __name__ == "__main__":
    batch, input_dim, hidden_dim, output_dim, spatial = 2, 3, 32, 3, 16

    key = jax.random.PRNGKey(0)
    k_x, k_p = jax.random.split(key)
    x = jax.random.normal(k_x, (batch, input_dim, spatial, spatial), jnp.float32)
    params = init_params(k_p, input_dim, hidden_dim, output_dim)
    prep = prepare_params(params, batch, spatial)

    out = encoder_forward(x, prep, output_dim=output_dim)
    out = jax.block_until_ready(out)

    assert out.shape == (batch, output_dim, spatial // 4, spatial // 4)

    ref = encoder_forward_ref(x, params)
    # Tolerance is deliberately ~bf16-level: MXU operands are cast to bf16
    # (per TPU guidance); accumulation and all epilogues are f32.
    np.testing.assert_allclose(np.asarray(out), np.asarray(ref),
                               rtol=2e-2, atol=2e-2)
    print("KERNEL_OK")
</pallas_src>

<mosaic_0001>
module attributes {stable_mosaic.version = 11 : i64} {
  func.func @_encoder_kernel(%arg0: memref<128x48xbf16, #tpu.memory_space<vmem>>, %arg1: memref<48x32xbf16, #tpu.memory_space<vmem>>, %arg2: memref<1x32xf32, #tpu.memory_space<vmem>>, %arg3: memref<512x128xbf16, #tpu.memory_space<vmem>>, %arg4: memref<16x32x32xbf16, #tpu.memory_space<vmem>>, %arg5: memref<1x32xf32, #tpu.memory_space<vmem>>, %arg6: memref<288x32xbf16, #tpu.memory_space<vmem>>, %arg7: memref<9x32x32xbf16, #tpu.memory_space<vmem>>, %arg8: memref<1x32xf32, #tpu.memory_space<vmem>>, %arg9: memref<32x32xbf16, #tpu.memory_space<vmem>>, %arg10: memref<1x32xf32, #tpu.memory_space<vmem>>, %arg11: memref<32x128xbf16, #tpu.memory_space<vmem>>, %arg12: memref<1x128xf32, #tpu.memory_space<vmem>>, %arg13: memref<32x128xf32, #tpu.memory_space<vmem>>) attributes {dimension_semantics = [], scalar_prefetch = 0 : i64, scratch_operands = 0 : i64, tpu.core_type = #tpu.core_type<tc>} {
    %c0 = arith.constant 0 : index
    %c0_0 = arith.constant 0 : index
    %0 = vector.load %arg0[%c0, %c0_0] : memref<128x48xbf16, #tpu.memory_space<vmem>>, vector<128x48xbf16>
    %c0_1 = arith.constant 0 : index
    %c0_2 = arith.constant 0 : index
    %1 = vector.load %arg1[%c0_1, %c0_2] : memref<48x32xbf16, #tpu.memory_space<vmem>>, vector<48x32xbf16>
    %cst = arith.constant dense<0.000000e+00> : vector<128x32xf32>
    %2 = tpu.matmul %0, %1, %cst {dimension_numbers = #tpu.dot_dimension_numbers<[1], [0], [0], [1], [0, 0, 1, 1], [], []>} : vector<128x48xbf16>, vector<48x32xbf16>, vector<128x32xf32> -> vector<128x32xf32>
    %c0_3 = arith.constant 0 : index
    %c0_4 = arith.constant 0 : index
    %3 = vector.load %arg2[%c0_3, %c0_4] : memref<1x32xf32, #tpu.memory_space<vmem>>, vector<1x32xf32>
    %4 = vector.broadcast %3 : vector<1x32xf32> to vector<128x32xf32>
    %5 = arith.addf %2, %4 : vector<128x32xf32>
    %6 = arith.truncf %5 : vector<128x32xf32> to vector<128x32xbf16>
    %c0_5 = arith.constant 0 : index
    %c0_6 = arith.constant 0 : index
    %7 = vector.load %arg3[%c0_5, %c0_6] : memref<512x128xbf16, #tpu.memory_space<vmem>>, vector<512x128xbf16>
    %cst_7 = arith.constant dense<0.000000e+00> : vector<512x32xf32>
    %8 = tpu.matmul %7, %6, %cst_7 {dimension_numbers = #tpu.dot_dimension_numbers<[1], [0], [0], [1], [0, 0, 1, 1], [], []>} : vector<512x128xbf16>, vector<128x32xbf16>, vector<512x32xf32> -> vector<512x32xf32>
    %9 = arith.truncf %8 : vector<512x32xf32> to vector<512x32xbf16>
    %10 = vector.extract_strided_slice %9 {offsets = [0, 0], sizes = [32, 32], strides = [1, 1]} : vector<512x32xbf16> to vector<32x32xbf16>
    %c0_8 = arith.constant 0 : index
    %c0_9 = arith.constant 0 : index
    %c0_10 = arith.constant 0 : index
    %11 = vector.load %arg4[%c0_8, %c0_9, %c0_10] : memref<16x32x32xbf16, #tpu.memory_space<vmem>>, vector<1x32x32xbf16>
    %12 = vector.shape_cast %11 : vector<1x32x32xbf16> to vector<32x32xbf16>
    %cst_11 = arith.constant dense<0.000000e+00> : vector<32x32xf32>
    %13 = tpu.matmul %10, %12, %cst_11 {dimension_numbers = #tpu.dot_dimension_numbers<[1], [0], [0], [1], [0, 0, 1, 1], [], []>} : vector<32x32xbf16>, vector<32x32xbf16>, vector<32x32xf32> -> vector<32x32xf32>
    %14 = vector.extract_strided_slice %9 {offsets = [32, 0], sizes = [32, 32], strides = [1, 1]} : vector<512x32xbf16> to vector<32x32xbf16>
    %c1 = arith.constant 1 : index
    %c0_12 = arith.constant 0 : index
    %c0_13 = arith.constant 0 : index
    %15 = vector.load %arg4[%c1, %c0_12, %c0_13] : memref<16x32x32xbf16, #tpu.memory_space<vmem>>, vector<1x32x32xbf16>
    %16 = vector.shape_cast %15 : vector<1x32x32xbf16> to vector<32x32xbf16>
    %cst_14 = arith.constant dense<0.000000e+00> : vector<32x32xf32>
    %17 = tpu.matmul %14, %16, %cst_14 {dimension_numbers = #tpu.dot_dimension_numbers<[1], [0], [0], [1], [0, 0, 1, 1], [], []>} : vector<32x32xbf16>, vector<32x32xbf16>, vector<32x32xf32> -> vector<32x32xf32>
    %18 = arith.addf %13, %17 : vector<32x32xf32>
    %19 = vector.extract_strided_slice %9 {offsets = [64, 0], sizes = [32, 32], strides = [1, 1]} : vector<512x32xbf16> to vector<32x32xbf16>
    %c2 = arith.constant 2 : index
    %c0_15 = arith.constant 0 : index
    %c0_16 = arith.constant 0 : index
    %20 = vector.load %arg4[%c2, %c0_15, %c0_16] : memref<16x32x32xbf16, #tpu.memory_space<vmem>>, vector<1x32x32xbf16>
    %21 = vector.shape_cast %20 : vector<1x32x32xbf16> to vector<32x32xbf16>
    %cst_17 = arith.constant dense<0.000000e+00> : vector<32x32xf32>
    %22 = tpu.matmul %19, %21, %cst_17 {dimension_numbers = #tpu.dot_dimension_numbers<[1], [0], [0], [1], [0, 0, 1, 1], [], []>} : vector<32x32xbf16>, vector<32x32xbf16>, vector<32x32xf32> -> vector<32x32xf32>
    %23 = arith.addf %18, %22 : vector<32x32xf32>
    %24 = vector.extract_strided_slice %9 {offsets = [96, 0], sizes = [32, 32], strides = [1, 1]} : vector<512x32xbf16> to vector<32x32xbf16>
    %c3 = arith.constant 3 : index
    %c0_18 = arith.constant 0 : index
    %c0_19 = arith.constant 0 : index
    %25 = vector.load %arg4[%c3, %c0_18, %c0_19] : memref<16x32x32xbf16, #tpu.memory_space<vmem>>, vector<1x32x32xbf16>
    %26 = vector.shape_cast %25 : vector<1x32x32xbf16> to vector<32x32xbf16>
    %cst_20 = arith.constant dense<0.000000e+00> : vector<32x32xf32>
    %27 = tpu.matmul %24, %26, %cst_20 {dimension_numbers = #tpu.dot_dimension_numbers<[1], [0], [0], [1], [0, 0, 1, 1], [], []>} : vector<32x32xbf16>, vector<32x32xbf16>, vector<32x32xf32> -> vector<32x32xf32>
    %28 = arith.addf %23, %27 : vector<32x32xf32>
    %29 = vector.extract_strided_slice %9 {offsets = [128, 0], sizes = [32, 32], strides = [1, 1]} : vector<512x32xbf16> to vector<32x32xbf16>
    %c4 = arith.constant 4 : index
    %c0_21 = arith.constant 0 : index
    %c0_22 = arith.constant 0 : index
    %30 = vector.load %arg4[%c4, %c0_21, %c0_22] : memref<16x32x32xbf16, #tpu.memory_space<vmem>>, vector<1x32x32xbf16>
    %31 = vector.shape_cast %30 : vector<1x32x32xbf16> to vector<32x32xbf16>
    %cst_23 = arith.constant dense<0.000000e+00> : vector<32x32xf32>
    %32 = tpu.matmul %29, %31, %cst_23 {dimension_numbers = #tpu.dot_dimension_numbers<[1], [0], [0], [1], [0, 0, 1, 1], [], []>} : vector<32x32xbf16>, vector<32x32xbf16>, vector<32x32xf32> -> vector<32x32xf32>
    %33 = arith.addf %28, %32 : vector<32x32xf32>
    %34 = vector.extract_strided_slice %9 {offsets = [160, 0], sizes = [32, 32], strides = [1, 1]} : vector<512x32xbf16> to vector<32x32xbf16>
    %c5 = arith.constant 5 : index
    %c0_24 = arith.constant 0 : index
    %c0_25 = arith.constant 0 : index
    %35 = vector.load %arg4[%c5, %c0_24, %c0_25] : memref<16x32x32xbf16, #tpu.memory_space<vmem>>, vector<1x32x32xbf16>
    %36 = vector.shape_cast %35 : vector<1x32x32xbf16> to vector<32x32xbf16>
    %cst_26 = arith.constant dense<0.000000e+00> : vector<32x32xf32>
    %37 = tpu.matmul %34, %36, %cst_26 {dimension_numbers = #tpu.dot_dimension_numbers<[1], [0], [0], [1], [0, 0, 1, 1], [], []>} : vector<32x32xbf16>, vector<32x32xbf16>, vector<32x32xf32> -> vector<32x32xf32>
    %38 = arith.addf %33, %37 : vector<32x32xf32>
    %39 = vector.extract_strided_slice %9 {offsets = [192, 0], sizes = [32, 32], strides = [1, 1]} : vector<512x32xbf16> to vector<32x32xbf16>
    %c6 = arith.constant 6 : index
    %c0_27 = arith.constant 0 : index
    %c0_28 = arith.constant 0 : index
    %40 = vector.load %arg4[%c6, %c0_27, %c0_28] : memref<16x32x32xbf16, #tpu.memory_space<vmem>>, vector<1x32x32xbf16>
    %41 = vector.shape_cast %40 : vector<1x32x32xbf16> to vector<32x32xbf16>
    %cst_29 = arith.constant dense<0.000000e+00> : vector<32x32xf32>
    %42 = tpu.matmul %39, %41, %cst_29 {dimension_numbers = #tpu.dot_dimension_numbers<[1], [0], [0], [1], [0, 0, 1, 1], [], []>} : vector<32x32xbf16>, vector<32x32xbf16>, vector<32x32xf32> -> vector<32x32xf32>
    %43 = arith.addf %38, %42 : vector<32x32xf32>
    %44 = vector.extract_strided_slice %9 {offsets = [224, 0], sizes = [32, 32], strides = [1, 1]} : vector<512x32xbf16> to vector<32x32xbf16>
    %c7 = arith.constant 7 : index
    %c0_30 = arith.constant 0 : index
    %c0_31 = arith.constant 0 : index
    %45 = vector.load %arg4[%c7, %c0_30, %c0_31] : memref<16x32x32xbf16, #tpu.memory_space<vmem>>, vector<1x32x32xbf16>
    %46 = vector.shape_cast %45 : vector<1x32x32xbf16> to vector<32x32xbf16>
    %cst_32 = arith.constant dense<0.000000e+00> : vector<32x32xf32>
    %47 = tpu.matmul %44, %46, %cst_32 {dimension_numbers = #tpu.dot_dimension_numbers<[1], [0], [0], [1], [0, 0, 1, 1], [], []>} : vector<32x32xbf16>, vector<32x32xbf16>, vector<32x32xf32> -> vector<32x32xf32>
    %48 = arith.addf %43, %47 : vector<32x32xf32>
    %49 = vector.extract_strided_slice %9 {offsets = [256, 0], sizes = [32, 32], strides = [1, 1]} : vector<512x32xbf16> to vector<32x32xbf16>
    %c8 = arith.constant 8 : index
    %c0_33 = arith.constant 0 : index
    %c0_34 = arith.constant 0 : index
    %50 = vector.load %arg4[%c8, %c0_33, %c0_34] : memref<16x32x32xbf16, #tpu.memory_space<vmem>>, vector<1x32x32xbf16>
    %51 = vector.shape_cast %50 : vector<1x32x32xbf16> to vector<32x32xbf16>
    %cst_35 = arith.constant dense<0.000000e+00> : vector<32x32xf32>
    %52 = tpu.matmul %49, %51, %cst_35 {dimension_numbers = #tpu.dot_dimension_numbers<[1], [0], [0], [1], [0, 0, 1, 1], [], []>} : vector<32x32xbf16>, vector<32x32xbf16>, vector<32x32xf32> -> vector<32x32xf32>
    %53 = arith.addf %48, %52 : vector<32x32xf32>
    %54 = vector.extract_strided_slice %9 {offsets = [288, 0], sizes = [32, 32], strides = [1, 1]} : vector<512x32xbf16> to vector<32x32xbf16>
    %c9 = arith.constant 9 : index
    %c0_36 = arith.constant 0 : index
    %c0_37 = arith.constant 0 : index
    %55 = vector.load %arg4[%c9, %c0_36, %c0_37] : memref<16x32x32xbf16, #tpu.memory_space<vmem>>, vector<1x32x32xbf16>
    %56 = vector.shape_cast %55 : vector<1x32x32xbf16> to vector<32x32xbf16>
    %cst_38 = arith.constant dense<0.000000e+00> : vector<32x32xf32>
    %57 = tpu.matmul %54, %56, %cst_38 {dimension_numbers = #tpu.dot_dimension_numbers<[1], [0], [0], [1], [0, 0, 1, 1], [], []>} : vector<32x32xbf16>, vector<32x32xbf16>, vector<32x32xf32> -> vector<32x32xf32>
    %58 = arith.addf %53, %57 : vector<32x32xf32>
    %59 = vector.extract_strided_slice %9 {offsets = [320, 0], sizes = [32, 32], strides = [1, 1]} : vector<512x32xbf16> to vector<32x32xbf16>
    %c10 = arith.constant 10 : index
    %c0_39 = arith.constant 0 : index
    %c0_40 = arith.constant 0 : index
    %60 = vector.load %arg4[%c10, %c0_39, %c0_40] : memref<16x32x32xbf16, #tpu.memory_space<vmem>>, vector<1x32x32xbf16>
    %61 = vector.shape_cast %60 : vector<1x32x32xbf16> to vector<32x32xbf16>
    %cst_41 = arith.constant dense<0.000000e+00> : vector<32x32xf32>
    %62 = tpu.matmul %59, %61, %cst_41 {dimension_numbers = #tpu.dot_dimension_numbers<[1], [0], [0], [1], [0, 0, 1, 1], [], []>} : vector<32x32xbf16>, vector<32x32xbf16>, vector<32x32xf32> -> vector<32x32xf32>
    %63 = arith.addf %58, %62 : vector<32x32xf32>
    %64 = vector.extract_strided_slice %9 {offsets = [352, 0], sizes = [32, 32], strides = [1, 1]} : vector<512x32xbf16> to vector<32x32xbf16>
    %c11 = arith.constant 11 : index
    %c0_42 = arith.constant 0 : index
    %c0_43 = arith.constant 0 : index
    %65 = vector.load %arg4[%c11, %c0_42, %c0_43] : memref<16x32x32xbf16, #tpu.memory_space<vmem>>, vector<1x32x32xbf16>
    %66 = vector.shape_cast %65 : vector<1x32x32xbf16> to vector<32x32xbf16>
    %cst_44 = arith.constant dense<0.000000e+00> : vector<32x32xf32>
    %67 = tpu.matmul %64, %66, %cst_44 {dimension_numbers = #tpu.dot_dimension_numbers<[1], [0], [0], [1], [0, 0, 1, 1], [], []>} : vector<32x32xbf16>, vector<32x32xbf16>, vector<32x32xf32> -> vector<32x32xf32>
    %68 = arith.addf %63, %67 : vector<32x32xf32>
    %69 = vector.extract_strided_slice %9 {offsets = [384, 0], sizes = [32, 32], strides = [1, 1]} : vector<512x32xbf16> to vector<32x32xbf16>
    %c12 = arith.constant 12 : index
    %c0_45 = arith.constant 0 : index
    %c0_46 = arith.constant 0 : index
    %70 = vector.load %arg4[%c12, %c0_45, %c0_46] : memref<16x32x32xbf16, #tpu.memory_space<vmem>>, vector<1x32x32xbf16>
    %71 = vector.shape_cast %70 : vector<1x32x32xbf16> to vector<32x32xbf16>
    %cst_47 = arith.constant dense<0.000000e+00> : vector<32x32xf32>
    %72 = tpu.matmul %69, %71, %cst_47 {dimension_numbers = #tpu.dot_dimension_numbers<[1], [0], [0], [1], [0, 0, 1, 1], [], []>} : vector<32x32xbf16>, vector<32x32xbf16>, vector<32x32xf32> -> vector<32x32xf32>
    %73 = arith.addf %68, %72 : vector<32x32xf32>
    %74 = vector.extract_strided_slice %9 {offsets = [416, 0], sizes = [32, 32], strides = [1, 1]} : vector<512x32xbf16> to vector<32x32xbf16>
    %c13 = arith.constant 13 : index
    %c0_48 = arith.constant 0 : index
    %c0_49 = arith.constant 0 : index
    %75 = vector.load %arg4[%c13, %c0_48, %c0_49] : memref<16x32x32xbf16, #tpu.memory_space<vmem>>, vector<1x32x32xbf16>
    %76 = vector.shape_cast %75 : vector<1x32x32xbf16> to vector<32x32xbf16>
    %cst_50 = arith.constant dense<0.000000e+00> : vector<32x32xf32>
    %77 = tpu.matmul %74, %76, %cst_50 {dimension_numbers = #tpu.dot_dimension_numbers<[1], [0], [0], [1], [0, 0, 1, 1], [], []>} : vector<32x32xbf16>, vector<32x32xbf16>, vector<32x32xf32> -> vector<32x32xf32>
    %78 = arith.addf %73, %77 : vector<32x32xf32>
    %79 = vector.extract_strided_slice %9 {offsets = [448, 0], sizes = [32, 32], strides = [1, 1]} : vector<512x32xbf16> to vector<32x32xbf16>
    %c14 = arith.constant 14 : index
    %c0_51 = arith.constant 0 : index
    %c0_52 = arith.constant 0 : index
    %80 = vector.load %arg4[%c14, %c0_51, %c0_52] : memref<16x32x32xbf16, #tpu.memory_space<vmem>>, vector<1x32x32xbf16>
    %81 = vector.shape_cast %80 : vector<1x32x32xbf16> to vector<32x32xbf16>
    %cst_53 = arith.constant dense<0.000000e+00> : vector<32x32xf32>
    %82 = tpu.matmul %79, %81, %cst_53 {dimension_numbers = #tpu.dot_dimension_numbers<[1], [0], [0], [1], [0, 0, 1, 1], [], []>} : vector<32x32xbf16>, vector<32x32xbf16>, vector<32x32xf32> -> vector<32x32xf32>
    %83 = arith.addf %78, %82 : vector<32x32xf32>
    %84 = vector.extract_strided_slice %9 {offsets = [480, 0], sizes = [32, 32], strides = [1, 1]} : vector<512x32xbf16> to vector<32x32xbf16>
    %c15 = arith.constant 15 : index
    %c0_54 = arith.constant 0 : index
    %c0_55 = arith.constant 0 : index
    %85 = vector.load %arg4[%c15, %c0_54, %c0_55] : memref<16x32x32xbf16, #tpu.memory_space<vmem>>, vector<1x32x32xbf16>
    %86 = vector.shape_cast %85 : vector<1x32x32xbf16> to vector<32x32xbf16>
    %cst_56 = arith.constant dense<0.000000e+00> : vector<32x32xf32>
    %87 = tpu.matmul %84, %86, %cst_56 {dimension_numbers = #tpu.dot_dimension_numbers<[1], [0], [0], [1], [0, 0, 1, 1], [], []>} : vector<32x32xbf16>, vector<32x32xbf16>, vector<32x32xf32> -> vector<32x32xf32>
    %88 = arith.addf %83, %87 : vector<32x32xf32>
    %c0_57 = arith.constant 0 : index
    %c0_58 = arith.constant 0 : index
    %89 = vector.load %arg5[%c0_57, %c0_58] : memref<1x32xf32, #tpu.memory_space<vmem>>, vector<1x32xf32>
    %90 = vector.broadcast %89 : vector<1x32xf32> to vector<32x32xf32>
    %91 = arith.addf %88, %90 : vector<32x32xf32>
    %cst_59 = arith.constant 0.000000e+00 : f32
    %92 = vector.broadcast %cst_59 : f32 to vector<32x32xf32>
    %93 = arith.maximumf %91, %92 : vector<32x32xf32>
    %94 = arith.truncf %93 : vector<32x32xf32> to vector<32x32xbf16>
    %c0_60 = arith.constant 0 : index
    %c0_61 = arith.constant 0 : index
    %95 = vector.load %arg6[%c0_60, %c0_61] : memref<288x32xbf16, #tpu.memory_space<vmem>>, vector<288x32xbf16>
    %cst_62 = arith.constant dense<0.000000e+00> : vector<288x32xf32>
    %96 = tpu.matmul %95, %94, %cst_62 {dimension_numbers = #tpu.dot_dimension_numbers<[1], [0], [0], [1], [0, 0, 1, 1], [], []>} : vector<288x32xbf16>, vector<32x32xbf16>, vector<288x32xf32> -> vector<288x32xf32>
    %97 = arith.truncf %96 : vector<288x32xf32> to vector<288x32xbf16>
    %98 = vector.extract_strided_slice %97 {offsets = [0, 0], sizes = [32, 32], strides = [1, 1]} : vector<288x32xbf16> to vector<32x32xbf16>
    %c0_63 = arith.constant 0 : index
    %c0_64 = arith.constant 0 : index
    %c0_65 = arith.constant 0 : index
    %99 = vector.load %arg7[%c0_63, %c0_64, %c0_65] : memref<9x32x32xbf16, #tpu.memory_space<vmem>>, vector<1x32x32xbf16>
    %100 = vector.shape_cast %99 : vector<1x32x32xbf16> to vector<32x32xbf16>
    %cst_66 = arith.constant dense<0.000000e+00> : vector<32x32xf32>
    %101 = tpu.matmul %98, %100, %cst_66 {dimension_numbers = #tpu.dot_dimension_numbers<[1], [0], [0], [1], [0, 0, 1, 1], [], []>} : vector<32x32xbf16>, vector<32x32xbf16>, vector<32x32xf32> -> vector<32x32xf32>
    %102 = vector.extract_strided_slice %97 {offsets = [32, 0], sizes = [32, 32], strides = [1, 1]} : vector<288x32xbf16> to vector<32x32xbf16>
    %c1_67 = arith.constant 1 : index
    %c0_68 = arith.constant 0 : index
    %c0_69 = arith.constant 0 : index
    %103 = vector.load %arg7[%c1_67, %c0_68, %c0_69] : memref<9x32x32xbf16, #tpu.memory_space<vmem>>, vector<1x32x32xbf16>
    %104 = vector.shape_cast %103 : vector<1x32x32xbf16> to vector<32x32xbf16>
    %cst_70 = arith.constant dense<0.000000e+00> : vector<32x32xf32>
    %105 = tpu.matmul %102, %104, %cst_70 {dimension_numbers = #tpu.dot_dimension_numbers<[1], [0], [0], [1], [0, 0, 1, 1], [], []>} : vector<32x32xbf16>, vector<32x32xbf16>, vector<32x32xf32> -> vector<32x32xf32>
    %106 = arith.addf %101, %105 : vector<32x32xf32>
    %107 = vector.extract_strided_slice %97 {offsets = [64, 0], sizes = [32, 32], strides = [1, 1]} : vector<288x32xbf16> to vector<32x32xbf16>
    %c2_71 = arith.constant 2 : index
    %c0_72 = arith.constant 0 : index
    %c0_73 = arith.constant 0 : index
    %108 = vector.load %arg7[%c2_71, %c0_72, %c0_73] : memref<9x32x32xbf16, #tpu.memory_space<vmem>>, vector<1x32x32xbf16>
    %109 = vector.shape_cast %108 : vector<1x32x32xbf16> to vector<32x32xbf16>
    %cst_74 = arith.constant dense<0.000000e+00> : vector<32x32xf32>
    %110 = tpu.matmul %107, %109, %cst_74 {dimension_numbers = #tpu.dot_dimension_numbers<[1], [0], [0], [1], [0, 0, 1, 1], [], []>} : vector<32x32xbf16>, vector<32x32xbf16>, vector<32x32xf32> -> vector<32x32xf32>
    %111 = arith.addf %106, %110 : vector<32x32xf32>
    %112 = vector.extract_strided_slice %97 {offsets = [96, 0], sizes = [32, 32], strides = [1, 1]} : vector<288x32xbf16> to vector<32x32xbf16>
    %c3_75 = arith.constant 3 : index
    %c0_76 = arith.constant 0 : index
    %c0_77 = arith.constant 0 : index
    %113 = vector.load %arg7[%c3_75, %c0_76, %c0_77] : memref<9x32x32xbf16, #tpu.memory_space<vmem>>, vector<1x32x32xbf16>
    %114 = vector.shape_cast %113 : vector<1x32x32xbf16> to vector<32x32xbf16>
    %cst_78 = arith.constant dense<0.000000e+00> : vector<32x32xf32>
    %115 = tpu.matmul %112, %114, %cst_78 {dimension_numbers = #tpu.dot_dimension_numbers<[1], [0], [0], [1], [0, 0, 1, 1], [], []>} : vector<32x32xbf16>, vector<32x32xbf16>, vector<32x32xf32> -> vector<32x32xf32>
    %116 = arith.addf %111, %115 : vector<32x32xf32>
    %117 = vector.extract_strided_slice %97 {offsets = [128, 0], sizes = [32, 32], strides = [1, 1]} : vector<288x32xbf16> to vector<32x32xbf16>
    %c4_79 = arith.constant 4 : index
    %c0_80 = arith.constant 0 : index
    %c0_81 = arith.constant 0 : index
    %118 = vector.load %arg7[%c4_79, %c0_80, %c0_81] : memref<9x32x32xbf16, #tpu.memory_space<vmem>>, vector<1x32x32xbf16>
    %119 = vector.shape_cast %118 : vector<1x32x32xbf16> to vector<32x32xbf16>
    %cst_82 = arith.constant dense<0.000000e+00> : vector<32x32xf32>
    %120 = tpu.matmul %117, %119, %cst_82 {dimension_numbers = #tpu.dot_dimension_numbers<[1], [0], [0], [1], [0, 0, 1, 1], [], []>} : vector<32x32xbf16>, vector<32x32xbf16>, vector<32x32xf32> -> vector<32x32xf32>
    %121 = arith.addf %116, %120 : vector<32x32xf32>
    %122 = vector.extract_strided_slice %97 {offsets = [160, 0], sizes = [32, 32], strides = [1, 1]} : vector<288x32xbf16> to vector<32x32xbf16>
    %c5_83 = arith.constant 5 : index
    %c0_84 = arith.constant 0 : index
    %c0_85 = arith.constant 0 : index
    %123 = vector.load %arg7[%c5_83, %c0_84, %c0_85] : memref<9x32x32xbf16, #tpu.memory_space<vmem>>, vector<1x32x32xbf16>
    %124 = vector.shape_cast %123 : vector<1x32x32xbf16> to vector<32x32xbf16>
    %cst_86 = arith.constant dense<0.000000e+00> : vector<32x32xf32>
    %125 = tpu.matmul %122, %124, %cst_86 {dimension_numbers = #tpu.dot_dimension_numbers<[1], [0], [0], [1], [0, 0, 1, 1], [], []>} : vector<32x32xbf16>, vector<32x32xbf16>, vector<32x32xf32> -> vector<32x32xf32>
    %126 = arith.addf %121, %125 : vector<32x32xf32>
    %127 = vector.extract_strided_slice %97 {offsets = [192, 0], sizes = [32, 32], strides = [1, 1]} : vector<288x32xbf16> to vector<32x32xbf16>
    %c6_87 = arith.constant 6 : index
    %c0_88 = arith.constant 0 : index
    %c0_89 = arith.constant 0 : index
    %128 = vector.load %arg7[%c6_87, %c0_88, %c0_89] : memref<9x32x32xbf16, #tpu.memory_space<vmem>>, vector<1x32x32xbf16>
    %129 = vector.shape_cast %128 : vector<1x32x32xbf16> to vector<32x32xbf16>
    %cst_90 = arith.constant dense<0.000000e+00> : vector<32x32xf32>
    %130 = tpu.matmul %127, %129, %cst_90 {dimension_numbers = #tpu.dot_dimension_numbers<[1], [0], [0], [1], [0, 0, 1, 1], [], []>} : vector<32x32xbf16>, vector<32x32xbf16>, vector<32x32xf32> -> vector<32x32xf32>
    %131 = arith.addf %126, %130 : vector<32x32xf32>
    %132 = vector.extract_strided_slice %97 {offsets = [224, 0], sizes = [32, 32], strides = [1, 1]} : vector<288x32xbf16> to vector<32x32xbf16>
    %c7_91 = arith.constant 7 : index
    %c0_92 = arith.constant 0 : index
    %c0_93 = arith.constant 0 : index
    %133 = vector.load %arg7[%c7_91, %c0_92, %c0_93] : memref<9x32x32xbf16, #tpu.memory_space<vmem>>, vector<1x32x32xbf16>
    %134 = vector.shape_cast %133 : vector<1x32x32xbf16> to vector<32x32xbf16>
    %cst_94 = arith.constant dense<0.000000e+00> : vector<32x32xf32>
    %135 = tpu.matmul %132, %134, %cst_94 {dimension_numbers = #tpu.dot_dimension_numbers<[1], [0], [0], [1], [0, 0, 1, 1], [], []>} : vector<32x32xbf16>, vector<32x32xbf16>, vector<32x32xf32> -> vector<32x32xf32>
    %136 = arith.addf %131, %135 : vector<32x32xf32>
    %137 = vector.extract_strided_slice %97 {offsets = [256, 0], sizes = [32, 32], strides = [1, 1]} : vector<288x32xbf16> to vector<32x32xbf16>
    %c8_95 = arith.constant 8 : index
    %c0_96 = arith.constant 0 : index
    %c0_97 = arith.constant 0 : index
    %138 = vector.load %arg7[%c8_95, %c0_96, %c0_97] : memref<9x32x32xbf16, #tpu.memory_space<vmem>>, vector<1x32x32xbf16>
    %139 = vector.shape_cast %138 : vector<1x32x32xbf16> to vector<32x32xbf16>
    %cst_98 = arith.constant dense<0.000000e+00> : vector<32x32xf32>
    %140 = tpu.matmul %137, %139, %cst_98 {dimension_numbers = #tpu.dot_dimension_numbers<[1], [0], [0], [1], [0, 0, 1, 1], [], []>} : vector<32x32xbf16>, vector<32x32xbf16>, vector<32x32xf32> -> vector<32x32xf32>
    %141 = arith.addf %136, %140 : vector<32x32xf32>
    %c0_99 = arith.constant 0 : index
    %c0_100 = arith.constant 0 : index
    %142 = vector.load %arg8[%c0_99, %c0_100] : memref<1x32xf32, #tpu.memory_space<vmem>>, vector<1x32xf32>
    %143 = vector.broadcast %142 : vector<1x32xf32> to vector<32x32xf32>
    %144 = arith.addf %141, %143 : vector<32x32xf32>
    %145 = arith.addf %144, %93 : vector<32x32xf32>
    %cst_101 = arith.constant 0.000000e+00 : f32
    %146 = vector.broadcast %cst_101 : f32 to vector<32x32xf32>
    %147 = arith.maximumf %145, %146 : vector<32x32xf32>
    %148 = arith.truncf %147 : vector<32x32xf32> to vector<32x32xbf16>
    %c0_102 = arith.constant 0 : index
    %c0_103 = arith.constant 0 : index
    %149 = vector.load %arg9[%c0_102, %c0_103] : memref<32x32xbf16, #tpu.memory_space<vmem>>, vector<32x32xbf16>
    %cst_104 = arith.constant dense<0.000000e+00> : vector<32x32xf32>
    %150 = tpu.matmul %148, %149, %cst_104 {dimension_numbers = #tpu.dot_dimension_numbers<[1], [0], [0], [1], [0, 0, 1, 1], [], []>} : vector<32x32xbf16>, vector<32x32xbf16>, vector<32x32xf32> -> vector<32x32xf32>
    %c0_105 = arith.constant 0 : index
    %c0_106 = arith.constant 0 : index
    %151 = vector.load %arg10[%c0_105, %c0_106] : memref<1x32xf32, #tpu.memory_space<vmem>>, vector<1x32xf32>
    %152 = vector.broadcast %151 : vector<1x32xf32> to vector<32x32xf32>
    %153 = arith.addf %150, %152 : vector<32x32xf32>
    %154 = arith.addf %153, %147 : vector<32x32xf32>
    %155 = arith.truncf %154 : vector<32x32xf32> to vector<32x32xbf16>
    %c0_107 = arith.constant 0 : index
    %c0_108 = arith.constant 0 : index
    %156 = vector.load %arg11[%c0_107, %c0_108] : memref<32x128xbf16, #tpu.memory_space<vmem>>, vector<32x128xbf16>
    %cst_109 = arith.constant dense<0.000000e+00> : vector<32x128xf32>
    %157 = tpu.matmul %155, %156, %cst_109 {dimension_numbers = #tpu.dot_dimension_numbers<[1], [0], [0], [1], [0, 0, 1, 1], [], []>} : vector<32x32xbf16>, vector<32x128xbf16>, vector<32x128xf32> -> vector<32x128xf32>
    %c0_110 = arith.constant 0 : index
    %c0_111 = arith.constant 0 : index
    %158 = vector.load %arg12[%c0_110, %c0_111] : memref<1x128xf32, #tpu.memory_space<vmem>>, vector<1x128xf32>
    %159 = vector.broadcast %158 : vector<1x128xf32> to vector<32x128xf32>
    %160 = arith.addf %157, %159 : vector<32x128xf32>
    %c0_112 = arith.constant 0 : index
    %c0_113 = arith.constant 0 : index
    %161 = vector.load %arg13[%c0_112, %c0_113] : memref<32x128xf32, #tpu.memory_space<vmem>>, vector<32x128xf32>
    tpu.vector_store %arg13[%c0_112, %c0_113], %160 {strides = array<i32>} : memref<32x128xf32, #tpu.memory_space<vmem>>, vector<32x128xf32>,
    return
  }
}

</mosaic_0001>

<llo_original>
// kernel: encoder_forward.1
$region0: #{encoder_forward.1}
  #allocation0 [shape = 'u32[]', space=smem, size = 0x4, offset = 0x4, fixed_abs, tag = 'smem constant byte address 0x4 - core index']
  #allocation1 [shape = 'u32[144,128]{1,0:T(1,128)}', space=vmem, size = 0x12000, scoped, tag = 'internal scratch']
  %s0 = inlined_call_operand.vmem [shape: bf16[128,48], index: 0, kind: input, shape index: {}]
  %s1 = inlined_call_operand.vmem [shape: bf16[48,32], index: 1, kind: input, shape index: {}]
  %s2 = inlined_call_operand.vmem [shape: f32[1,32], index: 2, kind: input, shape index: {}]
  %s3 = inlined_call_operand.vmem [shape: bf16[512,128], index: 3, kind: input, shape index: {}]
  %s4 = inlined_call_operand.vmem [shape: bf16[16,32,32], index: 4, kind: input, shape index: {}]
  %s5 = inlined_call_operand.vmem [shape: f32[1,32], index: 5, kind: input, shape index: {}]
  %s6 = inlined_call_operand.vmem [shape: bf16[288,32], index: 6, kind: input, shape index: {}]
  %s7 = inlined_call_operand.vmem [shape: bf16[9,32,32], index: 7, kind: input, shape index: {}]
  %s8 = inlined_call_operand.vmem [shape: f32[1,32], index: 8, kind: input, shape index: {}]
  %s9 = inlined_call_operand.vmem [shape: bf16[32,32], index: 9, kind: input, shape index: {}]
  %s10 = inlined_call_operand.vmem [shape: f32[1,32], index: 10, kind: input, shape index: {}]
  %s11 = inlined_call_operand.vmem [shape: bf16[32,128], index: 11, kind: input, shape index: {}]
  %s12 = inlined_call_operand.vmem [shape: f32[1,128], index: 12, kind: input, shape index: {}]
  %s13 = inlined_call_operand.vmem [shape: f32[32,128], index: 13, kind: output, shape index: {}]
  %s14 = sld [smem:[#allocation0]]
  $region62: #{encoder_forward.1} parent=0
    _
  %s16 = ssub.s32 1, %s14
  %s17 = scalar_select 0, %s16, %s14
  // Predicated region
  $region2: #{encoder_forward.1} parent=0 // pred_check
    _
  $region3: #{encoder_forward.1} parent=0 // pred_check_branch
    %19 = sbr.rel (0) target = $region5
  $region4: #{encoder_forward.1} parent=0 // pred_region
    _
  $region5: #{encoder_forward.1} parent=0 // pred_fallthru
    _
  // Predicated region
  $region6: #{encoder_forward.1} parent=0 // pred_check
    _
  $region7: #{encoder_forward.1} parent=0 // pred_check_branch
    %21 = sbr.rel (0) target = $region9
  $region8: #{encoder_forward.1} parent=0 // pred_region
    _
  $region9: #{encoder_forward.1} parent=0 // pred_fallthru
    _
  // Predicated region
  $region10: #{encoder_forward.1} parent=0 // pred_check
    _
  $region11: #{encoder_forward.1} parent=0 // pred_check_branch
    %23 = sbr.rel (0) target = $region13
  $region12: #{encoder_forward.1} parent=0 // pred_region
    _
  $region13: #{encoder_forward.1} parent=0 // pred_fallthru
    _
  // Predicated region
  $region14: #{encoder_forward.1} parent=0 // pred_check
    _
  $region15: #{encoder_forward.1} parent=0 // pred_check_branch
    %25 = sbr.rel (0) target = $region17
  $region16: #{encoder_forward.1} parent=0 // pred_region
    _
  $region17: #{encoder_forward.1} parent=0 // pred_fallthru
    _
  // Predicated region
  $region18: #{encoder_forward.1} parent=0 // pred_check
    _
  $region19: #{encoder_forward.1} parent=0 // pred_check_branch
    %27 = sbr.rel (0) target = $region21
  $region20: #{encoder_forward.1} parent=0 // pred_region
    _
  $region21: #{encoder_forward.1} parent=0 // pred_fallthru
    _
  // Predicated region
  $region22: #{encoder_forward.1} parent=0 // pred_check
    _
  $region23: #{encoder_forward.1} parent=0 // pred_check_branch
    %29 = sbr.rel (0) target = $region25
  $region24: #{encoder_forward.1} parent=0 // pred_region
    _
  $region25: #{encoder_forward.1} parent=0 // pred_fallthru
    _
  // Predicated region
  $region26: #{encoder_forward.1} parent=0 // pred_check
    _
  $region27: #{encoder_forward.1} parent=0 // pred_check_branch
    %31 = sbr.rel (0) target = $region29
  $region28: #{encoder_forward.1} parent=0 // pred_region
    _
  $region29: #{encoder_forward.1} parent=0 // pred_fallthru
    _
  // Predicated region
  $region30: #{encoder_forward.1} parent=0 // pred_check
    _
  $region31: #{encoder_forward.1} parent=0 // pred_check_branch
    %33 = sbr.rel (0) target = $region33
  $region32: #{encoder_forward.1} parent=0 // pred_region
    _
  $region33: #{encoder_forward.1} parent=0 // pred_fallthru
    _
  // Predicated region
  $region34: #{encoder_forward.1} parent=0 // pred_check
    _
  $region35: #{encoder_forward.1} parent=0 // pred_check_branch
    %35 = sbr.rel (0) target = $region37
  $region36: #{encoder_forward.1} parent=0 // pred_region
    _
  $region37: #{encoder_forward.1} parent=0 // pred_fallthru
    _
  // Predicated region
  $region38: #{encoder_forward.1} parent=0 // pred_check
    _
  $region39: #{encoder_forward.1} parent=0 // pred_check_branch
    %37 = sbr.rel (0) target = $region41
  $region40: #{encoder_forward.1} parent=0 // pred_region
    _
  $region41: #{encoder_forward.1} parent=0 // pred_fallthru
    _
  // Predicated region
  $region42: #{encoder_forward.1} parent=0 // pred_check
    _
  $region43: #{encoder_forward.1} parent=0 // pred_check_branch
    %39 = sbr.rel (0) target = $region45
  $region44: #{encoder_forward.1} parent=0 // pred_region
    _
  $region45: #{encoder_forward.1} parent=0 // pred_fallthru
    _
  // Predicated region
  $region46: #{encoder_forward.1} parent=0 // pred_check
    _
  $region47: #{encoder_forward.1} parent=0 // pred_check_branch
    %41 = sbr.rel (0) target = $region49
  $region48: #{encoder_forward.1} parent=0 // pred_region
    _
  $region49: #{encoder_forward.1} parent=0 // pred_fallthru
    _
  // Predicated region
  $region50: #{encoder_forward.1} parent=0 // pred_check
    _
  $region51: #{encoder_forward.1} parent=0 // pred_check_branch
    %43 = sbr.rel (0) target = $region53
  $region52: #{encoder_forward.1} parent=0 // pred_region
    _
  $region53: #{encoder_forward.1} parent=0 // pred_fallthru
    _
  %v45 = vld [vmem:[%s0] sm:$0xf]
  %v46 = vld [vmem:[%s0 + $0x4] sm:$0xf]
  %v47 = vld [vmem:[%s0 + $0x8] sm:$0xf]
  %v48 = vld [vmem:[%s0 + $0xc] sm:$0xf]
  %v49 = vld [vmem:[%s0 + $0x10] sm:$0xf]
  %v50 = vld [vmem:[%s0 + $0x14] sm:$0xf]
  %v51 = vld [vmem:[%s0 + $0x18] sm:$0xf]
  %v52 = vld [vmem:[%s0 + $0x1c] sm:$0xf]
  %v53 = vld [vmem:[%s0 + $0x20] sm:$0xf]
  %v54 = vld [vmem:[%s0 + $0x24] sm:$0xf]
  %v55 = vld [vmem:[%s0 + $0x28] sm:$0xf]
  %v56 = vld [vmem:[%s0 + $0x2c] sm:$0xf]
  %v57 = vld [vmem:[%s0 + $0x30] sm:$0xf]
  %v58 = vld [vmem:[%s0 + $0x34] sm:$0xf]
  %v59 = vld [vmem:[%s0 + $0x38] sm:$0xf]
  %v60 = vld [vmem:[%s0 + $0x3c] sm:$0xf]
  %v61 = vld [vmem:[%s1] sm:$0xf]
  %v62 = vld [vmem:[%s1 + $0x4] sm:$0xf]
  %v63 = vld [vmem:[%s1 + $0x8] sm:$0xf]
  %v64 = vld [vmem:[%s1 + $0xc] sm:$0xf]
  %v65 = vld [vmem:[%s1 + $0x10] sm:$0xf]
  %v66 = vld [vmem:[%s1 + $0x14] sm:$0xf]
  %v67 = vld [vmem:[%s2] sm:$0x1]
  %v69 = vlaneseq
  %v70 = vshrl.u32 %v69, 7
  %v71 = vsub.s32 0, %v70
  %v72 = vrot.slane %v67, %v71
  %v90 = vunpack.c.l.b16 %v45
  %v91 = vunpack.c.l.b16 %v46
  %v92 = vunpack.c.l.b16 %v47
  %v93 = vunpack.c.l.b16 %v48
  %v94 = vunpack.c.l.b16 %v49
  %v95 = vunpack.c.l.b16 %v50
  %v96 = vunpack.c.l.b16 %v51
  %v97 = vunpack.c.l.b16 %v52
  %v98 = vunpack.c.l.b16 %v53
  %v99 = vunpack.c.l.b16 %v54
  %v100 = vunpack.c.l.b16 %v55
  %v101 = vunpack.c.l.b16 %v56
  %v102 = vunpack.c.l.b16 %v57
  %v103 = vunpack.c.l.b16 %v58
  %v104 = vunpack.c.l.b16 %v59
  %v105 = vunpack.c.l.b16 %v60
  %v106 = vpack.c.b16 %v91, %v90
  %v107 = vpack.c.b16 %v93, %v92
  %v108 = vpack.c.b16 %v95, %v94
  %v109 = vpack.c.b16 %v97, %v96
  %v110 = vpack.c.b16 %v99, %v98
  %v111 = vpack.c.b16 %v101, %v100
  %v112 = vpack.c.b16 %v103, %v102
  %v113 = vpack.c.b16 %v105, %v104
  %v120 = vunpack.c.l.b16 %v61
  %v121 = vunpack.c.l.b16 %v62
  %v122 = vunpack.c.l.b16 %v63
  %v123 = vunpack.c.l.b16 %v64
  %v124 = vunpack.c.l.b16 %v65
  %v125 = vunpack.c.l.b16 %v66
  %v126 = vpack.c.b16 %v121, %v120
  %v127 = vpack.c.b16 %v123, %v122
  %v128 = vpack.c.b16 %v125, %v124
  %vm132 = vcmask 392192
  %v134 = vsel %vm132, %v106, 0
  %v137 = vsel %vm132, %v107, 0
  %v140 = vsel %vm132, %v108, 0
  %v143 = vsel %vm132, %v109, 0
  %v146 = vsel %vm132, %v110, 0
  %v149 = vsel %vm132, %v111, 0
  %v152 = vsel %vm132, %v112, 0
  %v155 = vsel %vm132, %v113, 0
  %157 = vmatprep.subr.bf16.mxu0 0
  %158 = vmatpush1.bf16.msra.mxu0 %v126
  %159 = vmatprep.subr.bf16.mxu0 0
  %160 = vmatpush1.bf16.msra.mxu0 %v127
  %161 = vmatprep.subr.bf16.mxu0 0
  %162 = vmatpush1.bf16.msra.mxu0 %v128
  %163 = vmatprep.subr.bf16.mxu0 0
  %164 = vmatpush1.bf16.msra.mxu0 0
  %165 = vmatprep.subr.bf16.mxu0 0
  %166 = vmatpush1.bf16.msra.mxu0 0
  %167 = vmatprep.subr.bf16.mxu0 0
  %168 = vmatpush1.bf16.msra.mxu0 0
  %169 = vmatprep.subr.bf16.mxu0 0
  %170 = vmatpush1.bf16.msra.mxu0 0
  %171 = vmatprep.subr.bf16.mxu0 0
  %172 = vmatpush1.bf16.msra.mxu0 0
  %173 = vmatprep.subr.bf16.mxu0 0
  %174 = vmatpush1.bf16.msra.mxu0 0
  %175 = vmatprep.subr.bf16.mxu0 0
  %176 = vmatpush1.bf16.msra.mxu0 0
  %177 = vmatprep.subr.bf16.mxu0 0
  %178 = vmatpush1.bf16.msra.mxu0 0
  %179 = vmatprep.subr.bf16.mxu0 0
  %180 = vmatpush1.bf16.msra.mxu0 0
  %181 = vmatprep.subr.bf16.mxu0 0
  %182 = vmatpush1.bf16.msra.mxu0 0
  %183 = vmatprep.subr.bf16.mxu0 0
  %184 = vmatpush1.bf16.msra.mxu0 0
  %185 = vmatprep.subr.bf16.mxu0 0
  %186 = vmatpush1.bf16.msra.mxu0 0
  %187 = vmatprep.subr.bf16.mxu0 0
  %188 = vmatpush1.bf16.msra.mxu0 0
  %189 = vmatprep.mubr.bf16.mxu0 0
  %190 = vmatmul.mubr.bf16.gmra.mrb[0].mxu0 %v134
  %v191 = vpop.f32.mrb[0].mxu0
  %v192 = vadd.f32 %v72, %v191
  %v193 = vpop.f32.mrb[0].mxu0
  %v194 = vpop.f32.mrb[0].mxu0
  %v195 = vadd.f32 %v72, %v194
  %v196 = vpop.f32.mrb[0].mxu0
  %197 = vmatprep.mubr.bf16.mxu0 0
  %198 = vmatmul.mubr.bf16.gmra.mrb[0].mxu0 %v137
  %v199 = vpop.f32.mrb[0].mxu0
  %v200 = vadd.f32 %v72, %v199
  %v201 = vpop.f32.mrb[0].mxu0
  %v202 = vpop.f32.mrb[0].mxu0
  %v203 = vadd.f32 %v72, %v202
  %v204 = vpop.f32.mrb[0].mxu0
  %205 = vmatprep.mubr.bf16.mxu0 0
  %206 = vmatmul.mubr.bf16.gmra.mrb[0].mxu0 %v140
  %v207 = vpop.f32.mrb[0].mxu0
  %v208 = vadd.f32 %v72, %v207
  %v209 = vpop.f32.mrb[0].mxu0
  %v210 = vpop.f32.mrb[0].mxu0
  %v211 = vadd.f32 %v72, %v210
  %v212 = vpop.f32.mrb[0].mxu0
  %213 = vmatprep.mubr.bf16.mxu0 0
  %214 = vmatmul.mubr.bf16.gmra.mrb[0].mxu0 %v143
  %v215 = vpop.f32.mrb[0].mxu0
  %v216 = vadd.f32 %v72, %v215
  %v217 = vpop.f32.mrb[0].mxu0
  %v218 = vpop.f32.mrb[0].mxu0
  %v219 = vadd.f32 %v72, %v218
  %v220 = vpop.f32.mrb[0].mxu0
  %221 = vmatprep.mubr.bf16.mxu0 0
  %222 = vmatmul.mubr.bf16.gmra.mrb[0].mxu0 %v146
  %v223 = vpop.f32.mrb[0].mxu0
  %v224 = vadd.f32 %v72, %v223
  %v225 = vpop.f32.mrb[0].mxu0
  %v226 = vpop.f32.mrb[0].mxu0
  %v227 = vadd.f32 %v72, %v226
  %v228 = vpop.f32.mrb[0].mxu0
  %229 = vmatprep.mubr.bf16.mxu0 0
  %230 = vmatmul.mubr.bf16.gmra.mrb[0].mxu0 %v149
  %v231 = vpop.f32.mrb[0].mxu0
  %v232 = vadd.f32 %v72, %v231
  %v233 = vpop.f32.mrb[0].mxu0
  %v234 = vpop.f32.mrb[0].mxu0
  %v235 = vadd.f32 %v72, %v234
  %v236 = vpop.f32.mrb[0].mxu0
  %237 = vmatprep.mubr.bf16.mxu0 0
  %238 = vmatmul.mubr.bf16.gmra.mrb[0].mxu0 %v152
  %v239 = vpop.f32.mrb[0].mxu0
  %v240 = vadd.f32 %v72, %v239
  %v241 = vpop.f32.mrb[0].mxu0
  %v242 = vpop.f32.mrb[0].mxu0
  %v243 = vadd.f32 %v72, %v242
  %v244 = vpop.f32.mrb[0].mxu0
  %245 = vmatprep.mubr.bf16.mxu0 0
  %246 = vmatmul.mubr.bf16.gmra.mrb[0].mxu0 %v155
  %v247 = vpop.f32.mrb[0].mxu0
  %v248 = vadd.f32 %v72, %v247
  %v249 = vpop.f32.mrb[0].mxu0
  %v250 = vpop.f32.mrb[0].mxu0
  %v251 = vadd.f32 %v72, %v250
  %v252 = vpop.f32.mrb[0].mxu0
  %253 = vdwg.mxu0
  %v254 = vpack.c.bf16 %v195, %v192
  %v255 = vpack.c.bf16 %v203, %v200
  %v256 = vpack.c.bf16 %v211, %v208
  %v257 = vpack.c.bf16 %v219, %v216
  %v258 = vpack.c.bf16 %v227, %v224
  %v259 = vpack.c.bf16 %v235, %v232
  %v260 = vpack.c.bf16 %v243, %v240
  %v261 = vpack.c.bf16 %v251, %v248
  %v262 = vld [vmem:[%s3] sm:$0xf]
  %v263 = vld [vmem:[%s3 + $0x4] sm:$0xf]
  %v264 = vld [vmem:[%s3 + $0x8] sm:$0xf]
  %v265 = vld [vmem:[%s3 + $0xc] sm:$0xf]
  %v266 = vld [vmem:[%s3 + $0x10] sm:$0xf]
  %v267 = vld [vmem:[%s3 + $0x14] sm:$0xf]
  %v268 = vld [vmem:[%s3 + $0x18] sm:$0xf]
  %v269 = vld [vmem:[%s3 + $0x1c] sm:$0xf]
  %v270 = vld [vmem:[%s3 + $0x20] sm:$0xf]
  %v271 = vld [vmem:[%s3 + $0x24] sm:$0xf]
  %v272 = vld [vmem:[%s3 + $0x28] sm:$0xf]
  %v273 = vld [vmem:[%s3 + $0x2c] sm:$0xf]
  %v274 = vld [vmem:[%s3 + $0x30] sm:$0xf]
  %v275 = vld [vmem:[%s3 + $0x34] sm:$0xf]
  %v276 = vld [vmem:[%s3 + $0x38] sm:$0xf]
  %v277 = vld [vmem:[%s3 + $0x3c] sm:$0xf]
  %v278 = vld [vmem:[%s3 + $0x40] sm:$0xf]
  %v279 = vld [vmem:[%s3 + $0x44] sm:$0xf]
  %v280 = vld [vmem:[%s3 + $0x48] sm:$0xf]
  %v281 = vld [vmem:[%s3 + $0x4c] sm:$0xf]
  %v282 = vld [vmem:[%s3 + $0x50] sm:$0xf]
  %v283 = vld [vmem:[%s3 + $0x54] sm:$0xf]
  %v284 = vld [vmem:[%s3 + $0x58] sm:$0xf]
  %v285 = vld [vmem:[%s3 + $0x5c] sm:$0xf]
  %v286 = vld [vmem:[%s3 + $0x60] sm:$0xf]
  %v287 = vld [vmem:[%s3 + $0x64] sm:$0xf]
  %v288 = vld [vmem:[%s3 + $0x68] sm:$0xf]
  %v289 = vld [vmem:[%s3 + $0x6c] sm:$0xf]
  %v290 = vld [vmem:[%s3 + $0x70] sm:$0xf]
  %v291 = vld [vmem:[%s3 + $0x74] sm:$0xf]
  %v292 = vld [vmem:[%s3 + $0x78] sm:$0xf]
  %v293 = vld [vmem:[%s3 + $0x7c] sm:$0xf]
  %v294 = vld [vmem:[%s3 + $0x80] sm:$0xf]
  %v295 = vld [vmem:[%s3 + $0x84] sm:$0xf]
  %v296 = vld [vmem:[%s3 + $0x88] sm:$0xf]
  %v297 = vld [vmem:[%s3 + $0x8c] sm:$0xf]
  %v298 = vld [vmem:[%s3 + $0x90] sm:$0xf]
  %v299 = vld [vmem:[%s3 + $0x94] sm:$0xf]
  %v300 = vld [vmem:[%s3 + $0x98] sm:$0xf]
  %v301 = vld [vmem:[%s3 + $0x9c] sm:$0xf]
  %v302 = vld [vmem:[%s3 + $0xa0] sm:$0xf]
  %v303 = vld [vmem:[%s3 + $0xa4] sm:$0xf]
  %v304 = vld [vmem:[%s3 + $0xa8] sm:$0xf]
  %v305 = vld [vmem:[%s3 + $0xac] sm:$0xf]
  %v306 = vld [vmem:[%s3 + $0xb0] sm:$0xf]
  %v307 = vld [vmem:[%s3 + $0xb4] sm:$0xf]
  %v308 = vld [vmem:[%s3 + $0xb8] sm:$0xf]
  %v309 = vld [vmem:[%s3 + $0xbc] sm:$0xf]
  %v310 = vld [vmem:[%s3 + $0xc0] sm:$0xf]
  %v311 = vld [vmem:[%s3 + $0xc4] sm:$0xf]
  %v312 = vld [vmem:[%s3 + $0xc8] sm:$0xf]
  %v313 = vld [vmem:[%s3 + $0xcc] sm:$0xf]
  %v314 = vld [vmem:[%s3 + $0xd0] sm:$0xf]
  %v315 = vld [vmem:[%s3 + $0xd4] sm:$0xf]
  %v316 = vld [vmem:[%s3 + $0xd8] sm:$0xf]
  %v317 = vld [vmem:[%s3 + $0xdc] sm:$0xf]
  %v318 = vld [vmem:[%s3 + $0xe0] sm:$0xf]
  %v319 = vld [vmem:[%s3 + $0xe4] sm:$0xf]
  %v320 = vld [vmem:[%s3 + $0xe8] sm:$0xf]
  %v321 = vld [vmem:[%s3 + $0xec] sm:$0xf]
  %v322 = vld [vmem:[%s3 + $0xf0] sm:$0xf]
  %v323 = vld [vmem:[%s3 + $0xf4] sm:$0xf]
  %v324 = vld [vmem:[%s3 + $0xf8] sm:$0xf]
  %v325 = vld [vmem:[%s3 + $0xfc] sm:$0xf]
  %v390 = vunpack.c.l.b16 %v262
  %v391 = vunpack.c.l.b16 %v263
  %v392 = vunpack.c.l.b16 %v264
  %v393 = vunpack.c.l.b16 %v265
  %v394 = vunpack.c.l.b16 %v266
  %v395 = vunpack.c.l.b16 %v267
  %v396 = vunpack.c.l.b16 %v268
  %v397 = vunpack.c.l.b16 %v269
  %v398 = vunpack.c.l.b16 %v270
  %v399 = vunpack.c.l.b16 %v271
  %v400 = vunpack.c.l.b16 %v272
  %v401 = vunpack.c.l.b16 %v273
  %v402 = vunpack.c.l.b16 %v274
  %v403 = vunpack.c.l.b16 %v275
  %v404 = vunpack.c.l.b16 %v276
  %v405 = vunpack.c.l.b16 %v277
  %v406 = vunpack.c.l.b16 %v278
  %v407 = vunpack.c.l.b16 %v279
  %v408 = vunpack.c.l.b16 %v280
  %v409 = vunpack.c.l.b16 %v281
  %v410 = vunpack.c.l.b16 %v282
  %v411 = vunpack.c.l.b16 %v283
  %v412 = vunpack.c.l.b16 %v284
  %v413 = vunpack.c.l.b16 %v285
  %v414 = vunpack.c.l.b16 %v286
  %v415 = vunpack.c.l.b16 %v287
  %v416 = vunpack.c.l.b16 %v288
  %v417 = vunpack.c.l.b16 %v289
  %v418 = vunpack.c.l.b16 %v290
  %v419 = vunpack.c.l.b16 %v291
  %v420 = vunpack.c.l.b16 %v292
  %v421 = vunpack.c.l.b16 %v293
  %v422 = vunpack.c.l.b16 %v294
  %v423 = vunpack.c.l.b16 %v295
  %v424 = vunpack.c.l.b16 %v296
  %v425 = vunpack.c.l.b16 %v297
  %v426 = vunpack.c.l.b16 %v298
  %v427 = vunpack.c.l.b16 %v299
  %v428 = vunpack.c.l.b16 %v300
  %v429 = vunpack.c.l.b16 %v301
  %v430 = vunpack.c.l.b16 %v302
  %v431 = vunpack.c.l.b16 %v303
  %v432 = vunpack.c.l.b16 %v304
  %v433 = vunpack.c.l.b16 %v305
  %v434 = vunpack.c.l.b16 %v306
  %v435 = vunpack.c.l.b16 %v307
  %v436 = vunpack.c.l.b16 %v308
  %v437 = vunpack.c.l.b16 %v309
  %v438 = vunpack.c.l.b16 %v310
  %v439 = vunpack.c.l.b16 %v311
  %v440 = vunpack.c.l.b16 %v312
  %v441 = vunpack.c.l.b16 %v313
  %v442 = vunpack.c.l.b16 %v314
  %v443 = vunpack.c.l.b16 %v315
  %v444 = vunpack.c.l.b16 %v316
  %v445 = vunpack.c.l.b16 %v317
  %v446 = vunpack.c.l.b16 %v318
  %v447 = vunpack.c.l.b16 %v319
  %v448 = vunpack.c.l.b16 %v320
  %v449 = vunpack.c.l.b16 %v321
  %v450 = vunpack.c.l.b16 %v322
  %v451 = vunpack.c.l.b16 %v323
  %v452 = vunpack.c.l.b16 %v324
  %v453 = vunpack.c.l.b16 %v325
  %v454 = vpack.c.b16 %v391, %v390
  %v455 = vpack.c.b16 %v393, %v392
  %v456 = vpack.c.b16 %v395, %v394
  %v457 = vpack.c.b16 %v397, %v396
  %v458 = vpack.c.b16 %v399, %v398
  %v459 = vpack.c.b16 %v401, %v400
  %v460 = vpack.c.b16 %v403, %v402
  %v461 = vpack.c.b16 %v405, %v404
  %v462 = vpack.c.b16 %v407, %v406
  %v463 = vpack.c.b16 %v409, %v408
  %v464 = vpack.c.b16 %v411, %v410
  %v465 = vpack.c.b16 %v413, %v412
  %v466 = vpack.c.b16 %v415, %v414
  %v467 = vpack.c.b16 %v417, %v416
  %v468 = vpack.c.b16 %v419, %v418
  %v469 = vpack.c.b16 %v421, %v420
  %v470 = vpack.c.b16 %v423, %v422
  %v471 = vpack.c.b16 %v425, %v424
  %v472 = vpack.c.b16 %v427, %v426
  %v473 = vpack.c.b16 %v429, %v428
  %v474 = vpack.c.b16 %v431, %v430
  %v475 = vpack.c.b16 %v433, %v432
  %v476 = vpack.c.b16 %v435, %v434
  %v477 = vpack.c.b16 %v437, %v436
  %v478 = vpack.c.b16 %v439, %v438
  %v479 = vpack.c.b16 %v441, %v440
  %v480 = vpack.c.b16 %v443, %v442
  %v481 = vpack.c.b16 %v445, %v444
  %v482 = vpack.c.b16 %v447, %v446
  %v483 = vpack.c.b16 %v449, %v448
  %v484 = vpack.c.b16 %v451, %v450
  %v485 = vpack.c.b16 %v453, %v452
  %518 = vmatprep.subr.bf16.mxu0 0
  %519 = vmatpush1.bf16.msra.mxu0 %v254
  %520 = vmatprep.subr.bf16.mxu0 0
  %521 = vmatpush1.bf16.msra.mxu0 %v255
  %522 = vmatprep.subr.bf16.mxu0 0
  %523 = vmatpush1.bf16.msra.mxu0 %v256
  %524 = vmatprep.subr.bf16.mxu0 0
  %525 = vmatpush1.bf16.msra.mxu0 %v257
  %526 = vmatprep.subr.bf16.mxu0 0
  %527 = vmatpush1.bf16.msra.mxu0 %v258
  %528 = vmatprep.subr.bf16.mxu0 0
  %529 = vmatpush1.bf16.msra.mxu0 %v259
  %530 = vmatprep.subr.bf16.mxu0 0
  %531 = vmatpush1.bf16.msra.mxu0 %v260
  %532 = vmatprep.subr.bf16.mxu0 0
  %533 = vmatpush1.bf16.msra.mxu0 %v261
  %534 = vmatprep.subr.bf16.mxu0 0
  %535 = vmatpush1.bf16.msra.mxu0 0
  %536 = vmatprep.subr.bf16.mxu0 0
  %537 = vmatpush1.bf16.msra.mxu0 0
  %538 = vmatprep.subr.bf16.mxu0 0
  %539 = vmatpush1.bf16.msra.mxu0 0
  %540 = vmatprep.subr.bf16.mxu0 0
  %541 = vmatpush1.bf16.msra.mxu0 0
  %542 = vmatprep.subr.bf16.mxu0 0
  %543 = vmatpush1.bf16.msra.mxu0 0
  %544 = vmatprep.subr.bf16.mxu0 0
  %545 = vmatpush1.bf16.msra.mxu0 0
  %546 = vmatprep.subr.bf16.mxu0 0
  %547 = vmatpush1.bf16.msra.mxu0 0
  %548 = vmatprep.subr.bf16.mxu0 0
  %549 = vmatpush1.bf16.msra.mxu0 0
  %550 = vmatprep.mubr.bf16.mxu0 0
  %551 = vmatmul.mubr.bf16.gmra.mrb[0].mxu0 %v454
  %v552 = vpop.f32.mrb[0].mxu0
  %v553 = vadd.f32 0.0, %v552
  %v554 = vpop.f32.mrb[0].mxu0
  %v555 = vpop.f32.mrb[0].mxu0
  %v556 = vadd.f32 0.0, %v555
  %v557 = vpop.f32.mrb[0].mxu0
  %558 = vmatprep.mubr.bf16.mxu0 0
  %559 = vmatmul.mubr.bf16.gmra.mrb[0].mxu0 %v455
  %v560 = vpop.f32.mrb[0].mxu0
  %v561 = vadd.f32 0.0, %v560
  %v562 = vpop.f32.mrb[0].mxu0
  %v563 = vpop.f32.mrb[0].mxu0
  %v564 = vadd.f32 0.0, %v563
  %v565 = vpop.f32.mrb[0].mxu0
  %566 = vmatprep.mubr.bf16.mxu0 0
  %567 = vmatmul.mubr.bf16.gmra.mrb[0].mxu0 %v456
  %v568 = vpop.f32.mrb[0].mxu0
  %v569 = vadd.f32 0.0, %v568
  %v570 = vpop.f32.mrb[0].mxu0
  %v571 = vpop.f32.mrb[0].mxu0
  %v572 = vadd.f32 0.0, %v571
  %v573 = vpop.f32.mrb[0].mxu0
  %574 = vmatprep.mubr.bf16.mxu0 0
  %575 = vmatmul.mubr.bf16.gmra.mrb[0].mxu0 %v457
  %v576 = vpop.f32.mrb[0].mxu0
  %v577 = vadd.f32 0.0, %v576
  %v578 = vpop.f32.mrb[0].mxu0
  %v579 = vpop.f32.mrb[0].mxu0
  %v580 = vadd.f32 0.0, %v579
  %v581 = vpop.f32.mrb[0].mxu0
  %582 = vmatprep.mubr.bf16.mxu0 0
  %583 = vmatmul.mubr.bf16.gmra.mrb[0].mxu0 %v458
  %v584 = vpop.f32.mrb[0].mxu0
  %v585 = vadd.f32 0.0, %v584
  %v586 = vpop.f32.mrb[0].mxu0
  %v587 = vpop.f32.mrb[0].mxu0
  %v588 = vadd.f32 0.0, %v587
  %v589 = vpop.f32.mrb[0].mxu0
  %590 = vmatprep.mubr.bf16.mxu0 0
  %591 = vmatmul.mubr.bf16.gmra.mrb[0].mxu0 %v459
  %v592 = vpop.f32.mrb[0].mxu0
  %v593 = vadd.f32 0.0, %v592
  %v594 = vpop.f32.mrb[0].mxu0
  %v595 = vpop.f32.mrb[0].mxu0
  %v596 = vadd.f32 0.0, %v595
  %v597 = vpop.f32.mrb[0].mxu0
  %598 = vmatprep.mubr.bf16.mxu0 0
  %599 = vmatmul.mubr.bf16.gmra.mrb[0].mxu0 %v460
  %v600 = vpop.f32.mrb[0].mxu0
  %v601 = vadd.f32 0.0, %v600
  %v602 = vpop.f32.mrb[0].mxu0
  %v603 = vpop.f32.mrb[0].mxu0
  %v604 = vadd.f32 0.0, %v603
  %v605 = vpop.f32.mrb[0].mxu0
  %606 = vmatprep.mubr.bf16.mxu0 0
  %607 = vmatmul.mubr.bf16.gmra.mrb[0].mxu0 %v461
  %v608 = vpop.f32.mrb[0].mxu0
  %v609 = vadd.f32 0.0, %v608
  %v610 = vpop.f32.mrb[0].mxu0
  %v611 = vpop.f32.mrb[0].mxu0
  %v612 = vadd.f32 0.0, %v611
  %v613 = vpop.f32.mrb[0].mxu0
  %614 = vmatprep.mubr.bf16.mxu0 0
  %615 = vmatmul.mubr.bf16.gmra.mrb[0].mxu0 %v462
  %v616 = vpop.f32.mrb[0].mxu0
  %v617 = vadd.f32 0.0, %v616
  %v618 = vpop.f32.mrb[0].mxu0
  %v619 = vpop.f32.mrb[0].mxu0
  %v620 = vadd.f32 0.0, %v619
  %v621 = vpop.f32.mrb[0].mxu0
  %622 = vmatprep.mubr.bf16.mxu0 0
  %623 = vmatmul.mubr.bf16.gmra.mrb[0].mxu0 %v463
  %v624 = vpop.f32.mrb[0].mxu0
  %v625 = vadd.f32 0.0, %v624
  %v626 = vpop.f32.mrb[0].mxu0
  %v627 = vpop.f32.mrb[0].mxu0
  %v628 = vadd.f32 0.0, %v627
  %v629 = vpop.f32.mrb[0].mxu0
  %630 = vmatprep.mubr.bf16.mxu0 0
  %631 = vmatmul.mubr.bf16.gmra.mrb[0].mxu0 %v464
  %v632 = vpop.f32.mrb[0].mxu0
  %v633 = vadd.f32 0.0, %v632
  %v634 = vpop.f32.mrb[0].mxu0
  %v635 = vpop.f32.mrb[0].mxu0
  %v636 = vadd.f32 0.0, %v635
  %v637 = vpop.f32.mrb[0].mxu0
  %638 = vmatprep.mubr.bf16.mxu0 0
  %639 = vmatmul.mubr.bf16.gmra.mrb[0].mxu0 %v465
  %v640 = vpop.f32.mrb[0].mxu0
  %v641 = vadd.f32 0.0, %v640
  %v642 = vpop.f32.mrb[0].mxu0
  %v643 = vpop.f32.mrb[0].mxu0
  %v644 = vadd.f32 0.0, %v643
  %v645 = vpop.f32.mrb[0].mxu0
  %646 = vmatprep.mubr.bf16.mxu0 0
  %647 = vmatmul.mubr.bf16.gmra.mrb[0].mxu0 %v466
  %v648 = vpop.f32.mrb[0].mxu0
  %v649 = vadd.f32 0.0, %v648
  %v650 = vpop.f32.mrb[0].mxu0
  %v651 = vpop.f32.mrb[0].mxu0
  %v652 = vadd.f32 0.0, %v651
  %v653 = vpop.f32.mrb[0].mxu0
  %654 = vmatprep.mubr.bf16.mxu0 0
  %655 = vmatmul.mubr.bf16.gmra.mrb[0].mxu0 %v467
  %v656 = vpop.f32.mrb[0].mxu0
  %v657 = vadd.f32 0.0, %v656
  %v658 = vpop.f32.mrb[0].mxu0
  %v659 = vpop.f32.mrb[0].mxu0
  %v660 = vadd.f32 0.0, %v659
  %v661 = vpop.f32.mrb[0].mxu0
  %662 = vmatprep.mubr.bf16.mxu0 0
  %663 = vmatmul.mubr.bf16.gmra.mrb[0].mxu0 %v468
  %v664 = vpop.f32.mrb[0].mxu0
  %v665 = vadd.f32 0.0, %v664
  %v666 = vpop.f32.mrb[0].mxu0
  %v667 = vpop.f32.mrb[0].mxu0
  %v668 = vadd.f32 0.0, %v667
  %v669 = vpop.f32.mrb[0].mxu0
  %670 = vmatprep.mubr.bf16.mxu0 0
  %671 = vmatmul.mubr.bf16.gmra.mrb[0].mxu0 %v469
  %v672 = vpop.f32.mrb[0].mxu0
  %v673 = vadd.f32 0.0, %v672
  %v674 = vpop.f32.mrb[0].mxu0
  %v675 = vpop.f32.mrb[0].mxu0
  %v676 = vadd.f32 0.0, %v675
  %v677 = vpop.f32.mrb[0].mxu0
  %678 = vmatprep.mubr.bf16.mxu0 0
  %679 = vmatmul.mubr.bf16.gmra.mrb[0].mxu0 %v470
  %v680 = vpop.f32.mrb[0].mxu0
  %v681 = vadd.f32 0.0, %v680
  %v682 = vpop.f32.mrb[0].mxu0
  %v683 = vpop.f32.mrb[0].mxu0
  %v684 = vadd.f32 0.0, %v683
  %v685 = vpop.f32.mrb[0].mxu0
  %686 = vmatprep.mubr.bf16.mxu0 0
  %687 = vmatmul.mubr.bf16.gmra.mrb[0].mxu0 %v471
  %v688 = vpop.f32.mrb[0].mxu0
  %v689 = vadd.f32 0.0, %v688
  %v690 = vpop.f32.mrb[0].mxu0
  %v691 = vpop.f32.mrb[0].mxu0
  %v692 = vadd.f32 0.0, %v691
  %v693 = vpop.f32.mrb[0].mxu0
  %694 = vmatprep.mubr.bf16.mxu0 0
  %695 = vmatmul.mubr.bf16.gmra.mrb[0].mxu0 %v472
  %v696 = vpop.f32.mrb[0].mxu0
  %v697 = vadd.f32 0.0, %v696
  %v698 = vpop.f32.mrb[0].mxu0
  %v699 = vpop.f32.mrb[0].mxu0
  %v700 = vadd.f32 0.0, %v699
  %v701 = vpop.f32.mrb[0].mxu0
  %702 = vmatprep.mubr.bf16.mxu0 0
  %703 = vmatmul.mubr.bf16.gmra.mrb[0].mxu0 %v473
  %v704 = vpop.f32.mrb[0].mxu0
  %v705 = vadd.f32 0.0, %v704
  %v706 = vpop.f32.mrb[0].mxu0
  %v707 = vpop.f32.mrb[0].mxu0
  %v708 = vadd.f32 0.0, %v707
  %v709 = vpop.f32.mrb[0].mxu0
  %710 = vmatprep.mubr.bf16.mxu0 0
  %711 = vmatmul.mubr.bf16.gmra.mrb[0].mxu0 %v474
  %v712 = vpop.f32.mrb[0].mxu0
  %v713 = vadd.f32 0.0, %v712
  %v714 = vpop.f32.mrb[0].mxu0
  %v715 = vpop.f32.mrb[0].mxu0
  %v716 = vadd.f32 0.0, %v715
  %v717 = vpop.f32.mrb[0].mxu0
  %718 = vmatprep.mubr.bf16.mxu0 0
  %719 = vmatmul.mubr.bf16.gmra.mrb[0].mxu0 %v475
  %v720 = vpop.f32.mrb[0].mxu0
  %v721 = vadd.f32 0.0, %v720
  %v722 = vpop.f32.mrb[0].mxu0
  %v723 = vpop.f32.mrb[0].mxu0
  %v724 = vadd.f32 0.0, %v723
  %v725 = vpop.f32.mrb[0].mxu0
  %726 = vmatprep.mubr.bf16.mxu0 0
  %727 = vmatmul.mubr.bf16.gmra.mrb[0].mxu0 %v476
  %v728 = vpop.f32.mrb[0].mxu0
  %v729 = vadd.f32 0.0, %v728
  %v730 = vpop.f32.mrb[0].mxu0
  %v731 = vpop.f32.mrb[0].mxu0
  %v732 = vadd.f32 0.0, %v731
  %v733 = vpop.f32.mrb[0].mxu0
  %734 = vmatprep.mubr.bf16.mxu0 0
  %735 = vmatmul.mubr.bf16.gmra.mrb[0].mxu0 %v477
  %v736 = vpop.f32.mrb[0].mxu0
  %v737 = vadd.f32 0.0, %v736
  %v738 = vpop.f32.mrb[0].mxu0
  %v739 = vpop.f32.mrb[0].mxu0
  %v740 = vadd.f32 0.0, %v739
  %v741 = vpop.f32.mrb[0].mxu0
  %742 = vmatprep.mubr.bf16.mxu0 0
  %743 = vmatmul.mubr.bf16.gmra.mrb[0].mxu0 %v478
  %v744 = vpop.f32.mrb[0].mxu0
  %v745 = vadd.f32 0.0, %v744
  %v746 = vpop.f32.mrb[0].mxu0
  %v747 = vpop.f32.mrb[0].mxu0
  %v748 = vadd.f32 0.0, %v747
  %v749 = vpop.f32.mrb[0].mxu0
  %750 = vmatprep.mubr.bf16.mxu0 0
  %751 = vmatmul.mubr.bf16.gmra.mrb[0].mxu0 %v479
  %v752 = vpop.f32.mrb[0].mxu0
  %v753 = vadd.f32 0.0, %v752
  %v754 = vpop.f32.mrb[0].mxu0
  %v755 = vpop.f32.mrb[0].mxu0
  %v756 = vadd.f32 0.0, %v755
  %v757 = vpop.f32.mrb[0].mxu0
  %758 = vmatprep.mubr.bf16.mxu0 0
  %759 = vmatmul.mubr.bf16.gmra.mrb[0].mxu0 %v480
  %v760 = vpop.f32.mrb[0].mxu0
  %v761 = vadd.f32 0.0, %v760
  %v762 = vpop.f32.mrb[0].mxu0
  %v763 = vpop.f32.mrb[0].mxu0
  %v764 = vadd.f32 0.0, %v763
  %v765 = vpop.f32.mrb[0].mxu0
  %766 = vmatprep.mubr.bf16.mxu0 0
  %767 = vmatmul.mubr.bf16.gmra.mrb[0].mxu0 %v481
  %v768 = vpop.f32.mrb[0].mxu0
  %v769 = vadd.f32 0.0, %v768
  %v770 = vpop.f32.mrb[0].mxu0
  %v771 = vpop.f32.mrb[0].mxu0
  %v772 = vadd.f32 0.0, %v771
  %v773 = vpop.f32.mrb[0].mxu0
  %774 = vmatprep.mubr.bf16.mxu0 0
  %775 = vmatmul.mubr.bf16.gmra.mrb[0].mxu0 %v482
  %v776 = vpop.f32.mrb[0].mxu0
  %v777 = vadd.f32 0.0, %v776
  %v778 = vpop.f32.mrb[0].mxu0
  %v779 = vpop.f32.mrb[0].mxu0
  %v780 = vadd.f32 0.0, %v779
  %v781 = vpop.f32.mrb[0].mxu0
  %782 = vmatprep.mubr.bf16.mxu0 0
  %783 = vmatmul.mubr.bf16.gmra.mrb[0].mxu0 %v483
  %v784 = vpop.f32.mrb[0].mxu0
  %v785 = vadd.f32 0.0, %v784
  %v786 = vpop.f32.mrb[0].mxu0
  %v787 = vpop.f32.mrb[0].mxu0
  %v788 = vadd.f32 0.0, %v787
  %v789 = vpop.f32.mrb[0].mxu0
  %790 = vmatprep.mubr.bf16.mxu0 0
  %791 = vmatmul.mubr.bf16.gmra.mrb[0].mxu0 %v484
  %v792 = vpop.f32.mrb[0].mxu0
  %v793 = vadd.f32 0.0, %v792
  %v794 = vpop.f32.mrb[0].mxu0
  %v795 = vpop.f32.mrb[0].mxu0
  %v796 = vadd.f32 0.0, %v795
  %v797 = vpop.f32.mrb[0].mxu0
  %798 = vmatprep.mubr.bf16.mxu0 0
  %799 = vmatmul.mubr.bf16.gmra.mrb[0].mxu0 %v485
  %v800 = vpop.f32.mrb[0].mxu0
  %v801 = vadd.f32 0.0, %v800
  %v802 = vpop.f32.mrb[0].mxu0
  %v803 = vpop.f32.mrb[0].mxu0
  %v804 = vadd.f32 0.0, %v803
  %v805 = vpop.f32.mrb[0].mxu0
  %806 = vdwg.mxu0
  %v807 = vpack.c.bf16 %v556, %v553
  %v808 = vpack.c.bf16 %v564, %v561
  %v809 = vpack.c.bf16 %v572, %v569
  %v810 = vpack.c.bf16 %v580, %v577
  %v811 = vpack.c.bf16 %v588, %v585
  %v812 = vpack.c.bf16 %v596, %v593
  %v813 = vpack.c.bf16 %v604, %v601
  %v814 = vpack.c.bf16 %v612, %v609
  %v815 = vpack.c.bf16 %v620, %v617
  %v816 = vpack.c.bf16 %v628, %v625
  %v817 = vpack.c.bf16 %v636, %v633
  %v818 = vpack.c.bf16 %v644, %v641
  %v819 = vpack.c.bf16 %v652, %v649
  %v820 = vpack.c.bf16 %v660, %v657
  %v821 = vpack.c.bf16 %v668, %v665
  %v822 = vpack.c.bf16 %v676, %v673
  %v823 = vpack.c.bf16 %v684, %v681
  %v824 = vpack.c.bf16 %v692, %v689
  %v825 = vpack.c.bf16 %v700, %v697
  %v826 = vpack.c.bf16 %v708, %v705
  %v827 = vpack.c.bf16 %v716, %v713
  %v828 = vpack.c.bf16 %v724, %v721
  %v829 = vpack.c.bf16 %v732, %v729
  %v830 = vpack.c.bf16 %v740, %v737
  %v831 = vpack.c.bf16 %v748, %v745
  %v832 = vpack.c.bf16 %v756, %v753
  %v833 = vpack.c.bf16 %v764, %v761
  %v834 = vpack.c.bf16 %v772, %v769
  %v835 = vpack.c.bf16 %v780, %v777
  %v836 = vpack.c.bf16 %v788, %v785
  %v837 = vpack.c.bf16 %v796, %v793
  %v838 = vpack.c.bf16 %v804, %v801
  %v839 = vld [vmem:[%s4] sm:$0xf]
  %v840 = vld [vmem:[%s4 + $0x4] sm:$0xf]
  %v841 = vld [vmem:[%s4 + $0x8] sm:$0xf]
  %v842 = vld [vmem:[%s4 + $0xc] sm:$0xf]
  %s843 = scalar_lea.vmem %s4, 16
  %v844 = vld [vmem:[%s843] sm:$0xf]
  %v845 = vld [vmem:[%s843 + $0x4] sm:$0xf]
  %v846 = vld [vmem:[%s843 + $0x8] sm:$0xf]
  %v847 = vld [vmem:[%s843 + $0xc] sm:$0xf]
  %v852 = vunpack.c.l.b16 %v844
  %v853 = vunpack.c.l.b16 %v845
  %v854 = vunpack.c.l.b16 %v846
  %v855 = vunpack.c.l.b16 %v847
  %v856 = vpack.c.b16 %v853, %v852
  %v857 = vpack.c.b16 %v855, %v854
  %vm860 = vcmask 261120
  %v862 = vsel %vm860, %v809, 0
  %v865 = vsel %vm860, %v810, 0
  %867 = vmatprep.subr.bf16.mxu0 0
  %868 = vmatpush1.bf16.msra.mxu0 %v856
  %869 = vmatprep.subr.bf16.mxu0 0
  %870 = vmatpush1.bf16.msra.mxu0 %v857
  %871 = vmatprep.subr.bf16.mxu0 0
  %872 = vmatpush1.bf16.msra.mxu0 0
  %873 = vmatprep.subr.bf16.mxu0 0
  %874 = vmatpush1.bf16.msra.mxu0 0
  %875 = vmatprep.subr.bf16.mxu0 0
  %876 = vmatpush1.bf16.msra.mxu0 0
  %877 = vmatprep.subr.bf16.mxu0 0
  %878 = vmatpush1.bf16.msra.mxu0 0
  %879 = vmatprep.subr.bf16.mxu0 0
  %880 = vmatpush1.bf16.msra.mxu0 0
  %881 = vmatprep.subr.bf16.mxu0 0
  %882 = vmatpush1.bf16.msra.mxu0 0
  %883 = vmatprep.subr.bf16.mxu0 0
  %884 = vmatpush1.bf16.msra.mxu0 0
  %885 = vmatprep.subr.bf16.mxu0 0
  %886 = vmatpush1.bf16.msra.mxu0 0
  %887 = vmatprep.subr.bf16.mxu0 0
  %888 = vmatpush1.bf16.msra.mxu0 0
  %889 = vmatprep.subr.bf16.mxu0 0
  %890 = vmatpush1.bf16.msra.mxu0 0
  %891 = vmatprep.subr.bf16.mxu0 0
  %892 = vmatpush1.bf16.msra.mxu0 0
  %893 = vmatprep.subr.bf16.mxu0 0
  %894 = vmatpush1.bf16.msra.mxu0 0
  %895 = vmatprep.subr.bf16.mxu0 0
  %896 = vmatpush1.bf16.msra.mxu0 0
  %897 = vmatprep.subr.bf16.mxu0 0
  %898 = vmatpush1.bf16.msra.mxu0 0
  %899 = vmatprep.mubr.bf16.mxu0 0
  %900 = vmatmul.mubr.bf16.gmra.mrb[0].mxu0 %v862
  %v901 = vpop.f32.mrb[0].mxu0
  %v902 = vadd.f32 0.0, %v901
  %v903 = vpop.f32.mrb[0].mxu0
  %v904 = vpop.f32.mrb[0].mxu0
  %v905 = vadd.f32 0.0, %v904
  %v906 = vpop.f32.mrb[0].mxu0
  %907 = vmatprep.mubr.bf16.mxu0 0
  %908 = vmatmul.mubr.bf16.gmra.mrb[0].mxu0 %v865
  %v909 = vpop.f32.mrb[0].mxu0
  %v910 = vadd.f32 0.0, %v909
  %v911 = vpop.f32.mrb[0].mxu0
  %v912 = vpop.f32.mrb[0].mxu0
  %v913 = vadd.f32 0.0, %v912
  %v914 = vpop.f32.mrb[0].mxu0
  %915 = vdwg.mxu0
  %v920 = vunpack.c.l.b16 %v839
  %v921 = vunpack.c.l.b16 %v840
  %v922 = vunpack.c.l.b16 %v841
  %v923 = vunpack.c.l.b16 %v842
  %v924 = vpack.c.b16 %v921, %v920
  %v925 = vpack.c.b16 %v923, %v922
  %v929 = vsel %vm860, %v807, 0
  %v932 = vsel %vm860, %v808, 0
  %934 = vmatprep.subr.bf16.mxu0 0
  %935 = vmatpush1.bf16.msra.mxu0 %v924
  %936 = vmatprep.subr.bf16.mxu0 0
  %937 = vmatpush1.bf16.msra.mxu0 %v925
  %938 = vmatprep.subr.bf16.mxu0 0
  %939 = vmatpush1.bf16.msra.mxu0 0
  %940 = vmatprep.subr.bf16.mxu0 0
  %941 = vmatpush1.bf16.msra.mxu0 0
  %942 = vmatprep.subr.bf16.mxu0 0
  %943 = vmatpush1.bf16.msra.mxu0 0
  %944 = vmatprep.subr.bf16.mxu0 0
  %945 = vmatpush1.bf16.msra.mxu0 0
  %946 = vmatprep.subr.bf16.mxu0 0
  %947 = vmatpush1.bf16.msra.mxu0 0
  %948 = vmatprep.subr.bf16.mxu0 0
  %949 = vmatpush1.bf16.msra.mxu0 0
  %950 = vmatprep.subr.bf16.mxu0 0
  %951 = vmatpush1.bf16.msra.mxu0 0
  %952 = vmatprep.subr.bf16.mxu0 0
  %953 = vmatpush1.bf16.msra.mxu0 0
  %954 = vmatprep.subr.bf16.mxu0 0
  %955 = vmatpush1.bf16.msra.mxu0 0
  %956 = vmatprep.subr.bf16.mxu0 0
  %957 = vmatpush1.bf16.msra.mxu0 0
  %958 = vmatprep.subr.bf16.mxu0 0
  %959 = vmatpush1.bf16.msra.mxu0 0
  %960 = vmatprep.subr.bf16.mxu0 0
  %961 = vmatpush1.bf16.msra.mxu0 0
  %962 = vmatprep.subr.bf16.mxu0 0
  %963 = vmatpush1.bf16.msra.mxu0 0
  %964 = vmatprep.subr.bf16.mxu0 0
  %965 = vmatpush1.bf16.msra.mxu0 0
  %966 = vmatprep.mubr.bf16.mxu0 0
  %967 = vmatmul.mubr.bf16.gmra.mrb[0].mxu0 %v929
  %v968 = vpop.f32.mrb[0].mxu0
  %v969 = vadd.f32 %v902, %v968
  %v970 = vpop.f32.mrb[0].mxu0
  %v971 = vpop.f32.mrb[0].mxu0
  %v972 = vadd.f32 %v905, %v971
  %v973 = vpop.f32.mrb[0].mxu0
  %974 = vmatprep.mubr.bf16.mxu0 0
  %975 = vmatmul.mubr.bf16.gmra.mrb[0].mxu0 %v932
  %v976 = vpop.f32.mrb[0].mxu0
  %v977 = vadd.f32 %v910, %v976
  %v978 = vpop.f32.mrb[0].mxu0
  %v979 = vpop.f32.mrb[0].mxu0
  %v980 = vadd.f32 %v913, %v979
  %v981 = vpop.f32.mrb[0].mxu0
  %982 = vdwg.mxu0
  %s983 = scalar_lea.vmem %s4, 32
  %v984 = vld [vmem:[%s983] sm:$0xf]
  %v985 = vld [vmem:[%s983 + $0x4] sm:$0xf]
  %v986 = vld [vmem:[%s983 + $0x8] sm:$0xf]
  %v987 = vld [vmem:[%s983 + $0xc] sm:$0xf]
  %v992 = vunpack.c.l.b16 %v984
  %v993 = vunpack.c.l.b16 %v985
  %v994 = vunpack.c.l.b16 %v986
  %v995 = vunpack.c.l.b16 %v987
  %v996 = vpack.c.b16 %v993, %v992
  %v997 = vpack.c.b16 %v995, %v994
  %v1001 = vsel %vm860, %v811, 0
  %v1004 = vsel %vm860, %v812, 0
  %1006 = vmatprep.subr.bf16.mxu0 0
  %1007 = vmatpush1.bf16.msra.mxu0 %v996
  %1008 = vmatprep.subr.bf16.mxu0 0
  %1009 = vmatpush1.bf16.msra.mxu0 %v997
  %1010 = vmatprep.subr.bf16.mxu0 0
  %1011 = vmatpush1.bf16.msra.mxu0 0
  %1012 = vmatprep.subr.bf16.mxu0 0
  %1013 = vmatpush1.bf16.msra.mxu0 0
  %1014 = vmatprep.subr.bf16.mxu0 0
  %1015 = vmatpush1.bf16.msra.mxu0 0
  %1016 = vmatprep.subr.bf16.mxu0 0
  %1017 = vmatpush1.bf16.msra.mxu0 0
  %1018 = vmatprep.subr.bf16.mxu0 0
  %1019 = vmatpush1.bf16.msra.mxu0 0
  %1020 = vmatprep.subr.bf16.mxu0 0
  %1021 = vmatpush1.bf16.msra.mxu0 0
  %1022 = vmatprep.subr.bf16.mxu0 0
  %1023 = vmatpush1.bf16.msra.mxu0 0
  %1024 = vmatprep.subr.bf16.mxu0 0
  %1025 = vmatpush1.bf16.msra.mxu0 0
  %1026 = vmatprep.subr.bf16.mxu0 0
  %1027 = vmatpush1.bf16.msra.mxu0 0
  %1028 = vmatprep.subr.bf16.mxu0 0
  %1029 = vmatpush1.bf16.msra.mxu0 0
  %1030 = vmatprep.subr.bf16.mxu0 0
  %1031 = vmatpush1.bf16.msra.mxu0 0
  %1032 = vmatprep.subr.bf16.mxu0 0
  %1033 = vmatpush1.bf16.msra.mxu0 0
  %1034 = vmatprep.subr.bf16.mxu0 0
  %1035 = vmatpush1.bf16.msra.mxu0 0
  %1036 = vmatprep.subr.bf16.mxu0 0
  %1037 = vmatpush1.bf16.msra.mxu0 0
  %1038 = vmatprep.mubr.bf16.mxu0 0
  %1039 = vmatmul.mubr.bf16.gmra.mrb[0].mxu0 %v1001
  %v1040 = vpop.f32.mrb[0].mxu0
  %v1041 = vadd.f32 0.0, %v1040
  %v1042 = vpop.f32.mrb[0].mxu0
  %v1043 = vpop.f32.mrb[0].mxu0
  %v1044 = vadd.f32 0.0, %v1043
  %v1045 = vpop.f32.mrb[0].mxu0
  %1046 = vmatprep.mubr.bf16.mxu0 0
  %1047 = vmatmul.mubr.bf16.gmra.mrb[0].mxu0 %v1004
  %v1048 = vpop.f32.mrb[0].mxu0
  %v1049 = vadd.f32 0.0, %v1048
  %v1050 = vpop.f32.mrb[0].mxu0
  %v1051 = vpop.f32.mrb[0].mxu0
  %v1052 = vadd.f32 0.0, %v1051
  %v1053 = vpop.f32.mrb[0].mxu0
  %1054 = vdwg.mxu0
  %v1055 = vadd.f32 %v969, %v1041
  %v1056 = vadd.f32 %v972, %v1044
  %v1057 = vadd.f32 %v977, %v1049
  %v1058 = vadd.f32 %v980, %v1052
  %s1059 = scalar_lea.vmem %s4, 48
  %v1060 = vld [vmem:[%s1059] sm:$0xf]
  %v1061 = vld [vmem:[%s1059 + $0x4] sm:$0xf]
  %v1062 = vld [vmem:[%s1059 + $0x8] sm:$0xf]
  %v1063 = vld [vmem:[%s1059 + $0xc] sm:$0xf]
  %v1068 = vunpack.c.l.b16 %v1060
  %v1069 = vunpack.c.l.b16 %v1061
  %v1070 = vunpack.c.l.b16 %v1062
  %v1071 = vunpack.c.l.b16 %v1063
  %v1072 = vpack.c.b16 %v1069, %v1068
  %v1073 = vpack.c.b16 %v1071, %v1070
  %v1077 = vsel %vm860, %v813, 0
  %v1080 = vsel %vm860, %v814, 0
  %1082 = vmatprep.subr.bf16.mxu0 0
  %1083 = vmatpush1.bf16.msra.mxu0 %v1072
  %1084 = vmatprep.subr.bf16.mxu0 0
  %1085 = vmatpush1.bf16.msra.mxu0 %v1073
  %1086 = vmatprep.subr.bf16.mxu0 0
  %1087 = vmatpush1.bf16.msra.mxu0 0
  %1088 = vmatprep.subr.bf16.mxu0 0
  %1089 = vmatpush1.bf16.msra.mxu0 0
  %1090 = vmatprep.subr.bf16.mxu0 0
  %1091 = vmatpush1.bf16.msra.mxu0 0
  %1092 = vmatprep.subr.bf16.mxu0 0
  %1093 = vmatpush1.bf16.msra.mxu0 0
  %1094 = vmatprep.subr.bf16.mxu0 0
  %1095 = vmatpush1.bf16.msra.mxu0 0
  %1096 = vmatprep.subr.bf16.mxu0 0
  %1097 = vmatpush1.bf16.msra.mxu0 0
  %1098 = vmatprep.subr.bf16.mxu0 0
  %1099 = vmatpush1.bf16.msra.mxu0 0
  %1100 = vmatprep.subr.bf16.mxu0 0
  %1101 = vmatpush1.bf16.msra.mxu0 0
  %1102 = vmatprep.subr.bf16.mxu0 0
  %1103 = vmatpush1.bf16.msra.mxu0 0
  %1104 = vmatprep.subr.bf16.mxu0 0
  %1105 = vmatpush1.bf16.msra.mxu0 0
  %1106 = vmatprep.subr.bf16.mxu0 0
  %1107 = vmatpush1.bf16.msra.mxu0 0
  %1108 = vmatprep.subr.bf16.mxu0 0
  %1109 = vmatpush1.bf16.msra.mxu0 0
  %1110 = vmatprep.subr.bf16.mxu0 0
  %1111 = vmatpush1.bf16.msra.mxu0 0
  %1112 = vmatprep.subr.bf16.mxu0 0
  %1113 = vmatpush1.bf16.msra.mxu0 0
  %1114 = vmatprep.mubr.bf16.mxu0 0
  %1115 = vmatmul.mubr.bf16.gmra.mrb[0].mxu0 %v1077
  %v1116 = vpop.f32.mrb[0].mxu0
  %v1117 = vadd.f32 0.0, %v1116
  %v1118 = vpop.f32.mrb[0].mxu0
  %v1119 = vpop.f32.mrb[0].mxu0
  %v1120 = vadd.f32 0.0, %v1119
  %v1121 = vpop.f32.mrb[0].mxu0
  %1122 = vmatprep.mubr.bf16.mxu0 0
  %1123 = vmatmul.mubr.bf16.gmra.mrb[0].mxu0 %v1080
  %v1124 = vpop.f32.mrb[0].mxu0
  %v1125 = vadd.f32 0.0, %v1124
  %v1126 = vpop.f32.mrb[0].mxu0
  %v1127 = vpop.f32.mrb[0].mxu0
  %v1128 = vadd.f32 0.0, %v1127
  %v1129 = vpop.f32.mrb[0].mxu0
  %1130 = vdwg.mxu0
  %v1131 = vadd.f32 %v1055, %v1117
  %v1132 = vadd.f32 %v1056, %v1120
  %v1133 = vadd.f32 %v1057, %v1125
  %v1134 = vadd.f32 %v1058, %v1128
  %s1135 = scalar_lea.vmem %s4, 64
  %v1136 = vld [vmem:[%s1135] sm:$0xf]
  %v1137 = vld [vmem:[%s1135 + $0x4] sm:$0xf]
  %v1138 = vld [vmem:[%s1135 + $0x8] sm:$0xf]
  %v1139 = vld [vmem:[%s1135 + $0xc] sm:$0xf]
  %v1144 = vunpack.c.l.b16 %v1136
  %v1145 = vunpack.c.l.b16 %v1137
  %v1146 = vunpack.c.l.b16 %v1138
  %v1147 = vunpack.c.l.b16 %v1139
  %v1148 = vpack.c.b16 %v1145, %v1144
  %v1149 = vpack.c.b16 %v1147, %v1146
  %v1153 = vsel %vm860, %v815, 0
  %v1156 = vsel %vm860, %v816, 0
  %1158 = vmatprep.subr.bf16.mxu0 0
  %1159 = vmatpush1.bf16.msra.mxu0 %v1148
  %1160 = vmatprep.subr.bf16.mxu0 0
  %1161 = vmatpush1.bf16.msra.mxu0 %v1149
  %1162 = vmatprep.subr.bf16.mxu0 0
  %1163 = vmatpush1.bf16.msra.mxu0 0
  %1164 = vmatprep.subr.bf16.mxu0 0
  %1165 = vmatpush1.bf16.msra.mxu0 0
  %1166 = vmatprep.subr.bf16.mxu0 0
  %1167 = vmatpush1.bf16.msra.mxu0 0
  %1168 = vmatprep.subr.bf16.mxu0 0
  %1169 = vmatpush1.bf16.msra.mxu0 0
  %1170 = vmatprep.subr.bf16.mxu0 0
  %1171 = vmatpush1.bf16.msra.mxu0 0
  %1172 = vmatprep.subr.bf16.mxu0 0
  %1173 = vmatpush1.bf16.msra.mxu0 0
  %1174 = vmatprep.subr.bf16.mxu0 0
  %1175 = vmatpush1.bf16.msra.mxu0 0
  %1176 = vmatprep.subr.bf16.mxu0 0
  %1177 = vmatpush1.bf16.msra.mxu0 0
  %1178 = vmatprep.subr.bf16.mxu0 0
  %1179 = vmatpush1.bf16.msra.mxu0 0
  %1180 = vmatprep.subr.bf16.mxu0 0
  %1181 = vmatpush1.bf16.msra.mxu0 0
  %1182 = vmatprep.subr.bf16.mxu0 0
  %1183 = vmatpush1.bf16.msra.mxu0 0
  %1184 = vmatprep.subr.bf16.mxu0 0
  %1185 = vmatpush1.bf16.msra.mxu0 0
  %1186 = vmatprep.subr.bf16.mxu0 0
  %1187 = vmatpush1.bf16.msra.mxu0 0
  %1188 = vmatprep.subr.bf16.mxu0 0
  %1189 = vmatpush1.bf16.msra.mxu0 0
  %1190 = vmatprep.mubr.bf16.mxu0 0
  %1191 = vmatmul.mubr.bf16.gmra.mrb[0].mxu0 %v1153
  %v1192 = vpop.f32.mrb[0].mxu0
  %v1193 = vadd.f32 0.0, %v1192
  %v1194 = vpop.f32.mrb[0].mxu0
  %v1195 = vpop.f32.mrb[0].mxu0
  %v1196 = vadd.f32 0.0, %v1195
  %v1197 = vpop.f32.mrb[0].mxu0
  %1198 = vmatprep.mubr.bf16.mxu0 0
  %1199 = vmatmul.mubr.bf16.gmra.mrb[0].mxu0 %v1156
  %v1200 = vpop.f32.mrb[0].mxu0
  %v1201 = vadd.f32 0.0, %v1200
  %v1202 = vpop.f32.mrb[0].mxu0
  %v1203 = vpop.f32.mrb[0].mxu0
  %v1204 = vadd.f32 0.0, %v1203
  %v1205 = vpop.f32.mrb[0].mxu0
  %1206 = vdwg.mxu0
  %v1207 = vadd.f32 %v1131, %v1193
  %v1208 = vadd.f32 %v1132, %v1196
  %v1209 = vadd.f32 %v1133, %v1201
  %v1210 = vadd.f32 %v1134, %v1204
  %s1211 = scalar_lea.vmem %s4, 80
  %v1212 = vld [vmem:[%s1211] sm:$0xf]
  %v1213 = vld [vmem:[%s1211 + $0x4] sm:$0xf]
  %v1214 = vld [vmem:[%s1211 + $0x8] sm:$0xf]
  %v1215 = vld [vmem:[%s1211 + $0xc] sm:$0xf]
  %v1220 = vunpack.c.l.b16 %v1212
  %v1221 = vunpack.c.l.b16 %v1213
  %v1222 = vunpack.c.l.b16 %v1214
  %v1223 = vunpack.c.l.b16 %v1215
  %v1224 = vpack.c.b16 %v1221, %v1220
  %v1225 = vpack.c.b16 %v1223, %v1222
  %v1229 = vsel %vm860, %v817, 0
  %v1232 = vsel %vm860, %v818, 0
  %1234 = vmatprep.subr.bf16.mxu0 0
  %1235 = vmatpush1.bf16.msra.mxu0 %v1224
  %1236 = vmatprep.subr.bf16.mxu0 0
  %1237 = vmatpush1.bf16.msra.mxu0 %v1225
  %1238 = vmatprep.subr.bf16.mxu0 0
  %1239 = vmatpush1.bf16.msra.mxu0 0
  %1240 = vmatprep.subr.bf16.mxu0 0
  %1241 = vmatpush1.bf16.msra.mxu0 0
  %1242 = vmatprep.subr.bf16.mxu0 0
  %1243 = vmatpush1.bf16.msra.mxu0 0
  %1244 = vmatprep.subr.bf16.mxu0 0
  %1245 = vmatpush1.bf16.msra.mxu0 0
  %1246 = vmatprep.subr.bf16.mxu0 0
  %1247 = vmatpush1.bf16.msra.mxu0 0
  %1248 = vmatprep.subr.bf16.mxu0 0
  %1249 = vmatpush1.bf16.msra.mxu0 0
  %1250 = vmatprep.subr.bf16.mxu0 0
  %1251 = vmatpush1.bf16.msra.mxu0 0
  %1252 = vmatprep.subr.bf16.mxu0 0
  %1253 = vmatpush1.bf16.msra.mxu0 0
  %1254 = vmatprep.subr.bf16.mxu0 0
  %1255 = vmatpush1.bf16.msra.mxu0 0
  %1256 = vmatprep.subr.bf16.mxu0 0
  %1257 = vmatpush1.bf16.msra.mxu0 0
  %1258 = vmatprep.subr.bf16.mxu0 0
  %1259 = vmatpush1.bf16.msra.mxu0 0
  %1260 = vmatprep.subr.bf16.mxu0 0
  %1261 = vmatpush1.bf16.msra.mxu0 0
  %1262 = vmatprep.subr.bf16.mxu0 0
  %1263 = vmatpush1.bf16.msra.mxu0 0
  %1264 = vmatprep.subr.bf16.mxu0 0
  %1265 = vmatpush1.bf16.msra.mxu0 0
  %1266 = vmatprep.mubr.bf16.mxu0 0
  %1267 = vmatmul.mubr.bf16.gmra.mrb[0].mxu0 %v1229
  %v1268 = vpop.f32.mrb[0].mxu0
  %v1269 = vadd.f32 0.0, %v1268
  %v1270 = vpop.f32.mrb[0].mxu0
  %v1271 = vpop.f32.mrb[0].mxu0
  %v1272 = vadd.f32 0.0, %v1271
  %v1273 = vpop.f32.mrb[0].mxu0
  %1274 = vmatprep.mubr.bf16.mxu0 0
  %1275 = vmatmul.mubr.bf16.gmra.mrb[0].mxu0 %v1232
  %v1276 = vpop.f32.mrb[0].mxu0
  %v1277 = vadd.f32 0.0, %v1276
  %v1278 = vpop.f32.mrb[0].mxu0
  %v1279 = vpop.f32.mrb[0].mxu0
  %v1280 = vadd.f32 0.0, %v1279
  %v1281 = vpop.f32.mrb[0].mxu0
  %1282 = vdwg.mxu0
  %v1283 = vadd.f32 %v1207, %v1269
  %v1284 = vadd.f32 %v1208, %v1272
  %v1285 = vadd.f32 %v1209, %v1277
  %v1286 = vadd.f32 %v1210, %v1280
  %s1287 = scalar_lea.vmem %s4, 96
  %v1288 = vld [vmem:[%s1287] sm:$0xf]
  %v1289 = vld [vmem:[%s1287 + $0x4] sm:$0xf]
  %v1290 = vld [vmem:[%s1287 + $0x8] sm:$0xf]
  %v1291 = vld [vmem:[%s1287 + $0xc] sm:$0xf]
  %v1296 = vunpack.c.l.b16 %v1288
  %v1297 = vunpack.c.l.b16 %v1289
  %v1298 = vunpack.c.l.b16 %v1290
  %v1299 = vunpack.c.l.b16 %v1291
  %v1300 = vpack.c.b16 %v1297, %v1296
  %v1301 = vpack.c.b16 %v1299, %v1298
  %v1305 = vsel %vm860, %v819, 0
  %v1308 = vsel %vm860, %v820, 0
  %1310 = vmatprep.subr.bf16.mxu0 0
  %1311 = vmatpush1.bf16.msra.mxu0 %v1300
  %1312 = vmatprep.subr.bf16.mxu0 0
  %1313 = vmatpush1.bf16.msra.mxu0 %v1301
  %1314 = vmatprep.subr.bf16.mxu0 0
  %1315 = vmatpush1.bf16.msra.mxu0 0
  %1316 = vmatprep.subr.bf16.mxu0 0
  %1317 = vmatpush1.bf16.msra.mxu0 0
  %1318 = vmatprep.subr.bf16.mxu0 0
  %1319 = vmatpush1.bf16.msra.mxu0 0
  %1320 = vmatprep.subr.bf16.mxu0 0
  %1321 = vmatpush1.bf16.msra.mxu0 0
  %1322 = vmatprep.subr.bf16.mxu0 0
  %1323 = vmatpush1.bf16.msra.mxu0 0
  %1324 = vmatprep.subr.bf16.mxu0 0
  %1325 = vmatpush1.bf16.msra.mxu0 0
  %1326 = vmatprep.subr.bf16.mxu0 0
  %1327 = vmatpush1.bf16.msra.mxu0 0
  %1328 = vmatprep.subr.bf16.mxu0 0
  %1329 = vmatpush1.bf16.msra.mxu0 0
  %1330 = vmatprep.subr.bf16.mxu0 0
  %1331 = vmatpush1.bf16.msra.mxu0 0
  %1332 = vmatprep.subr.bf16.mxu0 0
  %1333 = vmatpush1.bf16.msra.mxu0 0
  %1334 = vmatprep.subr.bf16.mxu0 0
  %1335 = vmatpush1.bf16.msra.mxu0 0
  %1336 = vmatprep.subr.bf16.mxu0 0
  %1337 = vmatpush1.bf16.msra.mxu0 0
  %1338 = vmatprep.subr.bf16.mxu0 0
  %1339 = vmatpush1.bf16.msra.mxu0 0
  %1340 = vmatprep.subr.bf16.mxu0 0
  %1341 = vmatpush1.bf16.msra.mxu0 0
  %1342 = vmatprep.mubr.bf16.mxu0 0
  %1343 = vmatmul.mubr.bf16.gmra.mrb[0].mxu0 %v1305
  %v1344 = vpop.f32.mrb[0].mxu0
  %v1345 = vadd.f32 0.0, %v1344
  %v1346 = vpop.f32.mrb[0].mxu0
  %v1347 = vpop.f32.mrb[0].mxu0
  %v1348 = vadd.f32 0.0, %v1347
  %v1349 = vpop.f32.mrb[0].mxu0
  %1350 = vmatprep.mubr.bf16.mxu0 0
  %1351 = vmatmul.mubr.bf16.gmra.mrb[0].mxu0 %v1308
  %v1352 = vpop.f32.mrb[0].mxu0
  %v1353 = vadd.f32 0.0, %v1352
  %v1354 = vpop.f32.mrb[0].mxu0
  %v1355 = vpop.f32.mrb[0].mxu0
  %v1356 = vadd.f32 0.0, %v1355
  %v1357 = vpop.f32.mrb[0].mxu0
  %1358 = vdwg.mxu0
  %v1359 = vadd.f32 %v1283, %v1345
  %v1360 = vadd.f32 %v1284, %v1348
  %v1361 = vadd.f32 %v1285, %v1353
  %v1362 = vadd.f32 %v1286, %v1356
  %s1363 = scalar_lea.vmem %s4, 112
  %v1364 = vld [vmem:[%s1363] sm:$0xf]
  %v1365 = vld [vmem:[%s1363 + $0x4] sm:$0xf]
  %v1366 = vld [vmem:[%s1363 + $0x8] sm:$0xf]
  %v1367 = vld [vmem:[%s1363 + $0xc] sm:$0xf]
  %v1372 = vunpack.c.l.b16 %v1364
  %v1373 = vunpack.c.l.b16 %v1365
  %v1374 = vunpack.c.l.b16 %v1366
  %v1375 = vunpack.c.l.b16 %v1367
  %v1376 = vpack.c.b16 %v1373, %v1372
  %v1377 = vpack.c.b16 %v1375, %v1374
  %v1381 = vsel %vm860, %v821, 0
  %v1384 = vsel %vm860, %v822, 0
  %1386 = vmatprep.subr.bf16.mxu0 0
  %1387 = vmatpush1.bf16.msra.mxu0 %v1376
  %1388 = vmatprep.subr.bf16.mxu0 0
  %1389 = vmatpush1.bf16.msra.mxu0 %v1377
  %1390 = vmatprep.subr.bf16.mxu0 0
  %1391 = vmatpush1.bf16.msra.mxu0 0
  %1392 = vmatprep.subr.bf16.mxu0 0
  %1393 = vmatpush1.bf16.msra.mxu0 0
  %1394 = vmatprep.subr.bf16.mxu0 0
  %1395 = vmatpush1.bf16.msra.mxu0 0
  %1396 = vmatprep.subr.bf16.mxu0 0
  %1397 = vmatpush1.bf16.msra.mxu0 0
  %1398 = vmatprep.subr.bf16.mxu0 0
  %1399 = vmatpush1.bf16.msra.mxu0 0
  %1400 = vmatprep.subr.bf16.mxu0 0
  %1401 = vmatpush1.bf16.msra.mxu0 0
  %1402 = vmatprep.subr.bf16.mxu0 0
  %1403 = vmatpush1.bf16.msra.mxu0 0
  %1404 = vmatprep.subr.bf16.mxu0 0
  %1405 = vmatpush1.bf16.msra.mxu0 0
  %1406 = vmatprep.subr.bf16.mxu0 0
  %1407 = vmatpush1.bf16.msra.mxu0 0
  %1408 = vmatprep.subr.bf16.mxu0 0
  %1409 = vmatpush1.bf16.msra.mxu0 0
  %1410 = vmatprep.subr.bf16.mxu0 0
  %1411 = vmatpush1.bf16.msra.mxu0 0
  %1412 = vmatprep.subr.bf16.mxu0 0
  %1413 = vmatpush1.bf16.msra.mxu0 0
  %1414 = vmatprep.subr.bf16.mxu0 0
  %1415 = vmatpush1.bf16.msra.mxu0 0
  %1416 = vmatprep.subr.bf16.mxu0 0
  %1417 = vmatpush1.bf16.msra.mxu0 0
  %1418 = vmatprep.mubr.bf16.mxu0 0
  %1419 = vmatmul.mubr.bf16.gmra.mrb[0].mxu0 %v1381
  %v1420 = vpop.f32.mrb[0].mxu0
  %v1421 = vadd.f32 0.0, %v1420
  %v1422 = vpop.f32.mrb[0].mxu0
  %v1423 = vpop.f32.mrb[0].mxu0
  %v1424 = vadd.f32 0.0, %v1423
  %v1425 = vpop.f32.mrb[0].mxu0
  %1426 = vmatprep.mubr.bf16.mxu0 0
  %1427 = vmatmul.mubr.bf16.gmra.mrb[0].mxu0 %v1384
  %v1428 = vpop.f32.mrb[0].mxu0
  %v1429 = vadd.f32 0.0, %v1428
  %v1430 = vpop.f32.mrb[0].mxu0
  %v1431 = vpop.f32.mrb[0].mxu0
  %v1432 = vadd.f32 0.0, %v1431
  %v1433 = vpop.f32.mrb[0].mxu0
  %1434 = vdwg.mxu0
  %v1435 = vadd.f32 %v1359, %v1421
  %v1436 = vadd.f32 %v1360, %v1424
  %v1437 = vadd.f32 %v1361, %v1429
  %v1438 = vadd.f32 %v1362, %v1432
  %s1439 = scalar_lea.vmem %s4, 128
  %v1440 = vld [vmem:[%s1439] sm:$0xf]
  %v1441 = vld [vmem:[%s1439 + $0x4] sm:$0xf]
  %v1442 = vld [vmem:[%s1439 + $0x8] sm:$0xf]
  %v1443 = vld [vmem:[%s1439 + $0xc] sm:$0xf]
  %v1448 = vunpack.c.l.b16 %v1440
  %v1449 = vunpack.c.l.b16 %v1441
  %v1450 = vunpack.c.l.b16 %v1442
  %v1451 = vunpack.c.l.b16 %v1443
  %v1452 = vpack.c.b16 %v1449, %v1448
  %v1453 = vpack.c.b16 %v1451, %v1450
  %v1457 = vsel %vm860, %v823, 0
  %v1460 = vsel %vm860, %v824, 0
  %1462 = vmatprep.subr.bf16.mxu0 0
  %1463 = vmatpush1.bf16.msra.mxu0 %v1452
  %1464 = vmatprep.subr.bf16.mxu0 0
  %1465 = vmatpush1.bf16.msra.mxu0 %v1453
  %1466 = vmatprep.subr.bf16.mxu0 0
  %1467 = vmatpush1.bf16.msra.mxu0 0
  %1468 = vmatprep.subr.bf16.mxu0 0
  %1469 = vmatpush1.bf16.msra.mxu0 0
  %1470 = vmatprep.subr.bf16.mxu0 0
  %1471 = vmatpush1.bf16.msra.mxu0 0
  %1472 = vmatprep.subr.bf16.mxu0 0
  %1473 = vmatpush1.bf16.msra.mxu0 0
  %1474 = vmatprep.subr.bf16.mxu0 0
  %1475 = vmatpush1.bf16.msra.mxu0 0
  %1476 = vmatprep.subr.bf16.mxu0 0
  %1477 = vmatpush1.bf16.msra.mxu0 0
  %1478 = vmatprep.subr.bf16.mxu0 0
  %1479 = vmatpush1.bf16.msra.mxu0 0
  %1480 = vmatprep.subr.bf16.mxu0 0
  %1481 = vmatpush1.bf16.msra.mxu0 0
  %1482 = vmatprep.subr.bf16.mxu0 0
  %1483 = vmatpush1.bf16.msra.mxu0 0
  %1484 = vmatprep.subr.bf16.mxu0 0
  %1485 = vmatpush1.bf16.msra.mxu0 0
  %1486 = vmatprep.subr.bf16.mxu0 0
  %1487 = vmatpush1.bf16.msra.mxu0 0
  %1488 = vmatprep.subr.bf16.mxu0 0
  %1489 = vmatpush1.bf16.msra.mxu0 0
  %1490 = vmatprep.subr.bf16.mxu0 0
  %1491 = vmatpush1.bf16.msra.mxu0 0
  %1492 = vmatprep.subr.bf16.mxu0 0
  %1493 = vmatpush1.bf16.msra.mxu0 0
  %1494 = vmatprep.mubr.bf16.mxu0 0
  %1495 = vmatmul.mubr.bf16.gmra.mrb[0].mxu0 %v1457
  %v1496 = vpop.f32.mrb[0].mxu0
  %v1497 = vadd.f32 0.0, %v1496
  %v1498 = vpop.f32.mrb[0].mxu0
  %v1499 = vpop.f32.mrb[0].mxu0
  %v1500 = vadd.f32 0.0, %v1499
  %v1501 = vpop.f32.mrb[0].mxu0
  %1502 = vmatprep.mubr.bf16.mxu0 0
  %1503 = vmatmul.mubr.bf16.gmra.mrb[0].mxu0 %v1460
  %v1504 = vpop.f32.mrb[0].mxu0
  %v1505 = vadd.f32 0.0, %v1504
  %v1506 = vpop.f32.mrb[0].mxu0
  %v1507 = vpop.f32.mrb[0].mxu0
  %v1508 = vadd.f32 0.0, %v1507
  %v1509 = vpop.f32.mrb[0].mxu0
  %1510 = vdwg.mxu0
  %v1511 = vadd.f32 %v1435, %v1497
  %v1512 = vadd.f32 %v1436, %v1500
  %v1513 = vadd.f32 %v1437, %v1505
  %v1514 = vadd.f32 %v1438, %v1508
  %s1515 = scalar_lea.vmem %s4, 144
  %v1516 = vld [vmem:[%s1515] sm:$0xf]
  %v1517 = vld [vmem:[%s1515 + $0x4] sm:$0xf]
  %v1518 = vld [vmem:[%s1515 + $0x8] sm:$0xf]
  %v1519 = vld [vmem:[%s1515 + $0xc] sm:$0xf]
  %v1524 = vunpack.c.l.b16 %v1516
  %v1525 = vunpack.c.l.b16 %v1517
  %v1526 = vunpack.c.l.b16 %v1518
  %v1527 = vunpack.c.l.b16 %v1519
  %v1528 = vpack.c.b16 %v1525, %v1524
  %v1529 = vpack.c.b16 %v1527, %v1526
  %v1533 = vsel %vm860, %v825, 0
  %v1536 = vsel %vm860, %v826, 0
  %1538 = vmatprep.subr.bf16.mxu0 0
  %1539 = vmatpush1.bf16.msra.mxu0 %v1528
  %1540 = vmatprep.subr.bf16.mxu0 0
  %1541 = vmatpush1.bf16.msra.mxu0 %v1529
  %1542 = vmatprep.subr.bf16.mxu0 0
  %1543 = vmatpush1.bf16.msra.mxu0 0
  %1544 = vmatprep.subr.bf16.mxu0 0
  %1545 = vmatpush1.bf16.msra.mxu0 0
  %1546 = vmatprep.subr.bf16.mxu0 0
  %1547 = vmatpush1.bf16.msra.mxu0 0
  %1548 = vmatprep.subr.bf16.mxu0 0
  %1549 = vmatpush1.bf16.msra.mxu0 0
  %1550 = vmatprep.subr.bf16.mxu0 0
  %1551 = vmatpush1.bf16.msra.mxu0 0
  %1552 = vmatprep.subr.bf16.mxu0 0
  %1553 = vmatpush1.bf16.msra.mxu0 0
  %1554 = vmatprep.subr.bf16.mxu0 0
  %1555 = vmatpush1.bf16.msra.mxu0 0
  %1556 = vmatprep.subr.bf16.mxu0 0
  %1557 = vmatpush1.bf16.msra.mxu0 0
  %1558 = vmatprep.subr.bf16.mxu0 0
  %1559 = vmatpush1.bf16.msra.mxu0 0
  %1560 = vmatprep.subr.bf16.mxu0 0
  %1561 = vmatpush1.bf16.msra.mxu0 0
  %1562 = vmatprep.subr.bf16.mxu0 0
  %1563 = vmatpush1.bf16.msra.mxu0 0
  %1564 = vmatprep.subr.bf16.mxu0 0
  %1565 = vmatpush1.bf16.msra.mxu0 0
  %1566 = vmatprep.subr.bf16.mxu0 0
  %1567 = vmatpush1.bf16.msra.mxu0 0
  %1568 = vmatprep.subr.bf16.mxu0 0
  %1569 = vmatpush1.bf16.msra.mxu0 0
  %1570 = vmatprep.mubr.bf16.mxu0 0
  %1571 = vmatmul.mubr.bf16.gmra.mrb[0].mxu0 %v1533
  %v1572 = vpop.f32.mrb[0].mxu0
  %v1573 = vadd.f32 0.0, %v1572
  %v1574 = vpop.f32.mrb[0].mxu0
  %v1575 = vpop.f32.mrb[0].mxu0
  %v1576 = vadd.f32 0.0, %v1575
  %v1577 = vpop.f32.mrb[0].mxu0
  %1578 = vmatprep.mubr.bf16.mxu0 0
  %1579 = vmatmul.mubr.bf16.gmra.mrb[0].mxu0 %v1536
  %v1580 = vpop.f32.mrb[0].mxu0
  %v1581 = vadd.f32 0.0, %v1580
  %v1582 = vpop.f32.mrb[0].mxu0
  %v1583 = vpop.f32.mrb[0].mxu0
  %v1584 = vadd.f32 0.0, %v1583
  %v1585 = vpop.f32.mrb[0].mxu0
  %1586 = vdwg.mxu0
  %v1587 = vadd.f32 %v1511, %v1573
  %v1588 = vadd.f32 %v1512, %v1576
  %v1589 = vadd.f32 %v1513, %v1581
  %v1590 = vadd.f32 %v1514, %v1584
  %s1591 = scalar_lea.vmem %s4, 160
  %v1592 = vld [vmem:[%s1591] sm:$0xf]
  %v1593 = vld [vmem:[%s1591 + $0x4] sm:$0xf]
  %v1594 = vld [vmem:[%s1591 + $0x8] sm:$0xf]
  %v1595 = vld [vmem:[%s1591 + $0xc] sm:$0xf]
  %v1600 = vunpack.c.l.b16 %v1592
  %v1601 = vunpack.c.l.b16 %v1593
  %v1602 = vunpack.c.l.b16 %v1594
  %v1603 = vunpack.c.l.b16 %v1595
  %v1604 = vpack.c.b16 %v1601, %v1600
  %v1605 = vpack.c.b16 %v1603, %v1602
  %v1609 = vsel %vm860, %v827, 0
  %v1612 = vsel %vm860, %v828, 0
  %1614 = vmatprep.subr.bf16.mxu0 0
  %1615 = vmatpush1.bf16.msra.mxu0 %v1604
  %1616 = vmatprep.subr.bf16.mxu0 0
  %1617 = vmatpush1.bf16.msra.mxu0 %v1605
  %1618 = vmatprep.subr.bf16.mxu0 0
  %1619 = vmatpush1.bf16.msra.mxu0 0
  %1620 = vmatprep.subr.bf16.mxu0 0
  %1621 = vmatpush1.bf16.msra.mxu0 0
  %1622 = vmatprep.subr.bf16.mxu0 0
  %1623 = vmatpush1.bf16.msra.mxu0 0
  %1624 = vmatprep.subr.bf16.mxu0 0
  %1625 = vmatpush1.bf16.msra.mxu0 0
  %1626 = vmatprep.subr.bf16.mxu0 0
  %1627 = vmatpush1.bf16.msra.mxu0 0
  %1628 = vmatprep.subr.bf16.mxu0 0
  %1629 = vmatpush1.bf16.msra.mxu0 0
  %1630 = vmatprep.subr.bf16.mxu0 0
  %1631 = vmatpush1.bf16.msra.mxu0 0
  %1632 = vmatprep.subr.bf16.mxu0 0
  %1633 = vmatpush1.bf16.msra.mxu0 0
  %1634 = vmatprep.subr.bf16.mxu0 0
  %1635 = vmatpush1.bf16.msra.mxu0 0
  %1636 = vmatprep.subr.bf16.mxu0 0
  %1637 = vmatpush1.bf16.msra.mxu0 0
  %1638 = vmatprep.subr.bf16.mxu0 0
  %1639 = vmatpush1.bf16.msra.mxu0 0
  %1640 = vmatprep.subr.bf16.mxu0 0
  %1641 = vmatpush1.bf16.msra.mxu0 0
  %1642 = vmatprep.subr.bf16.mxu0 0
  %1643 = vmatpush1.bf16.msra.mxu0 0
  %1644 = vmatprep.subr.bf16.mxu0 0
  %1645 = vmatpush1.bf16.msra.mxu0 0
  %1646 = vmatprep.mubr.bf16.mxu0 0
  %1647 = vmatmul.mubr.bf16.gmra.mrb[0].mxu0 %v1609
  %v1648 = vpop.f32.mrb[0].mxu0
  %v1649 = vadd.f32 0.0, %v1648
  %v1650 = vpop.f32.mrb[0].mxu0
  %v1651 = vpop.f32.mrb[0].mxu0
  %v1652 = vadd.f32 0.0, %v1651
  %v1653 = vpop.f32.mrb[0].mxu0
  %1654 = vmatprep.mubr.bf16.mxu0 0
  %1655 = vmatmul.mubr.bf16.gmra.mrb[0].mxu0 %v1612
  %v1656 = vpop.f32.mrb[0].mxu0
  %v1657 = vadd.f32 0.0, %v1656
  %v1658 = vpop.f32.mrb[0].mxu0
  %v1659 = vpop.f32.mrb[0].mxu0
  %v1660 = vadd.f32 0.0, %v1659
  %v1661 = vpop.f32.mrb[0].mxu0
  %1662 = vdwg.mxu0
  %v1663 = vadd.f32 %v1587, %v1649
  %v1664 = vadd.f32 %v1588, %v1652
  %v1665 = vadd.f32 %v1589, %v1657
  %v1666 = vadd.f32 %v1590, %v1660
  %s1667 = scalar_lea.vmem %s4, 176
  %v1668 = vld [vmem:[%s1667] sm:$0xf]
  %v1669 = vld [vmem:[%s1667 + $0x4] sm:$0xf]
  %v1670 = vld [vmem:[%s1667 + $0x8] sm:$0xf]
  %v1671 = vld [vmem:[%s1667 + $0xc] sm:$0xf]
  %v1676 = vunpack.c.l.b16 %v1668
  %v1677 = vunpack.c.l.b16 %v1669
  %v1678 = vunpack.c.l.b16 %v1670
  %v1679 = vunpack.c.l.b16 %v1671
  %v1680 = vpack.c.b16 %v1677, %v1676
  %v1681 = vpack.c.b16 %v1679, %v1678
  %v1685 = vsel %vm860, %v829, 0
  %v1688 = vsel %vm860, %v830, 0
  %1690 = vmatprep.subr.bf16.mxu0 0
  %1691 = vmatpush1.bf16.msra.mxu0 %v1680
  %1692 = vmatprep.subr.bf16.mxu0 0
  %1693 = vmatpush1.bf16.msra.mxu0 %v1681
  %1694 = vmatprep.subr.bf16.mxu0 0
  %1695 = vmatpush1.bf16.msra.mxu0 0
  %1696 = vmatprep.subr.bf16.mxu0 0
  %1697 = vmatpush1.bf16.msra.mxu0 0
  %1698 = vmatprep.subr.bf16.mxu0 0
  %1699 = vmatpush1.bf16.msra.mxu0 0
  %1700 = vmatprep.subr.bf16.mxu0 0
  %1701 = vmatpush1.bf16.msra.mxu0 0
  %1702 = vmatprep.subr.bf16.mxu0 0
  %1703 = vmatpush1.bf16.msra.mxu0 0
  %1704 = vmatprep.subr.bf16.mxu0 0
  %1705 = vmatpush1.bf16.msra.mxu0 0
  %1706 = vmatprep.subr.bf16.mxu0 0
  %1707 = vmatpush1.bf16.msra.mxu0 0
  %1708 = vmatprep.subr.bf16.mxu0 0
  %1709 = vmatpush1.bf16.msra.mxu0 0
  %1710 = vmatprep.subr.bf16.mxu0 0
  %1711 = vmatpush1.bf16.msra.mxu0 0
  %1712 = vmatprep.subr.bf16.mxu0 0
  %1713 = vmatpush1.bf16.msra.mxu0 0
  %1714 = vmatprep.subr.bf16.mxu0 0
  %1715 = vmatpush1.bf16.msra.mxu0 0
  %1716 = vmatprep.subr.bf16.mxu0 0
  %1717 = vmatpush1.bf16.msra.mxu0 0
  %1718 = vmatprep.subr.bf16.mxu0 0
  %1719 = vmatpush1.bf16.msra.mxu0 0
  %1720 = vmatprep.subr.bf16.mxu0 0
  %1721 = vmatpush1.bf16.msra.mxu0 0
  %1722 = vmatprep.mubr.bf16.mxu0 0
  %1723 = vmatmul.mubr.bf16.gmra.mrb[0].mxu0 %v1685
  %v1724 = vpop.f32.mrb[0].mxu0
  %v1725 = vadd.f32 0.0, %v1724
  %v1726 = vpop.f32.mrb[0].mxu0
  %v1727 = vpop.f32.mrb[0].mxu0
  %v1728 = vadd.f32 0.0, %v1727
  %v1729 = vpop.f32.mrb[0].mxu0
  %1730 = vmatprep.mubr.bf16.mxu0 0
  %1731 = vmatmul.mubr.bf16.gmra.mrb[0].mxu0 %v1688
  %v1732 = vpop.f32.mrb[0].mxu0
  %v1733 = vadd.f32 0.0, %v1732
  %v1734 = vpop.f32.mrb[0].mxu0
  %v1735 = vpop.f32.mrb[0].mxu0
  %v1736 = vadd.f32 0.0, %v1735
  %v1737 = vpop.f32.mrb[0].mxu0
  %1738 = vdwg.mxu0
  %v1739 = vadd.f32 %v1663, %v1725
  %v1740 = vadd.f32 %v1664, %v1728
  %v1741 = vadd.f32 %v1665, %v1733
  %v1742 = vadd.f32 %v1666, %v1736
  %s1743 = scalar_lea.vmem %s4, 192
  %v1744 = vld [vmem:[%s1743] sm:$0xf]
  %v1745 = vld [vmem:[%s1743 + $0x4] sm:$0xf]
  %v1746 = vld [vmem:[%s1743 + $0x8] sm:$0xf]
  %v1747 = vld [vmem:[%s1743 + $0xc] sm:$0xf]
  %v1752 = vunpack.c.l.b16 %v1744
  %v1753 = vunpack.c.l.b16 %v1745
  %v1754 = vunpack.c.l.b16 %v1746
  %v1755 = vunpack.c.l.b16 %v1747
  %v1756 = vpack.c.b16 %v1753, %v1752
  %v1757 = vpack.c.b16 %v1755, %v1754
  %v1761 = vsel %vm860, %v831, 0
  %v1764 = vsel %vm860, %v832, 0
  %1766 = vmatprep.subr.bf16.mxu0 0
  %1767 = vmatpush1.bf16.msra.mxu0 %v1756
  %1768 = vmatprep.subr.bf16.mxu0 0
  %1769 = vmatpush1.bf16.msra.mxu0 %v1757
  %1770 = vmatprep.subr.bf16.mxu0 0
  %1771 = vmatpush1.bf16.msra.mxu0 0
  %1772 = vmatprep.subr.bf16.mxu0 0
  %1773 = vmatpush1.bf16.msra.mxu0 0
  %1774 = vmatprep.subr.bf16.mxu0 0
  %1775 = vmatpush1.bf16.msra.mxu0 0
  %1776 = vmatprep.subr.bf16.mxu0 0
  %1777 = vmatpush1.bf16.msra.mxu0 0
  %1778 = vmatprep.subr.bf16.mxu0 0
  %1779 = vmatpush1.bf16.msra.mxu0 0
  %1780 = vmatprep.subr.bf16.mxu0 0
  %1781 = vmatpush1.bf16.msra.mxu0 0
  %1782 = vmatprep.subr.bf16.mxu0 0
  %1783 = vmatpush1.bf16.msra.mxu0 0
  %1784 = vmatprep.subr.bf16.mxu0 0
  %1785 = vmatpush1.bf16.msra.mxu0 0
  %1786 = vmatprep.subr.bf16.mxu0 0
  %1787 = vmatpush1.bf16.msra.mxu0 0
  %1788 = vmatprep.subr.bf16.mxu0 0
  %1789 = vmatpush1.bf16.msra.mxu0 0
  %1790 = vmatprep.subr.bf16.mxu0 0
  %1791 = vmatpush1.bf16.msra.mxu0 0
  %1792 = vmatprep.subr.bf16.mxu0 0
  %1793 = vmatpush1.bf16.msra.mxu0 0
  %1794 = vmatprep.subr.bf16.mxu0 0
  %1795 = vmatpush1.bf16.msra.mxu0 0
  %1796 = vmatprep.subr.bf16.mxu0 0
  %1797 = vmatpush1.bf16.msra.mxu0 0
  %1798 = vmatprep.mubr.bf16.mxu0 0
  %1799 = vmatmul.mubr.bf16.gmra.mrb[0].mxu0 %v1761
  %v1800 = vpop.f32.mrb[0].mxu0
  %v1801 = vadd.f32 0.0, %v1800
  %v1802 = vpop.f32.mrb[0].mxu0
  %v1803 = vpop.f32.mrb[0].mxu0
  %v1804 = vadd.f32 0.0, %v1803
  %v1805 = vpop.f32.mrb[0].mxu0
  %1806 = vmatprep.mubr.bf16.mxu0 0
  %1807 = vmatmul.mubr.bf16.gmra.mrb[0].mxu0 %v1764
  %v1808 = vpop.f32.mrb[0].mxu0
  %v1809 = vadd.f32 0.0, %v1808
  %v1810 = vpop.f32.mrb[0].mxu0
  %v1811 = vpop.f32.mrb[0].mxu0
  %v1812 = vadd.f32 0.0, %v1811
  %v1813 = vpop.f32.mrb[0].mxu0
  %1814 = vdwg.mxu0
  %v1815 = vadd.f32 %v1739, %v1801
  %v1816 = vadd.f32 %v1740, %v1804
  %v1817 = vadd.f32 %v1741, %v1809
  %v1818 = vadd.f32 %v1742, %v1812
  %s1819 = scalar_lea.vmem %s4, 208
  %v1820 = vld [vmem:[%s1819] sm:$0xf]
  %v1821 = vld [vmem:[%s1819 + $0x4] sm:$0xf]
  %v1822 = vld [vmem:[%s1819 + $0x8] sm:$0xf]
  %v1823 = vld [vmem:[%s1819 + $0xc] sm:$0xf]
  %v1828 = vunpack.c.l.b16 %v1820
  %v1829 = vunpack.c.l.b16 %v1821
  %v1830 = vunpack.c.l.b16 %v1822
  %v1831 = vunpack.c.l.b16 %v1823
  %v1832 = vpack.c.b16 %v1829, %v1828
  %v1833 = vpack.c.b16 %v1831, %v1830
  %v1837 = vsel %vm860, %v833, 0
  %v1840 = vsel %vm860, %v834, 0
  %1842 = vmatprep.subr.bf16.mxu0 0
  %1843 = vmatpush1.bf16.msra.mxu0 %v1832
  %1844 = vmatprep.subr.bf16.mxu0 0
  %1845 = vmatpush1.bf16.msra.mxu0 %v1833
  %1846 = vmatprep.subr.bf16.mxu0 0
  %1847 = vmatpush1.bf16.msra.mxu0 0
  %1848 = vmatprep.subr.bf16.mxu0 0
  %1849 = vmatpush1.bf16.msra.mxu0 0
  %1850 = vmatprep.subr.bf16.mxu0 0
  %1851 = vmatpush1.bf16.msra.mxu0 0
  %1852 = vmatprep.subr.bf16.mxu0 0
  %1853 = vmatpush1.bf16.msra.mxu0 0
  %1854 = vmatprep.subr.bf16.mxu0 0
  %1855 = vmatpush1.bf16.msra.mxu0 0
  %1856 = vmatprep.subr.bf16.mxu0 0
  %1857 = vmatpush1.bf16.msra.mxu0 0
  %1858 = vmatprep.subr.bf16.mxu0 0
  %1859 = vmatpush1.bf16.msra.mxu0 0
  %1860 = vmatprep.subr.bf16.mxu0 0
  %1861 = vmatpush1.bf16.msra.mxu0 0
  %1862 = vmatprep.subr.bf16.mxu0 0
  %1863 = vmatpush1.bf16.msra.mxu0 0
  %1864 = vmatprep.subr.bf16.mxu0 0
  %1865 = vmatpush1.bf16.msra.mxu0 0
  %1866 = vmatprep.subr.bf16.mxu0 0
  %1867 = vmatpush1.bf16.msra.mxu0 0
  %1868 = vmatprep.subr.bf16.mxu0 0
  %1869 = vmatpush1.bf16.msra.mxu0 0
  %1870 = vmatprep.subr.bf16.mxu0 0
  %1871 = vmatpush1.bf16.msra.mxu0 0
  %1872 = vmatprep.subr.bf16.mxu0 0
  %1873 = vmatpush1.bf16.msra.mxu0 0
  %1874 = vmatprep.mubr.bf16.mxu0 0
  %1875 = vmatmul.mubr.bf16.gmra.mrb[0].mxu0 %v1837
  %v1876 = vpop.f32.mrb[0].mxu0
  %v1877 = vadd.f32 0.0, %v1876
  %v1878 = vpop.f32.mrb[0].mxu0
  %v1879 = vpop.f32.mrb[0].mxu0
  %v1880 = vadd.f32 0.0, %v1879
  %v1881 = vpop.f32.mrb[0].mxu0
  %1882 = vmatprep.mubr.bf16.mxu0 0
  %1883 = vmatmul.mubr.bf16.gmra.mrb[0].mxu0 %v1840
  %v1884 = vpop.f32.mrb[0].mxu0
  %v1885 = vadd.f32 0.0, %v1884
  %v1886 = vpop.f32.mrb[0].mxu0
  %v1887 = vpop.f32.mrb[0].mxu0
  %v1888 = vadd.f32 0.0, %v1887
  %v1889 = vpop.f32.mrb[0].mxu0
  %1890 = vdwg.mxu0
  %v1891 = vadd.f32 %v1815, %v1877
  %v1892 = vadd.f32 %v1816, %v1880
  %v1893 = vadd.f32 %v1817, %v1885
  %v1894 = vadd.f32 %v1818, %v1888
  %s1895 = scalar_lea.vmem %s4, 224
  %v1896 = vld [vmem:[%s1895] sm:$0xf]
  %v1897 = vld [vmem:[%s1895 + $0x4] sm:$0xf]
  %v1898 = vld [vmem:[%s1895 + $0x8] sm:$0xf]
  %v1899 = vld [vmem:[%s1895 + $0xc] sm:$0xf]
  %v1904 = vunpack.c.l.b16 %v1896
  %v1905 = vunpack.c.l.b16 %v1897
  %v1906 = vunpack.c.l.b16 %v1898
  %v1907 = vunpack.c.l.b16 %v1899
  %v1908 = vpack.c.b16 %v1905, %v1904
  %v1909 = vpack.c.b16 %v1907, %v1906
  %v1913 = vsel %vm860, %v835, 0
  %v1916 = vsel %vm860, %v836, 0
  %1918 = vmatprep.subr.bf16.mxu0 0
  %1919 = vmatpush1.bf16.msra.mxu0 %v1908
  %1920 = vmatprep.subr.bf16.mxu0 0
  %1921 = vmatpush1.bf16.msra.mxu0 %v1909
  %1922 = vmatprep.subr.bf16.mxu0 0
  %1923 = vmatpush1.bf16.msra.mxu0 0
  %1924 = vmatprep.subr.bf16.mxu0 0
  %1925 = vmatpush1.bf16.msra.mxu0 0
  %1926 = vmatprep.subr.bf16.mxu0 0
  %1927 = vmatpush1.bf16.msra.mxu0 0
  %1928 = vmatprep.subr.bf16.mxu0 0
  %1929 = vmatpush1.bf16.msra.mxu0 0
  %1930 = vmatprep.subr.bf16.mxu0 0
  %1931 = vmatpush1.bf16.msra.mxu0 0
  %1932 = vmatprep.subr.bf16.mxu0 0
  %1933 = vmatpush1.bf16.msra.mxu0 0
  %1934 = vmatprep.subr.bf16.mxu0 0
  %1935 = vmatpush1.bf16.msra.mxu0 0
  %1936 = vmatprep.subr.bf16.mxu0 0
  %1937 = vmatpush1.bf16.msra.mxu0 0
  %1938 = vmatprep.subr.bf16.mxu0 0
  %1939 = vmatpush1.bf16.msra.mxu0 0
  %1940 = vmatprep.subr.bf16.mxu0 0
  %1941 = vmatpush1.bf16.msra.mxu0 0
  %1942 = vmatprep.subr.bf16.mxu0 0
  %1943 = vmatpush1.bf16.msra.mxu0 0
  %1944 = vmatprep.subr.bf16.mxu0 0
  %1945 = vmatpush1.bf16.msra.mxu0 0
  %1946 = vmatprep.subr.bf16.mxu0 0
  %1947 = vmatpush1.bf16.msra.mxu0 0
  %1948 = vmatprep.subr.bf16.mxu0 0
  %1949 = vmatpush1.bf16.msra.mxu0 0
  %1950 = vmatprep.mubr.bf16.mxu0 0
  %1951 = vmatmul.mubr.bf16.gmra.mrb[0].mxu0 %v1913
  %v1952 = vpop.f32.mrb[0].mxu0
  %v1953 = vadd.f32 0.0, %v1952
  %v1954 = vpop.f32.mrb[0].mxu0
  %v1955 = vpop.f32.mrb[0].mxu0
  %v1956 = vadd.f32 0.0, %v1955
  %v1957 = vpop.f32.mrb[0].mxu0
  %1958 = vmatprep.mubr.bf16.mxu0 0
  %1959 = vmatmul.mubr.bf16.gmra.mrb[0].mxu0 %v1916
  %v1960 = vpop.f32.mrb[0].mxu0
  %v1961 = vadd.f32 0.0, %v1960
  %v1962 = vpop.f32.mrb[0].mxu0
  %v1963 = vpop.f32.mrb[0].mxu0
  %v1964 = vadd.f32 0.0, %v1963
  %v1965 = vpop.f32.mrb[0].mxu0
  %1966 = vdwg.mxu0
  %v1967 = vadd.f32 %v1891, %v1953
  %v1968 = vadd.f32 %v1892, %v1956
  %v1969 = vadd.f32 %v1893, %v1961
  %v1970 = vadd.f32 %v1894, %v1964
  %s1971 = scalar_lea.vmem %s4, 240
  %v1972 = vld [vmem:[%s1971] sm:$0xf]
  %v1973 = vld [vmem:[%s1971 + $0x4] sm:$0xf]
  %v1974 = vld [vmem:[%s1971 + $0x8] sm:$0xf]
  %v1975 = vld [vmem:[%s1971 + $0xc] sm:$0xf]
  %v1980 = vunpack.c.l.b16 %v1972
  %v1981 = vunpack.c.l.b16 %v1973
  %v1982 = vunpack.c.l.b16 %v1974
  %v1983 = vunpack.c.l.b16 %v1975
  %v1984 = vpack.c.b16 %v1981, %v1980
  %v1985 = vpack.c.b16 %v1983, %v1982
  %v1989 = vsel %vm860, %v837, 0
  %v1992 = vsel %vm860, %v838, 0
  %1994 = vmatprep.subr.bf16.mxu0 0
  %1995 = vmatpush1.bf16.msra.mxu0 %v1984
  %1996 = vmatprep.subr.bf16.mxu0 0
  %1997 = vmatpush1.bf16.msra.mxu0 %v1985
  %1998 = vmatprep.subr.bf16.mxu0 0
  %1999 = vmatpush1.bf16.msra.mxu0 0
  %2000 = vmatprep.subr.bf16.mxu0 0
  %2001 = vmatpush1.bf16.msra.mxu0 0
  %2002 = vmatprep.subr.bf16.mxu0 0
  %2003 = vmatpush1.bf16.msra.mxu0 0
  %2004 = vmatprep.subr.bf16.mxu0 0
  %2005 = vmatpush1.bf16.msra.mxu0 0
  %2006 = vmatprep.subr.bf16.mxu0 0
  %2007 = vmatpush1.bf16.msra.mxu0 0
  %2008 = vmatprep.subr.bf16.mxu0 0
  %2009 = vmatpush1.bf16.msra.mxu0 0
  %2010 = vmatprep.subr.bf16.mxu0 0
  %2011 = vmatpush1.bf16.msra.mxu0 0
  %2012 = vmatprep.subr.bf16.mxu0 0
  %2013 = vmatpush1.bf16.msra.mxu0 0
  %2014 = vmatprep.subr.bf16.mxu0 0
  %2015 = vmatpush1.bf16.msra.mxu0 0
  %2016 = vmatprep.subr.bf16.mxu0 0
  %2017 = vmatpush1.bf16.msra.mxu0 0
  %2018 = vmatprep.subr.bf16.mxu0 0
  %2019 = vmatpush1.bf16.msra.mxu0 0
  %2020 = vmatprep.subr.bf16.mxu0 0
  %2021 = vmatpush1.bf16.msra.mxu0 0
  %2022 = vmatprep.subr.bf16.mxu0 0
  %2023 = vmatpush1.bf16.msra.mxu0 0
  %2024 = vmatprep.subr.bf16.mxu0 0
  %2025 = vmatpush1.bf16.msra.mxu0 0
  %2026 = vmatprep.mubr.bf16.mxu0 0
  %2027 = vmatmul.mubr.bf16.gmra.mrb[0].mxu0 %v1989
  %v2028 = vpop.f32.mrb[0].mxu0
  %v2029 = vadd.f32 0.0, %v2028
  %v2030 = vpop.f32.mrb[0].mxu0
  %v2031 = vpop.f32.mrb[0].mxu0
  %v2032 = vadd.f32 0.0, %v2031
  %v2033 = vpop.f32.mrb[0].mxu0
  %2034 = vmatprep.mubr.bf16.mxu0 0
  %2035 = vmatmul.mubr.bf16.gmra.mrb[0].mxu0 %v1992
  %v2036 = vpop.f32.mrb[0].mxu0
  %v2037 = vadd.f32 0.0, %v2036
  %v2038 = vpop.f32.mrb[0].mxu0
  %v2039 = vpop.f32.mrb[0].mxu0
  %v2040 = vadd.f32 0.0, %v2039
  %v2041 = vpop.f32.mrb[0].mxu0
  %2042 = vdwg.mxu0
  %v2043 = vadd.f32 %v1967, %v2029
  %v2044 = vadd.f32 %v1968, %v2032
  %v2045 = vadd.f32 %v1969, %v2037
  %v2046 = vadd.f32 %v1970, %v2040
  %v2047 = vld [vmem:[%s5] sm:$0x1]
  %v2049 = vlaneseq
  %v2050 = vshrl.u32 %v2049, 7
  %v2051 = vsub.s32 0, %v2050
  %v2052 = vrot.slane %v2047, %v2051
  %v2054 = vadd.f32 %v2043, %v2052
  %v2055 = vadd.f32 %v2044, %v2052
  %v2056 = vadd.f32 %v2045, %v2052
  %v2057 = vadd.f32 %v2046, %v2052
  %v2058 = vmax.f32 %v2054, 0.0
  %v2059 = vmax.f32 %v2055, 0.0
  %v2060 = vmax.f32 %v2056, 0.0
  %v2061 = vmax.f32 %v2057, 0.0
  %v2062 = vpack.c.bf16 %v2059, %v2058
  %v2063 = vpack.c.bf16 %v2061, %v2060
  %v2064 = vld [vmem:[%s6] sm:$0xf]
  %v2065 = vld [vmem:[%s6 + $0x4] sm:$0xf]
  %v2066 = vld [vmem:[%s6 + $0x8] sm:$0xf]
  %v2067 = vld [vmem:[%s6 + $0xc] sm:$0xf]
  %v2068 = vld [vmem:[%s6 + $0x10] sm:$0xf]
  %v2069 = vld [vmem:[%s6 + $0x14] sm:$0xf]
  %v2070 = vld [vmem:[%s6 + $0x18] sm:$0xf]
  %v2071 = vld [vmem:[%s6 + $0x1c] sm:$0xf]
  %v2072 = vld [vmem:[%s6 + $0x20] sm:$0xf]
  %v2073 = vld [vmem:[%s6 + $0x24] sm:$0xf]
  %v2074 = vld [vmem:[%s6 + $0x28] sm:$0xf]
  %v2075 = vld [vmem:[%s6 + $0x2c] sm:$0xf]
  %v2076 = vld [vmem:[%s6 + $0x30] sm:$0xf]
  %v2077 = vld [vmem:[%s6 + $0x34] sm:$0xf]
  %v2078 = vld [vmem:[%s6 + $0x38] sm:$0xf]
  %v2079 = vld [vmem:[%s6 + $0x3c] sm:$0xf]
  %v2080 = vld [vmem:[%s6 + $0x40] sm:$0xf]
  %v2081 = vld [vmem:[%s6 + $0x44] sm:$0xf]
  %v2082 = vld [vmem:[%s6 + $0x48] sm:$0xf]
  %v2083 = vld [vmem:[%s6 + $0x4c] sm:$0xf]
  %v2084 = vld [vmem:[%s6 + $0x50] sm:$0xf]
  %v2085 = vld [vmem:[%s6 + $0x54] sm:$0xf]
  %v2086 = vld [vmem:[%s6 + $0x58] sm:$0xf]
  %v2087 = vld [vmem:[%s6 + $0x5c] sm:$0xf]
  %v2088 = vld [vmem:[%s6 + $0x60] sm:$0xf]
  %v2089 = vld [vmem:[%s6 + $0x64] sm:$0xf]
  %v2090 = vld [vmem:[%s6 + $0x68] sm:$0xf]
  %v2091 = vld [vmem:[%s6 + $0x6c] sm:$0xf]
  %v2092 = vld [vmem:[%s6 + $0x70] sm:$0xf]
  %v2093 = vld [vmem:[%s6 + $0x74] sm:$0xf]
  %v2094 = vld [vmem:[%s6 + $0x78] sm:$0xf]
  %v2095 = vld [vmem:[%s6 + $0x7c] sm:$0xf]
  %v2096 = vld [vmem:[%s6 + $0x80] sm:$0xf]
  %v2097 = vld [vmem:[%s6 + $0x84] sm:$0xf]
  %v2098 = vld [vmem:[%s6 + $0x88] sm:$0xf]
  %v2099 = vld [vmem:[%s6 + $0x8c] sm:$0xf]
  %v2136 = vunpack.c.l.b16 %v2064
  %v2137 = vunpack.c.l.b16 %v2065
  %v2138 = vunpack.c.l.b16 %v2066
  %v2139 = vunpack.c.l.b16 %v2067
  %v2140 = vunpack.c.l.b16 %v2068
  %v2141 = vunpack.c.l.b16 %v2069
  %v2142 = vunpack.c.l.b16 %v2070
  %v2143 = vunpack.c.l.b16 %v2071
  %v2144 = vunpack.c.l.b16 %v2072
  %v2145 = vunpack.c.l.b16 %v2073
  %v2146 = vunpack.c.l.b16 %v2074
  %v2147 = vunpack.c.l.b16 %v2075
  %v2148 = vunpack.c.l.b16 %v2076
  %v2149 = vunpack.c.l.b16 %v2077
  %v2150 = vunpack.c.l.b16 %v2078
  %v2151 = vunpack.c.l.b16 %v2079
  %v2152 = vunpack.c.l.b16 %v2080
  %v2153 = vunpack.c.l.b16 %v2081
  %v2154 = vunpack.c.l.b16 %v2082
  %v2155 = vunpack.c.l.b16 %v2083
  %v2156 = vunpack.c.l.b16 %v2084
  %v2157 = vunpack.c.l.b16 %v2085
  %v2158 = vunpack.c.l.b16 %v2086
  %v2159 = vunpack.c.l.b16 %v2087
  %v2160 = vunpack.c.l.b16 %v2088
  %v2161 = vunpack.c.l.b16 %v2089
  %v2162 = vunpack.c.l.b16 %v2090
  %v2163 = vunpack.c.l.b16 %v2091
  %v2164 = vunpack.c.l.b16 %v2092
  %v2165 = vunpack.c.l.b16 %v2093
  %v2166 = vunpack.c.l.b16 %v2094
  %v2167 = vunpack.c.l.b16 %v2095
  %v2168 = vunpack.c.l.b16 %v2096
  %v2169 = vunpack.c.l.b16 %v2097
  %v2170 = vunpack.c.l.b16 %v2098
  %v2171 = vunpack.c.l.b16 %v2099
  %v2172 = vpack.c.b16 %v2137, %v2136
  %v2173 = vpack.c.b16 %v2139, %v2138
  %v2174 = vpack.c.b16 %v2141, %v2140
  %v2175 = vpack.c.b16 %v2143, %v2142
  %v2176 = vpack.c.b16 %v2145, %v2144
  %v2177 = vpack.c.b16 %v2147, %v2146
  %v2178 = vpack.c.b16 %v2149, %v2148
  %v2179 = vpack.c.b16 %v2151, %v2150
  %v2180 = vpack.c.b16 %v2153, %v2152
  %v2181 = vpack.c.b16 %v2155, %v2154
  %v2182 = vpack.c.b16 %v2157, %v2156
  %v2183 = vpack.c.b16 %v2159, %v2158
  %v2184 = vpack.c.b16 %v2161, %v2160
  %v2185 = vpack.c.b16 %v2163, %v2162
  %v2186 = vpack.c.b16 %v2165, %v2164
  %v2187 = vpack.c.b16 %v2167, %v2166
  %v2188 = vpack.c.b16 %v2169, %v2168
  %v2189 = vpack.c.b16 %v2171, %v2170
  %v2191 = vsel %vm860, %v2172, 0
  %v2194 = vsel %vm860, %v2173, 0
  %v2197 = vsel %vm860, %v2174, 0
  %v2200 = vsel %vm860, %v2175, 0
  %v2203 = vsel %vm860, %v2176, 0
  %v2206 = vsel %vm860, %v2177, 0
  %v2209 = vsel %vm860, %v2178, 0
  %v2212 = vsel %vm860, %v2179, 0
  %v2215 = vsel %vm860, %v2180, 0
  %v2218 = vsel %vm860, %v2181, 0
  %v2221 = vsel %vm860, %v2182, 0
  %v2224 = vsel %vm860, %v2183, 0
  %v2227 = vsel %vm860, %v2184, 0
  %v2230 = vsel %vm860, %v2185, 0
  %v2233 = vsel %vm860, %v2186, 0
  %v2236 = vsel %vm860, %v2187, 0
  %v2239 = vsel %vm860, %v2188, 0
  %v2242 = vsel %vm860, %v2189, 0
  %2244 = vmatprep.subr.bf16.mxu0 0
  %2245 = vmatpush1.bf16.msra.mxu0 %v2062
  %2246 = vmatprep.subr.bf16.mxu0 0
  %2247 = vmatpush1.bf16.msra.mxu0 %v2063
  %2248 = vmatprep.subr.bf16.mxu0 0
  %2249 = vmatpush1.bf16.msra.mxu0 0
  %2250 = vmatprep.subr.bf16.mxu0 0
  %2251 = vmatpush1.bf16.msra.mxu0 0
  %2252 = vmatprep.subr.bf16.mxu0 0
  %2253 = vmatpush1.bf16.msra.mxu0 0
  %2254 = vmatprep.subr.bf16.mxu0 0
  %2255 = vmatpush1.bf16.msra.mxu0 0
  %2256 = vmatprep.subr.bf16.mxu0 0
  %2257 = vmatpush1.bf16.msra.mxu0 0
  %2258 = vmatprep.subr.bf16.mxu0 0
  %2259 = vmatpush1.bf16.msra.mxu0 0
  %2260 = vmatprep.subr.bf16.mxu0 0
  %2261 = vmatpush1.bf16.msra.mxu0 0
  %2262 = vmatprep.subr.bf16.mxu0 0
  %2263 = vmatpush1.bf16.msra.mxu0 0
  %2264 = vmatprep.subr.bf16.mxu0 0
  %2265 = vmatpush1.bf16.msra.mxu0 0
  %2266 = vmatprep.subr.bf16.mxu0 0
  %2267 = vmatpush1.bf16.msra.mxu0 0
  %2268 = vmatprep.subr.bf16.mxu0 0
  %2269 = vmatpush1.bf16.msra.mxu0 0
  %2270 = vmatprep.subr.bf16.mxu0 0
  %2271 = vmatpush1.bf16.msra.mxu0 0
  %2272 = vmatprep.subr.bf16.mxu0 0
  %2273 = vmatpush1.bf16.msra.mxu0 0
  %2274 = vmatprep.subr.bf16.mxu0 0
  %2275 = vmatpush1.bf16.msra.mxu0 0
  %2276 = vmatprep.mubr.bf16.mxu0 0
  %2277 = vmatmul.mubr.bf16.gmra.mrb[0].mxu0 %v2191
  %v2278 = vpop.f32.mrb[0].mxu0
  %v2279 = vadd.f32 0.0, %v2278
  %v2280 = vpop.f32.mrb[0].mxu0
  %v2281 = vpop.f32.mrb[0].mxu0
  %v2282 = vadd.f32 0.0, %v2281
  %v2283 = vpop.f32.mrb[0].mxu0
  %2284 = vmatprep.mubr.bf16.mxu0 0
  %2285 = vmatmul.mubr.bf16.gmra.mrb[0].mxu0 %v2194
  %v2286 = vpop.f32.mrb[0].mxu0
  %v2287 = vadd.f32 0.0, %v2286
  %v2288 = vpop.f32.mrb[0].mxu0
  %v2289 = vpop.f32.mrb[0].mxu0
  %v2290 = vadd.f32 0.0, %v2289
  %v2291 = vpop.f32.mrb[0].mxu0
  %2292 = vmatprep.mubr.bf16.mxu0 0
  %2293 = vmatmul.mubr.bf16.gmra.mrb[0].mxu0 %v2197
  %v2294 = vpop.f32.mrb[0].mxu0
  %v2295 = vadd.f32 0.0, %v2294
  %v2296 = vpop.f32.mrb[0].mxu0
  %v2297 = vpop.f32.mrb[0].mxu0
  %v2298 = vadd.f32 0.0, %v2297
  %v2299 = vpop.f32.mrb[0].mxu0
  %2300 = vmatprep.mubr.bf16.mxu0 0
  %2301 = vmatmul.mubr.bf16.gmra.mrb[0].mxu0 %v2200
  %v2302 = vpop.f32.mrb[0].mxu0
  %v2303 = vadd.f32 0.0, %v2302
  %v2304 = vpop.f32.mrb[0].mxu0
  %v2305 = vpop.f32.mrb[0].mxu0
  %v2306 = vadd.f32 0.0, %v2305
  %v2307 = vpop.f32.mrb[0].mxu0
  %2308 = vmatprep.mubr.bf16.mxu0 0
  %2309 = vmatmul.mubr.bf16.gmra.mrb[0].mxu0 %v2203
  %v2310 = vpop.f32.mrb[0].mxu0
  %v2311 = vadd.f32 0.0, %v2310
  %v2312 = vpop.f32.mrb[0].mxu0
  %v2313 = vpop.f32.mrb[0].mxu0
  %v2314 = vadd.f32 0.0, %v2313
  %v2315 = vpop.f32.mrb[0].mxu0
  %2316 = vmatprep.mubr.bf16.mxu0 0
  %2317 = vmatmul.mubr.bf16.gmra.mrb[0].mxu0 %v2206
  %v2318 = vpop.f32.mrb[0].mxu0
  %v2319 = vadd.f32 0.0, %v2318
  %v2320 = vpop.f32.mrb[0].mxu0
  %v2321 = vpop.f32.mrb[0].mxu0
  %v2322 = vadd.f32 0.0, %v2321
  %v2323 = vpop.f32.mrb[0].mxu0
  %2324 = vmatprep.mubr.bf16.mxu0 0
  %2325 = vmatmul.mubr.bf16.gmra.mrb[0].mxu0 %v2209
  %v2326 = vpop.f32.mrb[0].mxu0
  %v2327 = vadd.f32 0.0, %v2326
  %v2328 = vpop.f32.mrb[0].mxu0
  %v2329 = vpop.f32.mrb[0].mxu0
  %v2330 = vadd.f32 0.0, %v2329
  %v2331 = vpop.f32.mrb[0].mxu0
  %2332 = vmatprep.mubr.bf16.mxu0 0
  %2333 = vmatmul.mubr.bf16.gmra.mrb[0].mxu0 %v2212
  %v2334 = vpop.f32.mrb[0].mxu0
  %v2335 = vadd.f32 0.0, %v2334
  %v2336 = vpop.f32.mrb[0].mxu0
  %v2337 = vpop.f32.mrb[0].mxu0
  %v2338 = vadd.f32 0.0, %v2337
  %v2339 = vpop.f32.mrb[0].mxu0
  %2340 = vmatprep.mubr.bf16.mxu0 0
  %2341 = vmatmul.mubr.bf16.gmra.mrb[0].mxu0 %v2215
  %v2342 = vpop.f32.mrb[0].mxu0
  %v2343 = vadd.f32 0.0, %v2342
  %v2344 = vpop.f32.mrb[0].mxu0
  %v2345 = vpop.f32.mrb[0].mxu0
  %v2346 = vadd.f32 0.0, %v2345
  %v2347 = vpop.f32.mrb[0].mxu0
  %2348 = vmatprep.mubr.bf16.mxu0 0
  %2349 = vmatmul.mubr.bf16.gmra.mrb[0].mxu0 %v2218
  %v2350 = vpop.f32.mrb[0].mxu0
  %v2351 = vadd.f32 0.0, %v2350
  %v2352 = vpop.f32.mrb[0].mxu0
  %v2353 = vpop.f32.mrb[0].mxu0
  %v2354 = vadd.f32 0.0, %v2353
  %v2355 = vpop.f32.mrb[0].mxu0
  %2356 = vmatprep.mubr.bf16.mxu0 0
  %2357 = vmatmul.mubr.bf16.gmra.mrb[0].mxu0 %v2221
  %v2358 = vpop.f32.mrb[0].mxu0
  %v2359 = vadd.f32 0.0, %v2358
  %v2360 = vpop.f32.mrb[0].mxu0
  %v2361 = vpop.f32.mrb[0].mxu0
  %v2362 = vadd.f32 0.0, %v2361
  %v2363 = vpop.f32.mrb[0].mxu0
  %2364 = vmatprep.mubr.bf16.mxu0 0
  %2365 = vmatmul.mubr.bf16.gmra.mrb[0].mxu0 %v2224
  %v2366 = vpop.f32.mrb[0].mxu0
  %v2367 = vadd.f32 0.0, %v2366
  %v2368 = vpop.f32.mrb[0].mxu0
  %v2369 = vpop.f32.mrb[0].mxu0
  %v2370 = vadd.f32 0.0, %v2369
  %v2371 = vpop.f32.mrb[0].mxu0
  %2372 = vmatprep.mubr.bf16.mxu0 0
  %2373 = vmatmul.mubr.bf16.gmra.mrb[0].mxu0 %v2227
  %v2374 = vpop.f32.mrb[0].mxu0
  %v2375 = vadd.f32 0.0, %v2374
  %v2376 = vpop.f32.mrb[0].mxu0
  %v2377 = vpop.f32.mrb[0].mxu0
  %v2378 = vadd.f32 0.0, %v2377
  %v2379 = vpop.f32.mrb[0].mxu0
  %2380 = vmatprep.mubr.bf16.mxu0 0
  %2381 = vmatmul.mubr.bf16.gmra.mrb[0].mxu0 %v2230
  %v2382 = vpop.f32.mrb[0].mxu0
  %v2383 = vadd.f32 0.0, %v2382
  %v2384 = vpop.f32.mrb[0].mxu0
  %v2385 = vpop.f32.mrb[0].mxu0
  %v2386 = vadd.f32 0.0, %v2385
  %v2387 = vpop.f32.mrb[0].mxu0
  %2388 = vmatprep.mubr.bf16.mxu0 0
  %2389 = vmatmul.mubr.bf16.gmra.mrb[0].mxu0 %v2233
  %v2390 = vpop.f32.mrb[0].mxu0
  %v2391 = vadd.f32 0.0, %v2390
  %v2392 = vpop.f32.mrb[0].mxu0
  %v2393 = vpop.f32.mrb[0].mxu0
  %v2394 = vadd.f32 0.0, %v2393
  %v2395 = vpop.f32.mrb[0].mxu0
  %2396 = vmatprep.mubr.bf16.mxu0 0
  %2397 = vmatmul.mubr.bf16.gmra.mrb[0].mxu0 %v2236
  %v2398 = vpop.f32.mrb[0].mxu0
  %v2399 = vadd.f32 0.0, %v2398
  %v2400 = vpop.f32.mrb[0].mxu0
  %v2401 = vpop.f32.mrb[0].mxu0
  %v2402 = vadd.f32 0.0, %v2401
  %v2403 = vpop.f32.mrb[0].mxu0
  %2404 = vmatprep.mubr.bf16.mxu0 0
  %2405 = vmatmul.mubr.bf16.gmra.mrb[0].mxu0 %v2239
  %v2406 = vpop.f32.mrb[0].mxu0
  %v2407 = vadd.f32 0.0, %v2406
  %v2408 = vpop.f32.mrb[0].mxu0
  %v2409 = vpop.f32.mrb[0].mxu0
  %v2410 = vadd.f32 0.0, %v2409
  %v2411 = vpop.f32.mrb[0].mxu0
  %2412 = vmatprep.mubr.bf16.mxu0 0
  %2413 = vmatmul.mubr.bf16.gmra.mrb[0].mxu0 %v2242
  %v2414 = vpop.f32.mrb[0].mxu0
  %v2415 = vadd.f32 0.0, %v2414
  %v2416 = vpop.f32.mrb[0].mxu0
  %v2417 = vpop.f32.mrb[0].mxu0
  %v2418 = vadd.f32 0.0, %v2417
  %v2419 = vpop.f32.mrb[0].mxu0
  %2420 = vdwg.mxu0
  %v2421 = vpack.c.bf16 %v2282, %v2279
  %v2422 = vpack.c.bf16 %v2290, %v2287
  %v2423 = vpack.c.bf16 %v2298, %v2295
  %v2424 = vpack.c.bf16 %v2306, %v2303
  %v2425 = vpack.c.bf16 %v2314, %v2311
  %v2426 = vpack.c.bf16 %v2322, %v2319
  %v2427 = vpack.c.bf16 %v2330, %v2327
  %v2428 = vpack.c.bf16 %v2338, %v2335
  %v2429 = vpack.c.bf16 %v2346, %v2343
  %v2430 = vpack.c.bf16 %v2354, %v2351
  %v2431 = vpack.c.bf16 %v2362, %v2359
  %v2432 = vpack.c.bf16 %v2370, %v2367
  %v2433 = vpack.c.bf16 %v2378, %v2375
  %v2434 = vpack.c.bf16 %v2386, %v2383
  %v2435 = vpack.c.bf16 %v2394, %v2391
  %v2436 = vpack.c.bf16 %v2402, %v2399
  %v2437 = vpack.c.bf16 %v2410, %v2407
  %v2438 = vpack.c.bf16 %v2418, %v2415
  %v2439 = vld [vmem:[%s7] sm:$0xf]
  %v2440 = vld [vmem:[%s7 + $0x4] sm:$0xf]
  %v2441 = vld [vmem:[%s7 + $0x8] sm:$0xf]
  %v2442 = vld [vmem:[%s7 + $0xc] sm:$0xf]
  %s2443 = scalar_lea.vmem %s7, 16
  %v2444 = vld [vmem:[%s2443] sm:$0xf]
  %v2445 = vld [vmem:[%s2443 + $0x4] sm:$0xf]
  %v2446 = vld [vmem:[%s2443 + $0x8] sm:$0xf]
  %v2447 = vld [vmem:[%s2443 + $0xc] sm:$0xf]
  %v2452 = vunpack.c.l.b16 %v2444
  %v2453 = vunpack.c.l.b16 %v2445
  %v2454 = vunpack.c.l.b16 %v2446
  %v2455 = vunpack.c.l.b16 %v2447
  %v2456 = vpack.c.b16 %v2453, %v2452
  %v2457 = vpack.c.b16 %v2455, %v2454
  %v2461 = vsel %vm860, %v2423, 0
  %v2464 = vsel %vm860, %v2424, 0
  %2466 = vmatprep.subr.bf16.mxu0 0
  %2467 = vmatpush1.bf16.msra.mxu0 %v2456
  %2468 = vmatprep.subr.bf16.mxu0 0
  %2469 = vmatpush1.bf16.msra.mxu0 %v2457
  %2470 = vmatprep.subr.bf16.mxu0 0
  %2471 = vmatpush1.bf16.msra.mxu0 0
  %2472 = vmatprep.subr.bf16.mxu0 0
  %2473 = vmatpush1.bf16.msra.mxu0 0
  %2474 = vmatprep.subr.bf16.mxu0 0
  %2475 = vmatpush1.bf16.msra.mxu0 0
  %2476 = vmatprep.subr.bf16.mxu0 0
  %2477 = vmatpush1.bf16.msra.mxu0 0
  %2478 = vmatprep.subr.bf16.mxu0 0
  %2479 = vmatpush1.bf16.msra.mxu0 0
  %2480 = vmatprep.subr.bf16.mxu0 0
  %2481 = vmatpush1.bf16.msra.mxu0 0
  %2482 = vmatprep.subr.bf16.mxu0 0
  %2483 = vmatpush1.bf16.msra.mxu0 0
  %2484 = vmatprep.subr.bf16.mxu0 0
  %2485 = vmatpush1.bf16.msra.mxu0 0
  %2486 = vmatprep.subr.bf16.mxu0 0
  %2487 = vmatpush1.bf16.msra.mxu0 0
  %2488 = vmatprep.subr.bf16.mxu0 0
  %2489 = vmatpush1.bf16.msra.mxu0 0
  %2490 = vmatprep.subr.bf16.mxu0 0
  %2491 = vmatpush1.bf16.msra.mxu0 0
  %2492 = vmatprep.subr.bf16.mxu0 0
  %2493 = vmatpush1.bf16.msra.mxu0 0
  %2494 = vmatprep.subr.bf16.mxu0 0
  %2495 = vmatpush1.bf16.msra.mxu0 0
  %2496 = vmatprep.subr.bf16.mxu0 0
  %2497 = vmatpush1.bf16.msra.mxu0 0
  %2498 = vmatprep.mubr.bf16.mxu0 0
  %2499 = vmatmul.mubr.bf16.gmra.mrb[0].mxu0 %v2461
  %v2500 = vpop.f32.mrb[0].mxu0
  %v2501 = vadd.f32 0.0, %v2500
  %v2502 = vpop.f32.mrb[0].mxu0
  %v2503 = vpop.f32.mrb[0].mxu0
  %v2504 = vadd.f32 0.0, %v2503
  %v2505 = vpop.f32.mrb[0].mxu0
  %2506 = vmatprep.mubr.bf16.mxu0 0
  %2507 = vmatmul.mubr.bf16.gmra.mrb[0].mxu0 %v2464
  %v2508 = vpop.f32.mrb[0].mxu0
  %v2509 = vadd.f32 0.0, %v2508
  %v2510 = vpop.f32.mrb[0].mxu0
  %v2511 = vpop.f32.mrb[0].mxu0
  %v2512 = vadd.f32 0.0, %v2511
  %v2513 = vpop.f32.mrb[0].mxu0
  %2514 = vdwg.mxu0
  %v2519 = vunpack.c.l.b16 %v2439
  %v2520 = vunpack.c.l.b16 %v2440
  %v2521 = vunpack.c.l.b16 %v2441
  %v2522 = vunpack.c.l.b16 %v2442
  %v2523 = vpack.c.b16 %v2520, %v2519
  %v2524 = vpack.c.b16 %v2522, %v2521
  %v2528 = vsel %vm860, %v2421, 0
  %v2531 = vsel %vm860, %v2422, 0
  %2533 = vmatprep.subr.bf16.mxu0 0
  %2534 = vmatpush1.bf16.msra.mxu0 %v2523
  %2535 = vmatprep.subr.bf16.mxu0 0
  %2536 = vmatpush1.bf16.msra.mxu0 %v2524
  %2537 = vmatprep.subr.bf16.mxu0 0
  %2538 = vmatpush1.bf16.msra.mxu0 0
  %2539 = vmatprep.subr.bf16.mxu0 0
  %2540 = vmatpush1.bf16.msra.mxu0 0
  %2541 = vmatprep.subr.bf16.mxu0 0
  %2542 = vmatpush1.bf16.msra.mxu0 0
  %2543 = vmatprep.subr.bf16.mxu0 0
  %2544 = vmatpush1.bf16.msra.mxu0 0
  %2545 = vmatprep.subr.bf16.mxu0 0
  %2546 = vmatpush1.bf16.msra.mxu0 0
  %2547 = vmatprep.subr.bf16.mxu0 0
  %2548 = vmatpush1.bf16.msra.mxu0 0
  %2549 = vmatprep.subr.bf16.mxu0 0
  %2550 = vmatpush1.bf16.msra.mxu0 0
  %2551 = vmatprep.subr.bf16.mxu0 0
  %2552 = vmatpush1.bf16.msra.mxu0 0
  %2553 = vmatprep.subr.bf16.mxu0 0
  %2554 = vmatpush1.bf16.msra.mxu0 0
  %2555 = vmatprep.subr.bf16.mxu0 0
  %2556 = vmatpush1.bf16.msra.mxu0 0
  %2557 = vmatprep.subr.bf16.mxu0 0
  %2558 = vmatpush1.bf16.msra.mxu0 0
  %2559 = vmatprep.subr.bf16.mxu0 0
  %2560 = vmatpush1.bf16.msra.mxu0 0
  %2561 = vmatprep.subr.bf16.mxu0 0
  %2562 = vmatpush1.bf16.msra.mxu0 0
  %2563 = vmatprep.subr.bf16.mxu0 0
  %2564 = vmatpush1.bf16.msra.mxu0 0
  %2565 = vmatprep.mubr.bf16.mxu0 0
  %2566 = vmatmul.mubr.bf16.gmra.mrb[0].mxu0 %v2528
  %v2567 = vpop.f32.mrb[0].mxu0
  %v2568 = vadd.f32 %v2501, %v2567
  %v2569 = vpop.f32.mrb[0].mxu0
  %v2570 = vpop.f32.mrb[0].mxu0
  %v2571 = vadd.f32 %v2504, %v2570
  %v2572 = vpop.f32.mrb[0].mxu0
  %2573 = vmatprep.mubr.bf16.mxu0 0
  %2574 = vmatmul.mubr.bf16.gmra.mrb[0].mxu0 %v2531
  %v2575 = vpop.f32.mrb[0].mxu0
  %v2576 = vadd.f32 %v2509, %v2575
  %v2577 = vpop.f32.mrb[0].mxu0
  %v2578 = vpop.f32.mrb[0].mxu0
  %v2579 = vadd.f32 %v2512, %v2578
  %v2580 = vpop.f32.mrb[0].mxu0
  %2581 = vdwg.mxu0
  %s2582 = scalar_lea.vmem %s7, 32
  %v2583 = vld [vmem:[%s2582] sm:$0xf]
  %v2584 = vld [vmem:[%s2582 + $0x4] sm:$0xf]
  %v2585 = vld [vmem:[%s2582 + $0x8] sm:$0xf]
  %v2586 = vld [vmem:[%s2582 + $0xc] sm:$0xf]
  %v2591 = vunpack.c.l.b16 %v2583
  %v2592 = vunpack.c.l.b16 %v2584
  %v2593 = vunpack.c.l.b16 %v2585
  %v2594 = vunpack.c.l.b16 %v2586
  %v2595 = vpack.c.b16 %v2592, %v2591
  %v2596 = vpack.c.b16 %v2594, %v2593
  %v2600 = vsel %vm860, %v2425, 0
  %v2603 = vsel %vm860, %v2426, 0
  %2605 = vmatprep.subr.bf16.mxu0 0
  %2606 = vmatpush1.bf16.msra.mxu0 %v2595
  %2607 = vmatprep.subr.bf16.mxu0 0
  %2608 = vmatpush1.bf16.msra.mxu0 %v2596
  %2609 = vmatprep.subr.bf16.mxu0 0
  %2610 = vmatpush1.bf16.msra.mxu0 0
  %2611 = vmatprep.subr.bf16.mxu0 0
  %2612 = vmatpush1.bf16.msra.mxu0 0
  %2613 = vmatprep.subr.bf16.mxu0 0
  %2614 = vmatpush1.bf16.msra.mxu0 0
  %2615 = vmatprep.subr.bf16.mxu0 0
  %2616 = vmatpush1.bf16.msra.mxu0 0
  %2617 = vmatprep.subr.bf16.mxu0 0
  %2618 = vmatpush1.bf16.msra.mxu0 0
  %2619 = vmatprep.subr.bf16.mxu0 0
  %2620 = vmatpush1.bf16.msra.mxu0 0
  %2621 = vmatprep.subr.bf16.mxu0 0
  %2622 = vmatpush1.bf16.msra.mxu0 0
  %2623 = vmatprep.subr.bf16.mxu0 0
  %2624 = vmatpush1.bf16.msra.mxu0 0
  %2625 = vmatprep.subr.bf16.mxu0 0
  %2626 = vmatpush1.bf16.msra.mxu0 0
  %2627 = vmatprep.subr.bf16.mxu0 0
  %2628 = vmatpush1.bf16.msra.mxu0 0
  %2629 = vmatprep.subr.bf16.mxu0 0
  %2630 = vmatpush1.bf16.msra.mxu0 0
  %2631 = vmatprep.subr.bf16.mxu0 0
  %2632 = vmatpush1.bf16.msra.mxu0 0
  %2633 = vmatprep.subr.bf16.mxu0 0
  %2634 = vmatpush1.bf16.msra.mxu0 0
  %2635 = vmatprep.subr.bf16.mxu0 0
  %2636 = vmatpush1.bf16.msra.mxu0 0
  %2637 = vmatprep.mubr.bf16.mxu0 0
  %2638 = vmatmul.mubr.bf16.gmra.mrb[0].mxu0 %v2600
  %v2639 = vpop.f32.mrb[0].mxu0
  %v2640 = vadd.f32 0.0, %v2639
  %v2641 = vpop.f32.mrb[0].mxu0
  %v2642 = vpop.f32.mrb[0].mxu0
  %v2643 = vadd.f32 0.0, %v2642
  %v2644 = vpop.f32.mrb[0].mxu0
  %2645 = vmatprep.mubr.bf16.mxu0 0
  %2646 = vmatmul.mubr.bf16.gmra.mrb[0].mxu0 %v2603
  %v2647 = vpop.f32.mrb[0].mxu0
  %v2648 = vadd.f32 0.0, %v2647
  %v2649 = vpop.f32.mrb[0].mxu0
  %v2650 = vpop.f32.mrb[0].mxu0
  %v2651 = vadd.f32 0.0, %v2650
  %v2652 = vpop.f32.mrb[0].mxu0
  %2653 = vdwg.mxu0
  %v2654 = vadd.f32 %v2568, %v2640
  %v2655 = vadd.f32 %v2571, %v2643
  %v2656 = vadd.f32 %v2576, %v2648
  %v2657 = vadd.f32 %v2579, %v2651
  %s2658 = scalar_lea.vmem %s7, 48
  %v2659 = vld [vmem:[%s2658] sm:$0xf]
  %v2660 = vld [vmem:[%s2658 + $0x4] sm:$0xf]
  %v2661 = vld [vmem:[%s2658 + $0x8] sm:$0xf]
  %v2662 = vld [vmem:[%s2658 + $0xc] sm:$0xf]
  %v2667 = vunpack.c.l.b16 %v2659
  %v2668 = vunpack.c.l.b16 %v2660
  %v2669 = vunpack.c.l.b16 %v2661
  %v2670 = vunpack.c.l.b16 %v2662
  %v2671 = vpack.c.b16 %v2668, %v2667
  %v2672 = vpack.c.b16 %v2670, %v2669
  %v2676 = vsel %vm860, %v2427, 0
  %v2679 = vsel %vm860, %v2428, 0
  %2681 = vmatprep.subr.bf16.mxu0 0
  %2682 = vmatpush1.bf16.msra.mxu0 %v2671
  %2683 = vmatprep.subr.bf16.mxu0 0
  %2684 = vmatpush1.bf16.msra.mxu0 %v2672
  %2685 = vmatprep.subr.bf16.mxu0 0
  %2686 = vmatpush1.bf16.msra.mxu0 0
  %2687 = vmatprep.subr.bf16.mxu0 0
  %2688 = vmatpush1.bf16.msra.mxu0 0
  %2689 = vmatprep.subr.bf16.mxu0 0
  %2690 = vmatpush1.bf16.msra.mxu0 0
  %2691 = vmatprep.subr.bf16.mxu0 0
  %2692 = vmatpush1.bf16.msra.mxu0 0
  %2693 = vmatprep.subr.bf16.mxu0 0
  %2694 = vmatpush1.bf16.msra.mxu0 0
  %2695 = vmatprep.subr.bf16.mxu0 0
  %2696 = vmatpush1.bf16.msra.mxu0 0
  %2697 = vmatprep.subr.bf16.mxu0 0
  %2698 = vmatpush1.bf16.msra.mxu0 0
  %2699 = vmatprep.subr.bf16.mxu0 0
  %2700 = vmatpush1.bf16.msra.mxu0 0
  %2701 = vmatprep.subr.bf16.mxu0 0
  %2702 = vmatpush1.bf16.msra.mxu0 0
  %2703 = vmatprep.subr.bf16.mxu0 0
  %2704 = vmatpush1.bf16.msra.mxu0 0
  %2705 = vmatprep.subr.bf16.mxu0 0
  %2706 = vmatpush1.bf16.msra.mxu0 0
  %2707 = vmatprep.subr.bf16.mxu0 0
  %2708 = vmatpush1.bf16.msra.mxu0 0
  %2709 = vmatprep.subr.bf16.mxu0 0
  %2710 = vmatpush1.bf16.msra.mxu0 0
  %2711 = vmatprep.subr.bf16.mxu0 0
  %2712 = vmatpush1.bf16.msra.mxu0 0
  %2713 = vmatprep.mubr.bf16.mxu0 0
  %2714 = vmatmul.mubr.bf16.gmra.mrb[0].mxu0 %v2676
  %v2715 = vpop.f32.mrb[0].mxu0
  %v2716 = vadd.f32 0.0, %v2715
  %v2717 = vpop.f32.mrb[0].mxu0
  %v2718 = vpop.f32.mrb[0].mxu0
  %v2719 = vadd.f32 0.0, %v2718
  %v2720 = vpop.f32.mrb[0].mxu0
  %2721 = vmatprep.mubr.bf16.mxu0 0
  %2722 = vmatmul.mubr.bf16.gmra.mrb[0].mxu0 %v2679
  %v2723 = vpop.f32.mrb[0].mxu0
  %v2724 = vadd.f32 0.0, %v2723
  %v2725 = vpop.f32.mrb[0].mxu0
  %v2726 = vpop.f32.mrb[0].mxu0
  %v2727 = vadd.f32 0.0, %v2726
  %v2728 = vpop.f32.mrb[0].mxu0
  %2729 = vdwg.mxu0
  %v2730 = vadd.f32 %v2654, %v2716
  %v2731 = vadd.f32 %v2655, %v2719
  %v2732 = vadd.f32 %v2656, %v2724
  %v2733 = vadd.f32 %v2657, %v2727
  %s2734 = scalar_lea.vmem %s7, 64
  %v2735 = vld [vmem:[%s2734] sm:$0xf]
  %v2736 = vld [vmem:[%s2734 + $0x4] sm:$0xf]
  %v2737 = vld [vmem:[%s2734 + $0x8] sm:$0xf]
  %v2738 = vld [vmem:[%s2734 + $0xc] sm:$0xf]
  %v2743 = vunpack.c.l.b16 %v2735
  %v2744 = vunpack.c.l.b16 %v2736
  %v2745 = vunpack.c.l.b16 %v2737
  %v2746 = vunpack.c.l.b16 %v2738
  %v2747 = vpack.c.b16 %v2744, %v2743
  %v2748 = vpack.c.b16 %v2746, %v2745
  %v2752 = vsel %vm860, %v2429, 0
  %v2755 = vsel %vm860, %v2430, 0
  %2757 = vmatprep.subr.bf16.mxu0 0
  %2758 = vmatpush1.bf16.msra.mxu0 %v2747
  %2759 = vmatprep.subr.bf16.mxu0 0
  %2760 = vmatpush1.bf16.msra.mxu0 %v2748
  %2761 = vmatprep.subr.bf16.mxu0 0
  %2762 = vmatpush1.bf16.msra.mxu0 0
  %2763 = vmatprep.subr.bf16.mxu0 0
  %2764 = vmatpush1.bf16.msra.mxu0 0
  %2765 = vmatprep.subr.bf16.mxu0 0
  %2766 = vmatpush1.bf16.msra.mxu0 0
  %2767 = vmatprep.subr.bf16.mxu0 0
  %2768 = vmatpush1.bf16.msra.mxu0 0
  %2769 = vmatprep.subr.bf16.mxu0 0
  %2770 = vmatpush1.bf16.msra.mxu0 0
  %2771 = vmatprep.subr.bf16.mxu0 0
  %2772 = vmatpush1.bf16.msra.mxu0 0
  %2773 = vmatprep.subr.bf16.mxu0 0
  %2774 = vmatpush1.bf16.msra.mxu0 0
  %2775 = vmatprep.subr.bf16.mxu0 0
  %2776 = vmatpush1.bf16.msra.mxu0 0
  %2777 = vmatprep.subr.bf16.mxu0 0
  %2778 = vmatpush1.bf16.msra.mxu0 0
  %2779 = vmatprep.subr.bf16.mxu0 0
  %2780 = vmatpush1.bf16.msra.mxu0 0
  %2781 = vmatprep.subr.bf16.mxu0 0
  %2782 = vmatpush1.bf16.msra.mxu0 0
  %2783 = vmatprep.subr.bf16.mxu0 0
  %2784 = vmatpush1.bf16.msra.mxu0 0
  %2785 = vmatprep.subr.bf16.mxu0 0
  %2786 = vmatpush1.bf16.msra.mxu0 0
  %2787 = vmatprep.subr.bf16.mxu0 0
  %2788 = vmatpush1.bf16.msra.mxu0 0
  %2789 = vmatprep.mubr.bf16.mxu0 0
  %2790 = vmatmul.mubr.bf16.gmra.mrb[0].mxu0 %v2752
  %v2791 = vpop.f32.mrb[0].mxu0
  %v2792 = vadd.f32 0.0, %v2791
  %v2793 = vpop.f32.mrb[0].mxu0
  %v2794 = vpop.f32.mrb[0].mxu0
  %v2795 = vadd.f32 0.0, %v2794
  %v2796 = vpop.f32.mrb[0].mxu0
  %2797 = vmatprep.mubr.bf16.mxu0 0
  %2798 = vmatmul.mubr.bf16.gmra.mrb[0].mxu0 %v2755
  %v2799 = vpop.f32.mrb[0].mxu0
  %v2800 = vadd.f32 0.0, %v2799
  %v2801 = vpop.f32.mrb[0].mxu0
  %v2802 = vpop.f32.mrb[0].mxu0
  %v2803 = vadd.f32 0.0, %v2802
  %v2804 = vpop.f32.mrb[0].mxu0
  %2805 = vdwg.mxu0
  %v2806 = vadd.f32 %v2730, %v2792
  %v2807 = vadd.f32 %v2731, %v2795
  %v2808 = vadd.f32 %v2732, %v2800
  %v2809 = vadd.f32 %v2733, %v2803
  %s2810 = scalar_lea.vmem %s7, 80
  %v2811 = vld [vmem:[%s2810] sm:$0xf]
  %v2812 = vld [vmem:[%s2810 + $0x4] sm:$0xf]
  %v2813 = vld [vmem:[%s2810 + $0x8] sm:$0xf]
  %v2814 = vld [vmem:[%s2810 + $0xc] sm:$0xf]
  %v2819 = vunpack.c.l.b16 %v2811
  %v2820 = vunpack.c.l.b16 %v2812
  %v2821 = vunpack.c.l.b16 %v2813
  %v2822 = vunpack.c.l.b16 %v2814
  %v2823 = vpack.c.b16 %v2820, %v2819
  %v2824 = vpack.c.b16 %v2822, %v2821
  %v2828 = vsel %vm860, %v2431, 0
  %v2831 = vsel %vm860, %v2432, 0
  %2833 = vmatprep.subr.bf16.mxu0 0
  %2834 = vmatpush1.bf16.msra.mxu0 %v2823
  %2835 = vmatprep.subr.bf16.mxu0 0
  %2836 = vmatpush1.bf16.msra.mxu0 %v2824
  %2837 = vmatprep.subr.bf16.mxu0 0
  %2838 = vmatpush1.bf16.msra.mxu0 0
  %2839 = vmatprep.subr.bf16.mxu0 0
  %2840 = vmatpush1.bf16.msra.mxu0 0
  %2841 = vmatprep.subr.bf16.mxu0 0
  %2842 = vmatpush1.bf16.msra.mxu0 0
  %2843 = vmatprep.subr.bf16.mxu0 0
  %2844 = vmatpush1.bf16.msra.mxu0 0
  %2845 = vmatprep.subr.bf16.mxu0 0
  %2846 = vmatpush1.bf16.msra.mxu0 0
  %2847 = vmatprep.subr.bf16.mxu0 0
  %2848 = vmatpush1.bf16.msra.mxu0 0
  %2849 = vmatprep.subr.bf16.mxu0 0
  %2850 = vmatpush1.bf16.msra.mxu0 0
  %2851 = vmatprep.subr.bf16.mxu0 0
  %2852 = vmatpush1.bf16.msra.mxu0 0
  %2853 = vmatprep.subr.bf16.mxu0 0
  %2854 = vmatpush1.bf16.msra.mxu0 0
  %2855 = vmatprep.subr.bf16.mxu0 0
  %2856 = vmatpush1.bf16.msra.mxu0 0
  %2857 = vmatprep.subr.bf16.mxu0 0
  %2858 = vmatpush1.bf16.msra.mxu0 0
  %2859 = vmatprep.subr.bf16.mxu0 0
  %2860 = vmatpush1.bf16.msra.mxu0 0
  %2861 = vmatprep.subr.bf16.mxu0 0
  %2862 = vmatpush1.bf16.msra.mxu0 0
  %2863 = vmatprep.subr.bf16.mxu0 0
  %2864 = vmatpush1.bf16.msra.mxu0 0
  %2865 = vmatprep.mubr.bf16.mxu0 0
  %2866 = vmatmul.mubr.bf16.gmra.mrb[0].mxu0 %v2828
  %v2867 = vpop.f32.mrb[0].mxu0
  %v2868 = vadd.f32 0.0, %v2867
  %v2869 = vpop.f32.mrb[0].mxu0
  %v2870 = vpop.f32.mrb[0].mxu0
  %v2871 = vadd.f32 0.0, %v2870
  %v2872 = vpop.f32.mrb[0].mxu0
  %2873 = vmatprep.mubr.bf16.mxu0 0
  %2874 = vmatmul.mubr.bf16.gmra.mrb[0].mxu0 %v2831
  %v2875 = vpop.f32.mrb[0].mxu0
  %v2876 = vadd.f32 0.0, %v2875
  %v2877 = vpop.f32.mrb[0].mxu0
  %v2878 = vpop.f32.mrb[0].mxu0
  %v2879 = vadd.f32 0.0, %v2878
  %v2880 = vpop.f32.mrb[0].mxu0
  %2881 = vdwg.mxu0
  %v2882 = vadd.f32 %v2806, %v2868
  %v2883 = vadd.f32 %v2807, %v2871
  %v2884 = vadd.f32 %v2808, %v2876
  %v2885 = vadd.f32 %v2809, %v2879
  %s2886 = scalar_lea.vmem %s7, 96
  %v2887 = vld [vmem:[%s2886] sm:$0xf]
  %v2888 = vld [vmem:[%s2886 + $0x4] sm:$0xf]
  %v2889 = vld [vmem:[%s2886 + $0x8] sm:$0xf]
  %v2890 = vld [vmem:[%s2886 + $0xc] sm:$0xf]
  %v2895 = vunpack.c.l.b16 %v2887
  %v2896 = vunpack.c.l.b16 %v2888
  %v2897 = vunpack.c.l.b16 %v2889
  %v2898 = vunpack.c.l.b16 %v2890
  %v2899 = vpack.c.b16 %v2896, %v2895
  %v2900 = vpack.c.b16 %v2898, %v2897
  %v2904 = vsel %vm860, %v2433, 0
  %v2907 = vsel %vm860, %v2434, 0
  %2909 = vmatprep.subr.bf16.mxu0 0
  %2910 = vmatpush1.bf16.msra.mxu0 %v2899
  %2911 = vmatprep.subr.bf16.mxu0 0
  %2912 = vmatpush1.bf16.msra.mxu0 %v2900
  %2913 = vmatprep.subr.bf16.mxu0 0
  %2914 = vmatpush1.bf16.msra.mxu0 0
  %2915 = vmatprep.subr.bf16.mxu0 0
  %2916 = vmatpush1.bf16.msra.mxu0 0
  %2917 = vmatprep.subr.bf16.mxu0 0
  %2918 = vmatpush1.bf16.msra.mxu0 0
  %2919 = vmatprep.subr.bf16.mxu0 0
  %2920 = vmatpush1.bf16.msra.mxu0 0
  %2921 = vmatprep.subr.bf16.mxu0 0
  %2922 = vmatpush1.bf16.msra.mxu0 0
  %2923 = vmatprep.subr.bf16.mxu0 0
  %2924 = vmatpush1.bf16.msra.mxu0 0
  %2925 = vmatprep.subr.bf16.mxu0 0
  %2926 = vmatpush1.bf16.msra.mxu0 0
  %2927 = vmatprep.subr.bf16.mxu0 0
  %2928 = vmatpush1.bf16.msra.mxu0 0
  %2929 = vmatprep.subr.bf16.mxu0 0
  %2930 = vmatpush1.bf16.msra.mxu0 0
  %2931 = vmatprep.subr.bf16.mxu0 0
  %2932 = vmatpush1.bf16.msra.mxu0 0
  %2933 = vmatprep.subr.bf16.mxu0 0
  %2934 = vmatpush1.bf16.msra.mxu0 0
  %2935 = vmatprep.subr.bf16.mxu0 0
  %2936 = vmatpush1.bf16.msra.mxu0 0
  %2937 = vmatprep.subr.bf16.mxu0 0
  %2938 = vmatpush1.bf16.msra.mxu0 0
  %2939 = vmatprep.subr.bf16.mxu0 0
  %2940 = vmatpush1.bf16.msra.mxu0 0
  %2941 = vmatprep.mubr.bf16.mxu0 0
  %2942 = vmatmul.mubr.bf16.gmra.mrb[0].mxu0 %v2904
  %v2943 = vpop.f32.mrb[0].mxu0
  %v2944 = vadd.f32 0.0, %v2943
  %v2945 = vpop.f32.mrb[0].mxu0
  %v2946 = vpop.f32.mrb[0].mxu0
  %v2947 = vadd.f32 0.0, %v2946
  %v2948 = vpop.f32.mrb[0].mxu0
  %2949 = vmatprep.mubr.bf16.mxu0 0
  %2950 = vmatmul.mubr.bf16.gmra.mrb[0].mxu0 %v2907
  %v2951 = vpop.f32.mrb[0].mxu0
  %v2952 = vadd.f32 0.0, %v2951
  %v2953 = vpop.f32.mrb[0].mxu0
  %v2954 = vpop.f32.mrb[0].mxu0
  %v2955 = vadd.f32 0.0, %v2954
  %v2956 = vpop.f32.mrb[0].mxu0
  %2957 = vdwg.mxu0
  %v2958 = vadd.f32 %v2882, %v2944
  %v2959 = vadd.f32 %v2883, %v2947
  %v2960 = vadd.f32 %v2884, %v2952
  %v2961 = vadd.f32 %v2885, %v2955
  %s2962 = scalar_lea.vmem %s7, 112
  %v2963 = vld [vmem:[%s2962] sm:$0xf]
  %v2964 = vld [vmem:[%s2962 + $0x4] sm:$0xf]
  %v2965 = vld [vmem:[%s2962 + $0x8] sm:$0xf]
  %v2966 = vld [vmem:[%s2962 + $0xc] sm:$0xf]
  %v2971 = vunpack.c.l.b16 %v2963
  %v2972 = vunpack.c.l.b16 %v2964
  %v2973 = vunpack.c.l.b16 %v2965
  %v2974 = vunpack.c.l.b16 %v2966
  %v2975 = vpack.c.b16 %v2972, %v2971
  %v2976 = vpack.c.b16 %v2974, %v2973
  %v2980 = vsel %vm860, %v2435, 0
  %v2983 = vsel %vm860, %v2436, 0
  %2985 = vmatprep.subr.bf16.mxu0 0
  %2986 = vmatpush1.bf16.msra.mxu0 %v2975
  %2987 = vmatprep.subr.bf16.mxu0 0
  %2988 = vmatpush1.bf16.msra.mxu0 %v2976
  %2989 = vmatprep.subr.bf16.mxu0 0
  %2990 = vmatpush1.bf16.msra.mxu0 0
  %2991 = vmatprep.subr.bf16.mxu0 0
  %2992 = vmatpush1.bf16.msra.mxu0 0
  %2993 = vmatprep.subr.bf16.mxu0 0
  %2994 = vmatpush1.bf16.msra.mxu0 0
  %2995 = vmatprep.subr.bf16.mxu0 0
  %2996 = vmatpush1.bf16.msra.mxu0 0
  %2997 = vmatprep.subr.bf16.mxu0 0
  %2998 = vmatpush1.bf16.msra.mxu0 0
  %2999 = vmatprep.subr.bf16.mxu0 0
  %3000 = vmatpush1.bf16.msra.mxu0 0
  %3001 = vmatprep.subr.bf16.mxu0 0
  %3002 = vmatpush1.bf16.msra.mxu0 0
  %3003 = vmatprep.subr.bf16.mxu0 0
  %3004 = vmatpush1.bf16.msra.mxu0 0
  %3005 = vmatprep.subr.bf16.mxu0 0
  %3006 = vmatpush1.bf16.msra.mxu0 0
  %3007 = vmatprep.subr.bf16.mxu0 0
  %3008 = vmatpush1.bf16.msra.mxu0 0
  %3009 = vmatprep.subr.bf16.mxu0 0
  %3010 = vmatpush1.bf16.msra.mxu0 0
  %3011 = vmatprep.subr.bf16.mxu0 0
  %3012 = vmatpush1.bf16.msra.mxu0 0
  %3013 = vmatprep.subr.bf16.mxu0 0
  %3014 = vmatpush1.bf16.msra.mxu0 0
  %3015 = vmatprep.subr.bf16.mxu0 0
  %3016 = vmatpush1.bf16.msra.mxu0 0
  %3017 = vmatprep.mubr.bf16.mxu0 0
  %3018 = vmatmul.mubr.bf16.gmra.mrb[0].mxu0 %v2980
  %v3019 = vpop.f32.mrb[0].mxu0
  %v3020 = vadd.f32 0.0, %v3019
  %v3021 = vpop.f32.mrb[0].mxu0
  %v3022 = vpop.f32.mrb[0].mxu0
  %v3023 = vadd.f32 0.0, %v3022
  %v3024 = vpop.f32.mrb[0].mxu0
  %3025 = vmatprep.mubr.bf16.mxu0 0
  %3026 = vmatmul.mubr.bf16.gmra.mrb[0].mxu0 %v2983
  %v3027 = vpop.f32.mrb[0].mxu0
  %v3028 = vadd.f32 0.0, %v3027
  %v3029 = vpop.f32.mrb[0].mxu0
  %v3030 = vpop.f32.mrb[0].mxu0
  %v3031 = vadd.f32 0.0, %v3030
  %v3032 = vpop.f32.mrb[0].mxu0
  %3033 = vdwg.mxu0
  %v3034 = vadd.f32 %v2958, %v3020
  %v3035 = vadd.f32 %v2959, %v3023
  %v3036 = vadd.f32 %v2960, %v3028
  %v3037 = vadd.f32 %v2961, %v3031
  %s3038 = scalar_lea.vmem %s7, 128
  %v3039 = vld [vmem:[%s3038] sm:$0xf]
  %v3040 = vld [vmem:[%s3038 + $0x4] sm:$0xf]
  %v3041 = vld [vmem:[%s3038 + $0x8] sm:$0xf]
  %v3042 = vld [vmem:[%s3038 + $0xc] sm:$0xf]
  %v3047 = vunpack.c.l.b16 %v3039
  %v3048 = vunpack.c.l.b16 %v3040
  %v3049 = vunpack.c.l.b16 %v3041
  %v3050 = vunpack.c.l.b16 %v3042
  %v3051 = vpack.c.b16 %v3048, %v3047
  %v3052 = vpack.c.b16 %v3050, %v3049
  %v3056 = vsel %vm860, %v2437, 0
  %v3059 = vsel %vm860, %v2438, 0
  %3061 = vmatprep.subr.bf16.mxu0 0
  %3062 = vmatpush1.bf16.msra.mxu0 %v3051
  %3063 = vmatprep.subr.bf16.mxu0 0
  %3064 = vmatpush1.bf16.msra.mxu0 %v3052
  %3065 = vmatprep.subr.bf16.mxu0 0
  %3066 = vmatpush1.bf16.msra.mxu0 0
  %3067 = vmatprep.subr.bf16.mxu0 0
  %3068 = vmatpush1.bf16.msra.mxu0 0
  %3069 = vmatprep.subr.bf16.mxu0 0
  %3070 = vmatpush1.bf16.msra.mxu0 0
  %3071 = vmatprep.subr.bf16.mxu0 0
  %3072 = vmatpush1.bf16.msra.mxu0 0
  %3073 = vmatprep.subr.bf16.mxu0 0
  %3074 = vmatpush1.bf16.msra.mxu0 0
  %3075 = vmatprep.subr.bf16.mxu0 0
  %3076 = vmatpush1.bf16.msra.mxu0 0
  %3077 = vmatprep.subr.bf16.mxu0 0
  %3078 = vmatpush1.bf16.msra.mxu0 0
  %3079 = vmatprep.subr.bf16.mxu0 0
  %3080 = vmatpush1.bf16.msra.mxu0 0
  %3081 = vmatprep.subr.bf16.mxu0 0
  %3082 = vmatpush1.bf16.msra.mxu0 0
  %3083 = vmatprep.subr.bf16.mxu0 0
  %3084 = vmatpush1.bf16.msra.mxu0 0
  %3085 = vmatprep.subr.bf16.mxu0 0
  %3086 = vmatpush1.bf16.msra.mxu0 0
  %3087 = vmatprep.subr.bf16.mxu0 0
  %3088 = vmatpush1.bf16.msra.mxu0 0
  %3089 = vmatprep.subr.bf16.mxu0 0
  %3090 = vmatpush1.bf16.msra.mxu0 0
  %3091 = vmatprep.subr.bf16.mxu0 0
  %3092 = vmatpush1.bf16.msra.mxu0 0
  %3093 = vmatprep.mubr.bf16.mxu0 0
  %3094 = vmatmul.mubr.bf16.gmra.mrb[0].mxu0 %v3056
  %v3095 = vpop.f32.mrb[0].mxu0
  %v3096 = vadd.f32 0.0, %v3095
  %v3097 = vpop.f32.mrb[0].mxu0
  %v3098 = vpop.f32.mrb[0].mxu0
  %v3099 = vadd.f32 0.0, %v3098
  %v3100 = vpop.f32.mrb[0].mxu0
  %3101 = vmatprep.mubr.bf16.mxu0 0
  %3102 = vmatmul.mubr.bf16.gmra.mrb[0].mxu0 %v3059
  %v3103 = vpop.f32.mrb[0].mxu0
  %v3104 = vadd.f32 0.0, %v3103
  %v3105 = vpop.f32.mrb[0].mxu0
  %v3106 = vpop.f32.mrb[0].mxu0
  %v3107 = vadd.f32 0.0, %v3106
  %v3108 = vpop.f32.mrb[0].mxu0
  %3109 = vdwg.mxu0
  %v3110 = vadd.f32 %v3034, %v3096
  %v3111 = vadd.f32 %v3035, %v3099
  %v3112 = vadd.f32 %v3036, %v3104
  %v3113 = vadd.f32 %v3037, %v3107
  %v3114 = vld [vmem:[%s8] sm:$0x1]
  %v3116 = vlaneseq
  %v3117 = vshrl.u32 %v3116, 7
  %v3118 = vsub.s32 0, %v3117
  %v3119 = vrot.slane %v3114, %v3118
  %v3121 = vadd.f32 %v3110, %v3119
  %v3122 = vadd.f32 %v3111, %v3119
  %v3123 = vadd.f32 %v3112, %v3119
  %v3124 = vadd.f32 %v3113, %v3119
  %v3125 = vadd.f32 %v3121, %v2058
  %v3126 = vadd.f32 %v3122, %v2059
  %v3127 = vadd.f32 %v3123, %v2060
  %v3128 = vadd.f32 %v3124, %v2061
  %v3129 = vmax.f32 %v3125, 0.0
  %v3130 = vmax.f32 %v3126, 0.0
  %v3131 = vmax.f32 %v3127, 0.0
  %v3132 = vmax.f32 %v3128, 0.0
  %v3133 = vpack.c.bf16 %v3130, %v3129
  %v3134 = vpack.c.bf16 %v3132, %v3131
  %v3135 = vld [vmem:[%s9] sm:$0xf]
  %v3136 = vld [vmem:[%s9 + $0x4] sm:$0xf]
  %v3137 = vld [vmem:[%s9 + $0x8] sm:$0xf]
  %v3138 = vld [vmem:[%s9 + $0xc] sm:$0xf]
  %v3139 = vld [vmem:[%s10] sm:$0x1]
  %v3141 = vlaneseq
  %v3142 = vshrl.u32 %v3141, 7
  %v3143 = vsub.s32 0, %v3142
  %v3144 = vrot.slane %v3139, %v3143
  %v3150 = vunpack.c.l.b16 %v3135
  %v3151 = vunpack.c.l.b16 %v3136
  %v3152 = vunpack.c.l.b16 %v3137
  %v3153 = vunpack.c.l.b16 %v3138
  %v3154 = vpack.c.b16 %v3151, %v3150
  %v3155 = vpack.c.b16 %v3153, %v3152
  %v3159 = vsel %vm860, %v3133, 0
  %v3162 = vsel %vm860, %v3134, 0
  %3164 = vmatprep.subr.bf16.mxu0 0
  %3165 = vmatpush1.bf16.msra.mxu0 %v3154
  %3166 = vmatprep.subr.bf16.mxu0 0
  %3167 = vmatpush1.bf16.msra.mxu0 %v3155
  %3168 = vmatprep.subr.bf16.mxu0 0
  %3169 = vmatpush1.bf16.msra.mxu0 0
  %3170 = vmatprep.subr.bf16.mxu0 0
  %3171 = vmatpush1.bf16.msra.mxu0 0
  %3172 = vmatprep.subr.bf16.mxu0 0
  %3173 = vmatpush1.bf16.msra.mxu0 0
  %3174 = vmatprep.subr.bf16.mxu0 0
  %3175 = vmatpush1.bf16.msra.mxu0 0
  %3176 = vmatprep.subr.bf16.mxu0 0
  %3177 = vmatpush1.bf16.msra.mxu0 0
  %3178 = vmatprep.subr.bf16.mxu0 0
  %3179 = vmatpush1.bf16.msra.mxu0 0
  %3180 = vmatprep.subr.bf16.mxu0 0
  %3181 = vmatpush1.bf16.msra.mxu0 0
  %3182 = vmatprep.subr.bf16.mxu0 0
  %3183 = vmatpush1.bf16.msra.mxu0 0
  %3184 = vmatprep.subr.bf16.mxu0 0
  %3185 = vmatpush1.bf16.msra.mxu0 0
  %3186 = vmatprep.subr.bf16.mxu0 0
  %3187 = vmatpush1.bf16.msra.mxu0 0
  %3188 = vmatprep.subr.bf16.mxu0 0
  %3189 = vmatpush1.bf16.msra.mxu0 0
  %3190 = vmatprep.subr.bf16.mxu0 0
  %3191 = vmatpush1.bf16.msra.mxu0 0
  %3192 = vmatprep.subr.bf16.mxu0 0
  %3193 = vmatpush1.bf16.msra.mxu0 0
  %3194 = vmatprep.subr.bf16.mxu0 0
  %3195 = vmatpush1.bf16.msra.mxu0 0
  %3196 = vmatprep.mubr.bf16.mxu0 0
  %3197 = vmatmul.mubr.bf16.gmra.mrb[0].mxu0 %v3159
  %v3198 = vpop.f32.mrb[0].mxu0
  %v3199 = vadd.f32 %v3144, %v3198
  %v3200 = vpop.f32.mrb[0].mxu0
  %v3201 = vpop.f32.mrb[0].mxu0
  %v3202 = vadd.f32 %v3144, %v3201
  %v3203 = vpop.f32.mrb[0].mxu0
  %3204 = vmatprep.mubr.bf16.mxu0 0
  %3205 = vmatmul.mubr.bf16.gmra.mrb[0].mxu0 %v3162
  %v3206 = vpop.f32.mrb[0].mxu0
  %v3207 = vadd.f32 %v3144, %v3206
  %v3208 = vpop.f32.mrb[0].mxu0
  %v3209 = vpop.f32.mrb[0].mxu0
  %v3210 = vadd.f32 %v3144, %v3209
  %v3211 = vpop.f32.mrb[0].mxu0
  %3212 = vdwg.mxu0
  %v3213 = vadd.f32 %v3199, %v3129
  %v3214 = vadd.f32 %v3202, %v3130
  %v3215 = vadd.f32 %v3207, %v3131
  %v3216 = vadd.f32 %v3210, %v3132
  %v3217 = vpack.c.bf16 %v3214, %v3213
  %v3218 = vpack.c.bf16 %v3216, %v3215
  %v3219 = vld [vmem:[%s11] sm:$0xf]
  %v3220 = vld [vmem:[%s11 + $0x4] sm:$0xf]
  %v3221 = vld [vmem:[%s11 + $0x8] sm:$0xf]
  %v3222 = vld [vmem:[%s11 + $0xc] sm:$0xf]
  %v3223 = vld [vmem:[%s12] sm:$0x1]
  %v3225 = vlaneseq
  %v3226 = vshrl.u32 %v3225, 7
  %v3227 = vsub.s32 0, %v3226
  %v3228 = vrot.slane %v3223, %v3227
  %v3234 = vunpack.c.l.b16 %v3219
  %v3235 = vunpack.c.l.b16 %v3220
  %v3236 = vunpack.c.l.b16 %v3221
  %v3237 = vunpack.c.l.b16 %v3222
  %v3238 = vpack.c.b16 %v3235, %v3234
  %v3239 = vpack.c.b16 %v3237, %v3236
  %v3243 = vsel %vm860, %v3217, 0
  %v3246 = vsel %vm860, %v3218, 0
  %3248 = vmatprep.subr.bf16.mxu0 0
  %3249 = vmatpush1.bf16.msra.mxu0 %v3238
  %3250 = vmatprep.subr.bf16.mxu0 0
  %3251 = vmatpush1.bf16.msra.mxu0 %v3239
  %3252 = vmatprep.subr.bf16.mxu0 0
  %3253 = vmatpush1.bf16.msra.mxu0 0
  %3254 = vmatprep.subr.bf16.mxu0 0
  %3255 = vmatpush1.bf16.msra.mxu0 0
  %3256 = vmatprep.subr.bf16.mxu0 0
  %3257 = vmatpush1.bf16.msra.mxu0 0
  %3258 = vmatprep.subr.bf16.mxu0 0
  %3259 = vmatpush1.bf16.msra.mxu0 0
  %3260 = vmatprep.subr.bf16.mxu0 0
  %3261 = vmatpush1.bf16.msra.mxu0 0
  %3262 = vmatprep.subr.bf16.mxu0 0
  %3263 = vmatpush1.bf16.msra.mxu0 0
  %3264 = vmatprep.subr.bf16.mxu0 0
  %3265 = vmatpush1.bf16.msra.mxu0 0
  %3266 = vmatprep.subr.bf16.mxu0 0
  %3267 = vmatpush1.bf16.msra.mxu0 0
  %3268 = vmatprep.subr.bf16.mxu0 0
  %3269 = vmatpush1.bf16.msra.mxu0 0
  %3270 = vmatprep.subr.bf16.mxu0 0
  %3271 = vmatpush1.bf16.msra.mxu0 0
  %3272 = vmatprep.subr.bf16.mxu0 0
  %3273 = vmatpush1.bf16.msra.mxu0 0
  %3274 = vmatprep.subr.bf16.mxu0 0
  %3275 = vmatpush1.bf16.msra.mxu0 0
  %3276 = vmatprep.subr.bf16.mxu0 0
  %3277 = vmatpush1.bf16.msra.mxu0 0
  %3278 = vmatprep.subr.bf16.mxu0 0
  %3279 = vmatpush1.bf16.msra.mxu0 0
  %3280 = vmatprep.mubr.bf16.mxu0 0
  %3281 = vmatmul.mubr.bf16.gmra.mrb[0].mxu0 %v3243
  %v3282 = vpop.f32.mrb[0].mxu0
  %v3283 = vadd.f32 %v3228, %v3282
  %v3284 = vpop.f32.mrb[0].mxu0
  %v3285 = vpop.f32.mrb[0].mxu0
  %v3286 = vadd.f32 %v3228, %v3285
  %v3287 = vpop.f32.mrb[0].mxu0
  %3288 = vmatprep.mubr.bf16.mxu0 0
  %3289 = vmatmul.mubr.bf16.gmra.mrb[0].mxu0 %v3246
  %v3290 = vpop.f32.mrb[0].mxu0
  %v3291 = vadd.f32 %v3228, %v3290
  %v3292 = vpop.f32.mrb[0].mxu0
  %v3293 = vpop.f32.mrb[0].mxu0
  %v3294 = vadd.f32 %v3228, %v3293
  %v3295 = vpop.f32.mrb[0].mxu0
  %3296 = vdwg.mxu0
  %3297 = vst [vmem:[%s13] sm:$0xff] %v3283
  %3298 = vst [vmem:[%s13 + $0x8] sm:$0xff] %v3286
  %3299 = vst [vmem:[%s13 + $0x10] sm:$0xff] %v3291
  %3300 = vst [vmem:[%s13 + $0x18] sm:$0xff] %v3294
  // Predicated region
  $region54: #{encoder_forward.1} parent=0 // pred_check
    _
  $region55: #{encoder_forward.1} parent=0 // pred_check_branch
    %3302 = sbr.rel (0) target = $region57
  $region56: #{encoder_forward.1} parent=0 // pred_region
    _
  $region57: #{encoder_forward.1} parent=0 // pred_fallthru
    _
  // Predicated region
  $region58: #{encoder_forward.1} parent=0 // pred_check
    _
  $region59: #{encoder_forward.1} parent=0 // pred_check_branch
    %3304 = sbr.rel (0) target = $region61
  $region60: #{encoder_forward.1} parent=0 // pred_region
    _
  $region61: #{encoder_forward.1} parent=0 // pred_fallthru
    _

</llo_original>
